<compile_context>
chip_gen: v5e
topology: v5e:2x2
jax: 0.10.0
libtpu: 0.0.40
codegen_flags: <defaults>
</compile_context>

<pallas_src>
import jax
import jax.numpy as jnp
from jax.experimental import pallas as pl
from jax.experimental.pallas import tpu as pltpu


# ---------------------------- model config (small) --------------------------
B = 2                      # batch
C = 3                      # input channels (RGB)
IMG = 16                   # spatial size
PATCH = 4                  # patch size -> 4x4 grid = 16 patches
N_PATCH = (IMG // PATCH) ** 2
SEQ = N_PATCH + 1          # +1 cls token = 17
SP = 24                    # SEQ padded up to a multiple of 8 (sublane-aligned)
CPP = C * PATCH * PATCH    # flattened patch dim = 48
D = 32                     # hidden dim
HEADS = 4
DH = D // HEADS
MLP = 4 * D
DEPTH = 2
N_CLASSES = 100            # module default n_classes=100
N_CLASSES_PAD = 128        # pad classifier to 128 lanes (lane-dense stores)
LN_EPS = 1e-6
NEG_INF = -1e30


def _vmem_spec():
    return pl.BlockSpec(memory_space=pltpu.MemorySpace.VMEM)


# ------------------------------ fused kernel ---------------------------------
def _ln(x, g, b):
    """LayerNorm over the last dim (f32 math), g/b shaped [1, D]."""
    mu = jnp.mean(x, axis=-1, keepdims=True)
    xc = x - mu
    var = jnp.mean(xc * xc, axis=-1, keepdims=True)
    return xc * jax.lax.rsqrt(var + LN_EPS) * g + b


def _vit_fused_kernel(
    xp_ref, patch_w_ref, cls_pos_ref, mask_ref,
    ln1_g_ref, ln1_b_ref, qkv_w_ref, qkv_b_ref,
    proj_w_ref, proj_b_ref, ln2_g_ref, ln2_b_ref,
    fc1_w_ref, fc1_b_ref, fc2_w_ref, fc2_b_ref,
    lnf_g_ref, lnf_b_ref, head_w_ref, head_b_ref,
    out_ref,
):
    scale = float(DH) ** -0.5

    # --- patch embed (conv-as-matmul) + cls token + positional embedding -----
    # xp rows for the cls slot / padding are zero; cls_pos carries
    # (cls_token + pos[0]) on row 0 and (patch_b + pos[1:]) on patch rows.
    h = jnp.dot(xp_ref[...], patch_w_ref[...],
                preferred_element_type=jnp.float32)
    h = h + cls_pos_ref[...]                       # [B*SP, D]

    mask = mask_ref[...]                           # [B*SP, B*SP] additive bias

    # --- transformer blocks (static loop, all weights resident in VMEM) ------
    for d in range(DEPTH):
        # attention
        n1 = _ln(h, ln1_g_ref[d], ln1_b_ref[d])
        qkv = jnp.dot(n1, qkv_w_ref[d],
                      preferred_element_type=jnp.float32) + qkv_b_ref[d]
        pw = proj_w_ref[d]                         # [D, D]
        attn = jnp.zeros_like(h)                   # accumulates proj(concat(heads))
        for hh in range(HEADS):
            qh = qkv[:, hh * DH:(hh + 1) * DH]                     # [B*SP, DH]
            kh = qkv[:, D + hh * DH:D + (hh + 1) * DH]             # [B*SP, DH]
            vh = qkv[:, 2 * D + hh * DH:2 * D + (hh + 1) * DH]     # [B*SP, DH]
            # q @ k^T without an explicit transpose: contract the last dims.
            s = jax.lax.dot_general(
                qh, kh, (((1,), (1,)), ((), ())),
                preferred_element_type=jnp.float32)                # [B*SP, B*SP]
            s = s * scale + mask
            m = jnp.max(s, axis=-1, keepdims=True)
            p = jnp.exp(s - m)
            denom = jnp.sum(p, axis=-1, keepdims=True)
            p = p * pl.reciprocal(denom, approx=True)
            oh = jnp.dot(p, vh, preferred_element_type=jnp.float32)  # [B*SP, DH]
            # proj(concat_h(oh)) == sum_h oh @ proj_w[h*DH:(h+1)*DH, :]
            attn = attn + jnp.dot(oh, pw[hh * DH:(hh + 1) * DH, :],
                                  preferred_element_type=jnp.float32)
        h = attn + proj_b_ref[d] + h

        # MLP
        n2 = _ln(h, ln2_g_ref[d], ln2_b_ref[d])
        m1 = jnp.dot(n2, fc1_w_ref[d],
                     preferred_element_type=jnp.float32) + fc1_b_ref[d]
        m1 = jax.nn.gelu(m1, approximate=True)
        h = jnp.dot(m1, fc2_w_ref[d],
                    preferred_element_type=jnp.float32) + fc2_b_ref[d] + h

    # --- final LayerNorm on cls rows only, fused with (padded) head ----------
    g = lnf_g_ref[...]
    bb = lnf_b_ref[...]
    hw = head_w_ref[...]                           # [D, 128]
    hb = head_b_ref[...]                           # [1, 128]
    for bi in range(B):
        row = h[bi * SP:bi * SP + 1, :]            # cls row of batch bi, [1, D]
        rown = _ln(row, g, bb)
        logits = jnp.dot(rown, hw, preferred_element_type=jnp.float32) + hb
        out_ref[pl.ds(bi, 1), :] = logits


# ------------------------------ parameter setup -------------------------------
def init_params(key):
    def nrm(k, shape, std=0.02):
        return jax.random.normal(k, shape, dtype=jnp.float32) * std

    keys = jax.random.split(key, 4 + 4 * DEPTH)
    params = {
        # conv patch-embed weight [D, C, P, P] flattened to [C*P*P, D]
        "patch_w": nrm(keys[0], (CPP, D)),
        "patch_b": jnp.zeros((D,), jnp.float32),
        "cls_token": nrm(keys[1], (1, 1, D)),
        "pos_embed": nrm(keys[2], (1, SEQ, D)),
        "ln_g": jnp.ones((D,), jnp.float32),
        "ln_b": jnp.zeros((D,), jnp.float32),
        "head_w": nrm(keys[3], (D, N_CLASSES)),
        "head_b": jnp.zeros((N_CLASSES,), jnp.float32),
        # per-block params stacked along a leading DEPTH axis
        "ln1_g": jnp.ones((DEPTH, 1, D), jnp.float32),
        "ln1_b": jnp.zeros((DEPTH, 1, D), jnp.float32),
        "qkv_w": jnp.stack([nrm(keys[4 + 4 * i + 0], (D, 3 * D))
                            for i in range(DEPTH)]),
        "qkv_b": jnp.zeros((DEPTH, 1, 3 * D), jnp.float32),
        "proj_w": jnp.stack([nrm(keys[4 + 4 * i + 1], (D, D))
                             for i in range(DEPTH)]),
        "proj_b": jnp.zeros((DEPTH, 1, D), jnp.float32),
        "ln2_g": jnp.ones((DEPTH, 1, D), jnp.float32),
        "ln2_b": jnp.zeros((DEPTH, 1, D), jnp.float32),
        "fc1_w": jnp.stack([nrm(keys[4 + 4 * i + 2], (D, MLP))
                            for i in range(DEPTH)]),
        "fc1_b": jnp.zeros((DEPTH, 1, MLP), jnp.float32),
        "fc2_w": jnp.stack([nrm(keys[4 + 4 * i + 3], (MLP, D))
                            for i in range(DEPTH)]),
        "fc2_b": jnp.zeros((DEPTH, 1, D), jnp.float32),
    }
    return params


# ------------------------------ forward pass ---------------------------------
def vit_forward(x, params):
    """x: [B, C, H, W] float32 -> logits [B, N_CLASSES]."""
    Bx, Cx, Hx, Wx = x.shape
    gh, gw = Hx // PATCH, Wx // PATCH

    # --- plain-JAX glue: patch extraction + padded token-layout prep ---------
    xp = x.reshape(Bx, Cx, gh, PATCH, gw, PATCH)
    xp = xp.transpose(0, 2, 4, 1, 3, 5).reshape(Bx, gh * gw, Cx * PATCH * PATCH)
    # padded per-token patch pixels: row 0 (cls slot) and rows SEQ..SP-1 are 0
    xp_pad = jnp.zeros((Bx, SP, CPP), jnp.float32)
    xp_pad = xp_pad.at[:, 1:1 + N_PATCH, :].set(xp)
    xp_pad = xp_pad.reshape(Bx * SP, CPP)

    # additive term carrying cls token, positional embedding and patch bias
    cls_pos = jnp.zeros((SP, D), jnp.float32)
    cls_pos = cls_pos.at[0, :].set(params["cls_token"][0, 0]
                                   + params["pos_embed"][0, 0])
    cls_pos = cls_pos.at[1:1 + N_PATCH, :].set(params["pos_embed"][0, 1:]
                                               + params["patch_b"][None, :])
    cls_pos = jnp.tile(cls_pos[None], (Bx, 1, 1)).reshape(Bx * SP, D)

    # attention bias: block-diagonal over batches + key-padding mask
    idx = jnp.arange(Bx * SP)
    row_batch = idx // SP
    key_valid = (idx % SP) < SEQ
    ok = (row_batch[:, None] == row_batch[None, :]) & key_valid[None, :]
    attn_mask = jnp.where(ok, 0.0, NEG_INF).astype(jnp.float32)

    # pad classifier to a full 128-lane output; slice back after the kernel
    head_w_pad = jnp.zeros((D, N_CLASSES_PAD), jnp.float32)
    head_w_pad = head_w_pad.at[:, :N_CLASSES].set(params["head_w"])
    head_b_pad = jnp.zeros((1, N_CLASSES_PAD), jnp.float32)
    head_b_pad = head_b_pad.at[0, :N_CLASSES].set(params["head_b"])

    lnf_g = params["ln_g"].reshape(1, D)
    lnf_b = params["ln_b"].reshape(1, D)

    # --- single fused Pallas kernel for the entire forward pass --------------
    logits_pad = pl.pallas_call(
        _vit_fused_kernel,
        out_shape=jax.ShapeDtypeStruct((Bx, N_CLASSES_PAD), jnp.float32),
        in_specs=[_vmem_spec()] * 20,
        out_specs=_vmem_spec(),
    )(
        xp_pad, params["patch_w"], cls_pos, attn_mask,
        params["ln1_g"], params["ln1_b"], params["qkv_w"], params["qkv_b"],
        params["proj_w"], params["proj_b"], params["ln2_g"], params["ln2_b"],
        params["fc1_w"], params["fc1_b"], params["fc2_w"], params["fc2_b"],
        lnf_g, lnf_b, head_w_pad, head_b_pad,
    )
    return logits_pad[:, :N_CLASSES]


# --------------------------------- main ---------------------------------------
if __name__ == "__main__":
    key_in = jax.random.PRNGKey(0)
    x = jax.random.normal(key_in, (B, C, IMG, IMG), dtype=jnp.float32)

    params = init_params(jax.random.PRNGKey(42))

    logits = jax.jit(vit_forward)(x, params)
    logits = jax.block_until_ready(logits)

    assert logits.shape == (B, N_CLASSES), logits.shape
    assert logits.dtype == jnp.float32
    assert bool(jnp.all(jnp.isfinite(logits)))
    print("KERNEL_OK")
</pallas_src>

<mosaic_0001>
module attributes {stable_mosaic.version = 11 : i64} {
  func.func @_vit_fused_kernel(%arg0: memref<48x48xf32, #tpu.memory_space<vmem>>, %arg1: memref<48x32xf32, #tpu.memory_space<vmem>>, %arg2: memref<48x32xf32, #tpu.memory_space<vmem>>, %arg3: memref<48x48xf32, #tpu.memory_space<vmem>>, %arg4: memref<2x1x32xf32, #tpu.memory_space<vmem>>, %arg5: memref<2x1x32xf32, #tpu.memory_space<vmem>>, %arg6: memref<2x32x96xf32, #tpu.memory_space<vmem>>, %arg7: memref<2x1x96xf32, #tpu.memory_space<vmem>>, %arg8: memref<2x32x32xf32, #tpu.memory_space<vmem>>, %arg9: memref<2x1x32xf32, #tpu.memory_space<vmem>>, %arg10: memref<2x1x32xf32, #tpu.memory_space<vmem>>, %arg11: memref<2x1x32xf32, #tpu.memory_space<vmem>>, %arg12: memref<2x32x128xf32, #tpu.memory_space<vmem>>, %arg13: memref<2x1x128xf32, #tpu.memory_space<vmem>>, %arg14: memref<2x128x32xf32, #tpu.memory_space<vmem>>, %arg15: memref<2x1x32xf32, #tpu.memory_space<vmem>>, %arg16: memref<1x32xf32, #tpu.memory_space<vmem>>, %arg17: memref<1x32xf32, #tpu.memory_space<vmem>>, %arg18: memref<32x128xf32, #tpu.memory_space<vmem>>, %arg19: memref<1x128xf32, #tpu.memory_space<vmem>>, %arg20: memref<2x128xf32, #tpu.memory_space<vmem>>) attributes {dimension_semantics = [], scalar_prefetch = 0 : i64, scratch_operands = 0 : i64, tpu.core_type = #tpu.core_type<tc>} {
    %c0 = arith.constant 0 : index
    %c0_0 = arith.constant 0 : index
    %0 = vector.load %arg0[%c0, %c0_0] : memref<48x48xf32, #tpu.memory_space<vmem>>, vector<48x48xf32>
    %c0_1 = arith.constant 0 : index
    %c0_2 = arith.constant 0 : index
    %1 = vector.load %arg1[%c0_1, %c0_2] : memref<48x32xf32, #tpu.memory_space<vmem>>, vector<48x32xf32>
    %cst = arith.constant dense<0.000000e+00> : vector<48x32xf32>
    %2 = tpu.matmul %0, %1, %cst {dimension_numbers = #tpu.dot_dimension_numbers<[1], [0], [0], [1], [0, 0, 1, 1], [], []>} : vector<48x48xf32>, vector<48x32xf32>, vector<48x32xf32> -> vector<48x32xf32>
    %c0_3 = arith.constant 0 : index
    %c0_4 = arith.constant 0 : index
    %3 = vector.load %arg2[%c0_3, %c0_4] : memref<48x32xf32, #tpu.memory_space<vmem>>, vector<48x32xf32>
    %4 = arith.addf %2, %3 : vector<48x32xf32>
    %c0_5 = arith.constant 0 : index
    %c0_6 = arith.constant 0 : index
    %5 = vector.load %arg3[%c0_5, %c0_6] : memref<48x48xf32, #tpu.memory_space<vmem>>, vector<48x48xf32>
    %c0_7 = arith.constant 0 : index
    %c0_8 = arith.constant 0 : index
    %c0_9 = arith.constant 0 : index
    %6 = vector.load %arg4[%c0_7, %c0_8, %c0_9] : memref<2x1x32xf32, #tpu.memory_space<vmem>>, vector<1x1x32xf32>
    %7 = vector.shape_cast %6 : vector<1x1x32xf32> to vector<1x32xf32>
    %c0_10 = arith.constant 0 : index
    %c0_11 = arith.constant 0 : index
    %c0_12 = arith.constant 0 : index
    %8 = vector.load %arg5[%c0_10, %c0_11, %c0_12] : memref<2x1x32xf32, #tpu.memory_space<vmem>>, vector<1x1x32xf32>
    %9 = vector.shape_cast %8 : vector<1x1x32xf32> to vector<1x32xf32>
    %cst_13 = arith.constant dense<0.000000e+00> : vector<48xf32>
    %10 = vector.multi_reduction <add>, %4, %cst_13 [1] : vector<48x32xf32> to vector<48xf32>
    %11 = vector.shape_cast %10 : vector<48xf32> to vector<48x1xf32>
    %cst_14 = arith.constant 3.200000e+01 : f32
    %12 = vector.broadcast %cst_14 : f32 to vector<48x1xf32>
    %13 = arith.divf %11, %12 : vector<48x1xf32>
    %14 = vector.broadcast %13 : vector<48x1xf32> to vector<48x32xf32>
    %15 = arith.subf %4, %14 : vector<48x32xf32>
    %16 = arith.mulf %15, %15 : vector<48x32xf32>
    %cst_15 = arith.constant dense<0.000000e+00> : vector<48xf32>
    %17 = vector.multi_reduction <add>, %16, %cst_15 [1] : vector<48x32xf32> to vector<48xf32>
    %18 = vector.shape_cast %17 : vector<48xf32> to vector<48x1xf32>
    %cst_16 = arith.constant 3.200000e+01 : f32
    %19 = vector.broadcast %cst_16 : f32 to vector<48x1xf32>
    %20 = arith.divf %18, %19 : vector<48x1xf32>
    %cst_17 = arith.constant 9.99999997E-7 : f32
    %21 = vector.broadcast %cst_17 : f32 to vector<48x1xf32>
    %22 = arith.addf %20, %21 : vector<48x1xf32>
    %23 = math.rsqrt %22 : vector<48x1xf32>
    %24 = vector.broadcast %23 : vector<48x1xf32> to vector<48x32xf32>
    %25 = arith.mulf %15, %24 : vector<48x32xf32>
    %26 = vector.broadcast %7 : vector<1x32xf32> to vector<48x32xf32>
    %27 = arith.mulf %25, %26 : vector<48x32xf32>
    %28 = vector.broadcast %9 : vector<1x32xf32> to vector<48x32xf32>
    %29 = arith.addf %27, %28 : vector<48x32xf32>
    %c0_18 = arith.constant 0 : index
    %c0_19 = arith.constant 0 : index
    %c0_20 = arith.constant 0 : index
    %30 = vector.load %arg6[%c0_18, %c0_19, %c0_20] : memref<2x32x96xf32, #tpu.memory_space<vmem>>, vector<1x32x96xf32>
    %31 = vector.shape_cast %30 : vector<1x32x96xf32> to vector<32x96xf32>
    %cst_21 = arith.constant dense<0.000000e+00> : vector<48x96xf32>
    %32 = tpu.matmul %29, %31, %cst_21 {dimension_numbers = #tpu.dot_dimension_numbers<[1], [0], [0], [1], [0, 0, 1, 1], [], []>} : vector<48x32xf32>, vector<32x96xf32>, vector<48x96xf32> -> vector<48x96xf32>
    %c0_22 = arith.constant 0 : index
    %c0_23 = arith.constant 0 : index
    %c0_24 = arith.constant 0 : index
    %33 = vector.load %arg7[%c0_22, %c0_23, %c0_24] : memref<2x1x96xf32, #tpu.memory_space<vmem>>, vector<1x1x96xf32>
    %34 = vector.shape_cast %33 : vector<1x1x96xf32> to vector<1x96xf32>
    %35 = vector.broadcast %34 : vector<1x96xf32> to vector<48x96xf32>
    %36 = arith.addf %32, %35 : vector<48x96xf32>
    %c0_25 = arith.constant 0 : index
    %c0_26 = arith.constant 0 : index
    %c0_27 = arith.constant 0 : index
    %37 = vector.load %arg8[%c0_25, %c0_26, %c0_27] : memref<2x32x32xf32, #tpu.memory_space<vmem>>, vector<1x32x32xf32>
    %38 = vector.shape_cast %37 : vector<1x32x32xf32> to vector<32x32xf32>
    %cst_28 = arith.constant 0.000000e+00 : f32
    %39 = vector.broadcast %cst_28 : f32 to vector<48x32xf32>
    %40 = vector.extract_strided_slice %36 {offsets = [0, 0], sizes = [48, 8], strides = [1, 1]} : vector<48x96xf32> to vector<48x8xf32>
    %41 = vector.extract_strided_slice %36 {offsets = [0, 32], sizes = [48, 8], strides = [1, 1]} : vector<48x96xf32> to vector<48x8xf32>
    %42 = vector.extract_strided_slice %36 {offsets = [0, 64], sizes = [48, 8], strides = [1, 1]} : vector<48x96xf32> to vector<48x8xf32>
    %cst_29 = arith.constant dense<0.000000e+00> : vector<48x48xf32>
    %43 = tpu.matmul %40, %41, %cst_29 {dimension_numbers = #tpu.dot_dimension_numbers<[1], [1], [0], [0], [0, 0, 1, 0], [], []>} : vector<48x8xf32>, vector<48x8xf32>, vector<48x48xf32> -> vector<48x48xf32>
    %cst_30 = arith.constant 0.353553385 : f32
    %44 = vector.broadcast %cst_30 : f32 to vector<48x48xf32>
    %45 = arith.mulf %43, %44 : vector<48x48xf32>
    %46 = arith.addf %45, %5 : vector<48x48xf32>
    %cst_31 = arith.constant dense<0xFF800000> : vector<48xf32>
    %47 = vector.multi_reduction <maximumf>, %46, %cst_31 [1] : vector<48x48xf32> to vector<48xf32>
    %48 = vector.shape_cast %47 : vector<48xf32> to vector<48x1xf32>
    %49 = vector.broadcast %48 : vector<48x1xf32> to vector<48x48xf32>
    %50 = arith.subf %46, %49 : vector<48x48xf32>
    %51 = math.exp %50 : vector<48x48xf32>
    %cst_32 = arith.constant dense<0.000000e+00> : vector<48xf32>
    %52 = vector.multi_reduction <add>, %51, %cst_32 [1] : vector<48x48xf32> to vector<48xf32>
    %53 = vector.shape_cast %52 : vector<48xf32> to vector<48x1xf32>
    %54 = tpu.reciprocal %53 {approx = true} : vector<48x1xf32> -> vector<48x1xf32>
    %55 = vector.broadcast %54 : vector<48x1xf32> to vector<48x48xf32>
    %56 = arith.mulf %51, %55 : vector<48x48xf32>
    %cst_33 = arith.constant dense<0.000000e+00> : vector<48x8xf32>
    %57 = tpu.matmul %56, %42, %cst_33 {dimension_numbers = #tpu.dot_dimension_numbers<[1], [0], [0], [1], [0, 0, 1, 1], [], []>} : vector<48x48xf32>, vector<48x8xf32>, vector<48x8xf32> -> vector<48x8xf32>
    %58 = vector.extract_strided_slice %38 {offsets = [0, 0], sizes = [8, 32], strides = [1, 1]} : vector<32x32xf32> to vector<8x32xf32>
    %cst_34 = arith.constant dense<0.000000e+00> : vector<48x32xf32>
    %59 = tpu.matmul %57, %58, %cst_34 {dimension_numbers = #tpu.dot_dimension_numbers<[1], [0], [0], [1], [0, 0, 1, 1], [], []>} : vector<48x8xf32>, vector<8x32xf32>, vector<48x32xf32> -> vector<48x32xf32>
    %60 = arith.addf %39, %59 : vector<48x32xf32>
    %61 = vector.extract_strided_slice %36 {offsets = [0, 8], sizes = [48, 8], strides = [1, 1]} : vector<48x96xf32> to vector<48x8xf32>
    %62 = vector.extract_strided_slice %36 {offsets = [0, 40], sizes = [48, 8], strides = [1, 1]} : vector<48x96xf32> to vector<48x8xf32>
    %63 = vector.extract_strided_slice %36 {offsets = [0, 72], sizes = [48, 8], strides = [1, 1]} : vector<48x96xf32> to vector<48x8xf32>
    %cst_35 = arith.constant dense<0.000000e+00> : vector<48x48xf32>
    %64 = tpu.matmul %61, %62, %cst_35 {dimension_numbers = #tpu.dot_dimension_numbers<[1], [1], [0], [0], [0, 0, 1, 0], [], []>} : vector<48x8xf32>, vector<48x8xf32>, vector<48x48xf32> -> vector<48x48xf32>
    %cst_36 = arith.constant 0.353553385 : f32
    %65 = vector.broadcast %cst_36 : f32 to vector<48x48xf32>
    %66 = arith.mulf %64, %65 : vector<48x48xf32>
    %67 = arith.addf %66, %5 : vector<48x48xf32>
    %cst_37 = arith.constant dense<0xFF800000> : vector<48xf32>
    %68 = vector.multi_reduction <maximumf>, %67, %cst_37 [1] : vector<48x48xf32> to vector<48xf32>
    %69 = vector.shape_cast %68 : vector<48xf32> to vector<48x1xf32>
    %70 = vector.broadcast %69 : vector<48x1xf32> to vector<48x48xf32>
    %71 = arith.subf %67, %70 : vector<48x48xf32>
    %72 = math.exp %71 : vector<48x48xf32>
    %cst_38 = arith.constant dense<0.000000e+00> : vector<48xf32>
    %73 = vector.multi_reduction <add>, %72, %cst_38 [1] : vector<48x48xf32> to vector<48xf32>
    %74 = vector.shape_cast %73 : vector<48xf32> to vector<48x1xf32>
    %75 = tpu.reciprocal %74 {approx = true} : vector<48x1xf32> -> vector<48x1xf32>
    %76 = vector.broadcast %75 : vector<48x1xf32> to vector<48x48xf32>
    %77 = arith.mulf %72, %76 : vector<48x48xf32>
    %cst_39 = arith.constant dense<0.000000e+00> : vector<48x8xf32>
    %78 = tpu.matmul %77, %63, %cst_39 {dimension_numbers = #tpu.dot_dimension_numbers<[1], [0], [0], [1], [0, 0, 1, 1], [], []>} : vector<48x48xf32>, vector<48x8xf32>, vector<48x8xf32> -> vector<48x8xf32>
    %79 = vector.extract_strided_slice %38 {offsets = [8, 0], sizes = [8, 32], strides = [1, 1]} : vector<32x32xf32> to vector<8x32xf32>
    %cst_40 = arith.constant dense<0.000000e+00> : vector<48x32xf32>
    %80 = tpu.matmul %78, %79, %cst_40 {dimension_numbers = #tpu.dot_dimension_numbers<[1], [0], [0], [1], [0, 0, 1, 1], [], []>} : vector<48x8xf32>, vector<8x32xf32>, vector<48x32xf32> -> vector<48x32xf32>
    %81 = arith.addf %60, %80 : vector<48x32xf32>
    %82 = vector.extract_strided_slice %36 {offsets = [0, 16], sizes = [48, 8], strides = [1, 1]} : vector<48x96xf32> to vector<48x8xf32>
    %83 = vector.extract_strided_slice %36 {offsets = [0, 48], sizes = [48, 8], strides = [1, 1]} : vector<48x96xf32> to vector<48x8xf32>
    %84 = vector.extract_strided_slice %36 {offsets = [0, 80], sizes = [48, 8], strides = [1, 1]} : vector<48x96xf32> to vector<48x8xf32>
    %cst_41 = arith.constant dense<0.000000e+00> : vector<48x48xf32>
    %85 = tpu.matmul %82, %83, %cst_41 {dimension_numbers = #tpu.dot_dimension_numbers<[1], [1], [0], [0], [0, 0, 1, 0], [], []>} : vector<48x8xf32>, vector<48x8xf32>, vector<48x48xf32> -> vector<48x48xf32>
    %cst_42 = arith.constant 0.353553385 : f32
    %86 = vector.broadcast %cst_42 : f32 to vector<48x48xf32>
    %87 = arith.mulf %85, %86 : vector<48x48xf32>
    %88 = arith.addf %87, %5 : vector<48x48xf32>
    %cst_43 = arith.constant dense<0xFF800000> : vector<48xf32>
    %89 = vector.multi_reduction <maximumf>, %88, %cst_43 [1] : vector<48x48xf32> to vector<48xf32>
    %90 = vector.shape_cast %89 : vector<48xf32> to vector<48x1xf32>
    %91 = vector.broadcast %90 : vector<48x1xf32> to vector<48x48xf32>
    %92 = arith.subf %88, %91 : vector<48x48xf32>
    %93 = math.exp %92 : vector<48x48xf32>
    %cst_44 = arith.constant dense<0.000000e+00> : vector<48xf32>
    %94 = vector.multi_reduction <add>, %93, %cst_44 [1] : vector<48x48xf32> to vector<48xf32>
    %95 = vector.shape_cast %94 : vector<48xf32> to vector<48x1xf32>
    %96 = tpu.reciprocal %95 {approx = true} : vector<48x1xf32> -> vector<48x1xf32>
    %97 = vector.broadcast %96 : vector<48x1xf32> to vector<48x48xf32>
    %98 = arith.mulf %93, %97 : vector<48x48xf32>
    %cst_45 = arith.constant dense<0.000000e+00> : vector<48x8xf32>
    %99 = tpu.matmul %98, %84, %cst_45 {dimension_numbers = #tpu.dot_dimension_numbers<[1], [0], [0], [1], [0, 0, 1, 1], [], []>} : vector<48x48xf32>, vector<48x8xf32>, vector<48x8xf32> -> vector<48x8xf32>
    %100 = vector.extract_strided_slice %38 {offsets = [16, 0], sizes = [8, 32], strides = [1, 1]} : vector<32x32xf32> to vector<8x32xf32>
    %cst_46 = arith.constant dense<0.000000e+00> : vector<48x32xf32>
    %101 = tpu.matmul %99, %100, %cst_46 {dimension_numbers = #tpu.dot_dimension_numbers<[1], [0], [0], [1], [0, 0, 1, 1], [], []>} : vector<48x8xf32>, vector<8x32xf32>, vector<48x32xf32> -> vector<48x32xf32>
    %102 = arith.addf %81, %101 : vector<48x32xf32>
    %103 = vector.extract_strided_slice %36 {offsets = [0, 24], sizes = [48, 8], strides = [1, 1]} : vector<48x96xf32> to vector<48x8xf32>
    %104 = vector.extract_strided_slice %36 {offsets = [0, 56], sizes = [48, 8], strides = [1, 1]} : vector<48x96xf32> to vector<48x8xf32>
    %105 = vector.extract_strided_slice %36 {offsets = [0, 88], sizes = [48, 8], strides = [1, 1]} : vector<48x96xf32> to vector<48x8xf32>
    %cst_47 = arith.constant dense<0.000000e+00> : vector<48x48xf32>
    %106 = tpu.matmul %103, %104, %cst_47 {dimension_numbers = #tpu.dot_dimension_numbers<[1], [1], [0], [0], [0, 0, 1, 0], [], []>} : vector<48x8xf32>, vector<48x8xf32>, vector<48x48xf32> -> vector<48x48xf32>
    %cst_48 = arith.constant 0.353553385 : f32
    %107 = vector.broadcast %cst_48 : f32 to vector<48x48xf32>
    %108 = arith.mulf %106, %107 : vector<48x48xf32>
    %109 = arith.addf %108, %5 : vector<48x48xf32>
    %cst_49 = arith.constant dense<0xFF800000> : vector<48xf32>
    %110 = vector.multi_reduction <maximumf>, %109, %cst_49 [1] : vector<48x48xf32> to vector<48xf32>
    %111 = vector.shape_cast %110 : vector<48xf32> to vector<48x1xf32>
    %112 = vector.broadcast %111 : vector<48x1xf32> to vector<48x48xf32>
    %113 = arith.subf %109, %112 : vector<48x48xf32>
    %114 = math.exp %113 : vector<48x48xf32>
    %cst_50 = arith.constant dense<0.000000e+00> : vector<48xf32>
    %115 = vector.multi_reduction <add>, %114, %cst_50 [1] : vector<48x48xf32> to vector<48xf32>
    %116 = vector.shape_cast %115 : vector<48xf32> to vector<48x1xf32>
    %117 = tpu.reciprocal %116 {approx = true} : vector<48x1xf32> -> vector<48x1xf32>
    %118 = vector.broadcast %117 : vector<48x1xf32> to vector<48x48xf32>
    %119 = arith.mulf %114, %118 : vector<48x48xf32>
    %cst_51 = arith.constant dense<0.000000e+00> : vector<48x8xf32>
    %120 = tpu.matmul %119, %105, %cst_51 {dimension_numbers = #tpu.dot_dimension_numbers<[1], [0], [0], [1], [0, 0, 1, 1], [], []>} : vector<48x48xf32>, vector<48x8xf32>, vector<48x8xf32> -> vector<48x8xf32>
    %121 = vector.extract_strided_slice %38 {offsets = [24, 0], sizes = [8, 32], strides = [1, 1]} : vector<32x32xf32> to vector<8x32xf32>
    %cst_52 = arith.constant dense<0.000000e+00> : vector<48x32xf32>
    %122 = tpu.matmul %120, %121, %cst_52 {dimension_numbers = #tpu.dot_dimension_numbers<[1], [0], [0], [1], [0, 0, 1, 1], [], []>} : vector<48x8xf32>, vector<8x32xf32>, vector<48x32xf32> -> vector<48x32xf32>
    %123 = arith.addf %102, %122 : vector<48x32xf32>
    %c0_53 = arith.constant 0 : index
    %c0_54 = arith.constant 0 : index
    %c0_55 = arith.constant 0 : index
    %124 = vector.load %arg9[%c0_53, %c0_54, %c0_55] : memref<2x1x32xf32, #tpu.memory_space<vmem>>, vector<1x1x32xf32>
    %125 = vector.shape_cast %124 : vector<1x1x32xf32> to vector<1x32xf32>
    %126 = vector.broadcast %125 : vector<1x32xf32> to vector<48x32xf32>
    %127 = arith.addf %123, %126 : vector<48x32xf32>
    %128 = arith.addf %127, %4 : vector<48x32xf32>
    %c0_56 = arith.constant 0 : index
    %c0_57 = arith.constant 0 : index
    %c0_58 = arith.constant 0 : index
    %129 = vector.load %arg10[%c0_56, %c0_57, %c0_58] : memref<2x1x32xf32, #tpu.memory_space<vmem>>, vector<1x1x32xf32>
    %130 = vector.shape_cast %129 : vector<1x1x32xf32> to vector<1x32xf32>
    %c0_59 = arith.constant 0 : index
    %c0_60 = arith.constant 0 : index
    %c0_61 = arith.constant 0 : index
    %131 = vector.load %arg11[%c0_59, %c0_60, %c0_61] : memref<2x1x32xf32, #tpu.memory_space<vmem>>, vector<1x1x32xf32>
    %132 = vector.shape_cast %131 : vector<1x1x32xf32> to vector<1x32xf32>
    %cst_62 = arith.constant dense<0.000000e+00> : vector<48xf32>
    %133 = vector.multi_reduction <add>, %128, %cst_62 [1] : vector<48x32xf32> to vector<48xf32>
    %134 = vector.shape_cast %133 : vector<48xf32> to vector<48x1xf32>
    %cst_63 = arith.constant 3.200000e+01 : f32
    %135 = vector.broadcast %cst_63 : f32 to vector<48x1xf32>
    %136 = arith.divf %134, %135 : vector<48x1xf32>
    %137 = vector.broadcast %136 : vector<48x1xf32> to vector<48x32xf32>
    %138 = arith.subf %128, %137 : vector<48x32xf32>
    %139 = arith.mulf %138, %138 : vector<48x32xf32>
    %cst_64 = arith.constant dense<0.000000e+00> : vector<48xf32>
    %140 = vector.multi_reduction <add>, %139, %cst_64 [1] : vector<48x32xf32> to vector<48xf32>
    %141 = vector.shape_cast %140 : vector<48xf32> to vector<48x1xf32>
    %cst_65 = arith.constant 3.200000e+01 : f32
    %142 = vector.broadcast %cst_65 : f32 to vector<48x1xf32>
    %143 = arith.divf %141, %142 : vector<48x1xf32>
    %cst_66 = arith.constant 9.99999997E-7 : f32
    %144 = vector.broadcast %cst_66 : f32 to vector<48x1xf32>
    %145 = arith.addf %143, %144 : vector<48x1xf32>
    %146 = math.rsqrt %145 : vector<48x1xf32>
    %147 = vector.broadcast %146 : vector<48x1xf32> to vector<48x32xf32>
    %148 = arith.mulf %138, %147 : vector<48x32xf32>
    %149 = vector.broadcast %130 : vector<1x32xf32> to vector<48x32xf32>
    %150 = arith.mulf %148, %149 : vector<48x32xf32>
    %151 = vector.broadcast %132 : vector<1x32xf32> to vector<48x32xf32>
    %152 = arith.addf %150, %151 : vector<48x32xf32>
    %c0_67 = arith.constant 0 : index
    %c0_68 = arith.constant 0 : index
    %c0_69 = arith.constant 0 : index
    %153 = vector.load %arg12[%c0_67, %c0_68, %c0_69] : memref<2x32x128xf32, #tpu.memory_space<vmem>>, vector<1x32x128xf32>
    %154 = vector.shape_cast %153 : vector<1x32x128xf32> to vector<32x128xf32>
    %cst_70 = arith.constant dense<0.000000e+00> : vector<48x128xf32>
    %155 = tpu.matmul %152, %154, %cst_70 {dimension_numbers = #tpu.dot_dimension_numbers<[1], [0], [0], [1], [0, 0, 1, 1], [], []>} : vector<48x32xf32>, vector<32x128xf32>, vector<48x128xf32> -> vector<48x128xf32>
    %c0_71 = arith.constant 0 : index
    %c0_72 = arith.constant 0 : index
    %c0_73 = arith.constant 0 : index
    %156 = vector.load %arg13[%c0_71, %c0_72, %c0_73] : memref<2x1x128xf32, #tpu.memory_space<vmem>>, vector<1x1x128xf32>
    %157 = vector.shape_cast %156 : vector<1x1x128xf32> to vector<1x128xf32>
    %158 = vector.broadcast %157 : vector<1x128xf32> to vector<48x128xf32>
    %159 = arith.addf %155, %158 : vector<48x128xf32>
    %160 = arith.mulf %159, %159 : vector<48x128xf32>
    %161 = arith.mulf %159, %160 : vector<48x128xf32>
    %cst_74 = arith.constant 4.471500e-02 : f32
    %162 = vector.broadcast %cst_74 : f32 to vector<48x128xf32>
    %163 = arith.mulf %162, %161 : vector<48x128xf32>
    %164 = arith.addf %159, %163 : vector<48x128xf32>
    %cst_75 = arith.constant 0.797884583 : f32
    %165 = vector.broadcast %cst_75 : f32 to vector<48x128xf32>
    %166 = arith.mulf %165, %164 : vector<48x128xf32>
    %167 = math.tanh %166 : vector<48x128xf32>
    %cst_76 = arith.constant 1.000000e+00 : f32
    %168 = vector.broadcast %cst_76 : f32 to vector<48x128xf32>
    %169 = arith.addf %168, %167 : vector<48x128xf32>
    %cst_77 = arith.constant 5.000000e-01 : f32
    %170 = vector.broadcast %cst_77 : f32 to vector<48x128xf32>
    %171 = arith.mulf %170, %169 : vector<48x128xf32>
    %172 = arith.mulf %159, %171 : vector<48x128xf32>
    %c0_78 = arith.constant 0 : index
    %c0_79 = arith.constant 0 : index
    %c0_80 = arith.constant 0 : index
    %173 = vector.load %arg14[%c0_78, %c0_79, %c0_80] : memref<2x128x32xf32, #tpu.memory_space<vmem>>, vector<1x128x32xf32>
    %174 = vector.shape_cast %173 : vector<1x128x32xf32> to vector<128x32xf32>
    %cst_81 = arith.constant dense<0.000000e+00> : vector<48x32xf32>
    %175 = tpu.matmul %172, %174, %cst_81 {dimension_numbers = #tpu.dot_dimension_numbers<[1], [0], [0], [1], [0, 0, 1, 1], [], []>} : vector<48x128xf32>, vector<128x32xf32>, vector<48x32xf32> -> vector<48x32xf32>
    %c0_82 = arith.constant 0 : index
    %c0_83 = arith.constant 0 : index
    %c0_84 = arith.constant 0 : index
    %176 = vector.load %arg15[%c0_82, %c0_83, %c0_84] : memref<2x1x32xf32, #tpu.memory_space<vmem>>, vector<1x1x32xf32>
    %177 = vector.shape_cast %176 : vector<1x1x32xf32> to vector<1x32xf32>
    %178 = vector.broadcast %177 : vector<1x32xf32> to vector<48x32xf32>
    %179 = arith.addf %175, %178 : vector<48x32xf32>
    %180 = arith.addf %179, %128 : vector<48x32xf32>
    %c1 = arith.constant 1 : index
    %c0_85 = arith.constant 0 : index
    %c0_86 = arith.constant 0 : index
    %181 = vector.load %arg4[%c1, %c0_85, %c0_86] : memref<2x1x32xf32, #tpu.memory_space<vmem>>, vector<1x1x32xf32>
    %182 = vector.shape_cast %181 : vector<1x1x32xf32> to vector<1x32xf32>
    %c1_87 = arith.constant 1 : index
    %c0_88 = arith.constant 0 : index
    %c0_89 = arith.constant 0 : index
    %183 = vector.load %arg5[%c1_87, %c0_88, %c0_89] : memref<2x1x32xf32, #tpu.memory_space<vmem>>, vector<1x1x32xf32>
    %184 = vector.shape_cast %183 : vector<1x1x32xf32> to vector<1x32xf32>
    %cst_90 = arith.constant dense<0.000000e+00> : vector<48xf32>
    %185 = vector.multi_reduction <add>, %180, %cst_90 [1] : vector<48x32xf32> to vector<48xf32>
    %186 = vector.shape_cast %185 : vector<48xf32> to vector<48x1xf32>
    %cst_91 = arith.constant 3.200000e+01 : f32
    %187 = vector.broadcast %cst_91 : f32 to vector<48x1xf32>
    %188 = arith.divf %186, %187 : vector<48x1xf32>
    %189 = vector.broadcast %188 : vector<48x1xf32> to vector<48x32xf32>
    %190 = arith.subf %180, %189 : vector<48x32xf32>
    %191 = arith.mulf %190, %190 : vector<48x32xf32>
    %cst_92 = arith.constant dense<0.000000e+00> : vector<48xf32>
    %192 = vector.multi_reduction <add>, %191, %cst_92 [1] : vector<48x32xf32> to vector<48xf32>
    %193 = vector.shape_cast %192 : vector<48xf32> to vector<48x1xf32>
    %cst_93 = arith.constant 3.200000e+01 : f32
    %194 = vector.broadcast %cst_93 : f32 to vector<48x1xf32>
    %195 = arith.divf %193, %194 : vector<48x1xf32>
    %cst_94 = arith.constant 9.99999997E-7 : f32
    %196 = vector.broadcast %cst_94 : f32 to vector<48x1xf32>
    %197 = arith.addf %195, %196 : vector<48x1xf32>
    %198 = math.rsqrt %197 : vector<48x1xf32>
    %199 = vector.broadcast %198 : vector<48x1xf32> to vector<48x32xf32>
    %200 = arith.mulf %190, %199 : vector<48x32xf32>
    %201 = vector.broadcast %182 : vector<1x32xf32> to vector<48x32xf32>
    %202 = arith.mulf %200, %201 : vector<48x32xf32>
    %203 = vector.broadcast %184 : vector<1x32xf32> to vector<48x32xf32>
    %204 = arith.addf %202, %203 : vector<48x32xf32>
    %c1_95 = arith.constant 1 : index
    %c0_96 = arith.constant 0 : index
    %c0_97 = arith.constant 0 : index
    %205 = vector.load %arg6[%c1_95, %c0_96, %c0_97] : memref<2x32x96xf32, #tpu.memory_space<vmem>>, vector<1x32x96xf32>
    %206 = vector.shape_cast %205 : vector<1x32x96xf32> to vector<32x96xf32>
    %cst_98 = arith.constant dense<0.000000e+00> : vector<48x96xf32>
    %207 = tpu.matmul %204, %206, %cst_98 {dimension_numbers = #tpu.dot_dimension_numbers<[1], [0], [0], [1], [0, 0, 1, 1], [], []>} : vector<48x32xf32>, vector<32x96xf32>, vector<48x96xf32> -> vector<48x96xf32>
    %c1_99 = arith.constant 1 : index
    %c0_100 = arith.constant 0 : index
    %c0_101 = arith.constant 0 : index
    %208 = vector.load %arg7[%c1_99, %c0_100, %c0_101] : memref<2x1x96xf32, #tpu.memory_space<vmem>>, vector<1x1x96xf32>
    %209 = vector.shape_cast %208 : vector<1x1x96xf32> to vector<1x96xf32>
    %210 = vector.broadcast %209 : vector<1x96xf32> to vector<48x96xf32>
    %211 = arith.addf %207, %210 : vector<48x96xf32>
    %c1_102 = arith.constant 1 : index
    %c0_103 = arith.constant 0 : index
    %c0_104 = arith.constant 0 : index
    %212 = vector.load %arg8[%c1_102, %c0_103, %c0_104] : memref<2x32x32xf32, #tpu.memory_space<vmem>>, vector<1x32x32xf32>
    %213 = vector.shape_cast %212 : vector<1x32x32xf32> to vector<32x32xf32>
    %cst_105 = arith.constant 0.000000e+00 : f32
    %214 = vector.broadcast %cst_105 : f32 to vector<48x32xf32>
    %215 = vector.extract_strided_slice %211 {offsets = [0, 0], sizes = [48, 8], strides = [1, 1]} : vector<48x96xf32> to vector<48x8xf32>
    %216 = vector.extract_strided_slice %211 {offsets = [0, 32], sizes = [48, 8], strides = [1, 1]} : vector<48x96xf32> to vector<48x8xf32>
    %217 = vector.extract_strided_slice %211 {offsets = [0, 64], sizes = [48, 8], strides = [1, 1]} : vector<48x96xf32> to vector<48x8xf32>
    %cst_106 = arith.constant dense<0.000000e+00> : vector<48x48xf32>
    %218 = tpu.matmul %215, %216, %cst_106 {dimension_numbers = #tpu.dot_dimension_numbers<[1], [1], [0], [0], [0, 0, 1, 0], [], []>} : vector<48x8xf32>, vector<48x8xf32>, vector<48x48xf32> -> vector<48x48xf32>
    %cst_107 = arith.constant 0.353553385 : f32
    %219 = vector.broadcast %cst_107 : f32 to vector<48x48xf32>
    %220 = arith.mulf %218, %219 : vector<48x48xf32>
    %221 = arith.addf %220, %5 : vector<48x48xf32>
    %cst_108 = arith.constant dense<0xFF800000> : vector<48xf32>
    %222 = vector.multi_reduction <maximumf>, %221, %cst_108 [1] : vector<48x48xf32> to vector<48xf32>
    %223 = vector.shape_cast %222 : vector<48xf32> to vector<48x1xf32>
    %224 = vector.broadcast %223 : vector<48x1xf32> to vector<48x48xf32>
    %225 = arith.subf %221, %224 : vector<48x48xf32>
    %226 = math.exp %225 : vector<48x48xf32>
    %cst_109 = arith.constant dense<0.000000e+00> : vector<48xf32>
    %227 = vector.multi_reduction <add>, %226, %cst_109 [1] : vector<48x48xf32> to vector<48xf32>
    %228 = vector.shape_cast %227 : vector<48xf32> to vector<48x1xf32>
    %229 = tpu.reciprocal %228 {approx = true} : vector<48x1xf32> -> vector<48x1xf32>
    %230 = vector.broadcast %229 : vector<48x1xf32> to vector<48x48xf32>
    %231 = arith.mulf %226, %230 : vector<48x48xf32>
    %cst_110 = arith.constant dense<0.000000e+00> : vector<48x8xf32>
    %232 = tpu.matmul %231, %217, %cst_110 {dimension_numbers = #tpu.dot_dimension_numbers<[1], [0], [0], [1], [0, 0, 1, 1], [], []>} : vector<48x48xf32>, vector<48x8xf32>, vector<48x8xf32> -> vector<48x8xf32>
    %233 = vector.extract_strided_slice %213 {offsets = [0, 0], sizes = [8, 32], strides = [1, 1]} : vector<32x32xf32> to vector<8x32xf32>
    %cst_111 = arith.constant dense<0.000000e+00> : vector<48x32xf32>
    %234 = tpu.matmul %232, %233, %cst_111 {dimension_numbers = #tpu.dot_dimension_numbers<[1], [0], [0], [1], [0, 0, 1, 1], [], []>} : vector<48x8xf32>, vector<8x32xf32>, vector<48x32xf32> -> vector<48x32xf32>
    %235 = arith.addf %214, %234 : vector<48x32xf32>
    %236 = vector.extract_strided_slice %211 {offsets = [0, 8], sizes = [48, 8], strides = [1, 1]} : vector<48x96xf32> to vector<48x8xf32>
    %237 = vector.extract_strided_slice %211 {offsets = [0, 40], sizes = [48, 8], strides = [1, 1]} : vector<48x96xf32> to vector<48x8xf32>
    %238 = vector.extract_strided_slice %211 {offsets = [0, 72], sizes = [48, 8], strides = [1, 1]} : vector<48x96xf32> to vector<48x8xf32>
    %cst_112 = arith.constant dense<0.000000e+00> : vector<48x48xf32>
    %239 = tpu.matmul %236, %237, %cst_112 {dimension_numbers = #tpu.dot_dimension_numbers<[1], [1], [0], [0], [0, 0, 1, 0], [], []>} : vector<48x8xf32>, vector<48x8xf32>, vector<48x48xf32> -> vector<48x48xf32>
    %cst_113 = arith.constant 0.353553385 : f32
    %240 = vector.broadcast %cst_113 : f32 to vector<48x48xf32>
    %241 = arith.mulf %239, %240 : vector<48x48xf32>
    %242 = arith.addf %241, %5 : vector<48x48xf32>
    %cst_114 = arith.constant dense<0xFF800000> : vector<48xf32>
    %243 = vector.multi_reduction <maximumf>, %242, %cst_114 [1] : vector<48x48xf32> to vector<48xf32>
    %244 = vector.shape_cast %243 : vector<48xf32> to vector<48x1xf32>
    %245 = vector.broadcast %244 : vector<48x1xf32> to vector<48x48xf32>
    %246 = arith.subf %242, %245 : vector<48x48xf32>
    %247 = math.exp %246 : vector<48x48xf32>
    %cst_115 = arith.constant dense<0.000000e+00> : vector<48xf32>
    %248 = vector.multi_reduction <add>, %247, %cst_115 [1] : vector<48x48xf32> to vector<48xf32>
    %249 = vector.shape_cast %248 : vector<48xf32> to vector<48x1xf32>
    %250 = tpu.reciprocal %249 {approx = true} : vector<48x1xf32> -> vector<48x1xf32>
    %251 = vector.broadcast %250 : vector<48x1xf32> to vector<48x48xf32>
    %252 = arith.mulf %247, %251 : vector<48x48xf32>
    %cst_116 = arith.constant dense<0.000000e+00> : vector<48x8xf32>
    %253 = tpu.matmul %252, %238, %cst_116 {dimension_numbers = #tpu.dot_dimension_numbers<[1], [0], [0], [1], [0, 0, 1, 1], [], []>} : vector<48x48xf32>, vector<48x8xf32>, vector<48x8xf32> -> vector<48x8xf32>
    %254 = vector.extract_strided_slice %213 {offsets = [8, 0], sizes = [8, 32], strides = [1, 1]} : vector<32x32xf32> to vector<8x32xf32>
    %cst_117 = arith.constant dense<0.000000e+00> : vector<48x32xf32>
    %255 = tpu.matmul %253, %254, %cst_117 {dimension_numbers = #tpu.dot_dimension_numbers<[1], [0], [0], [1], [0, 0, 1, 1], [], []>} : vector<48x8xf32>, vector<8x32xf32>, vector<48x32xf32> -> vector<48x32xf32>
    %256 = arith.addf %235, %255 : vector<48x32xf32>
    %257 = vector.extract_strided_slice %211 {offsets = [0, 16], sizes = [48, 8], strides = [1, 1]} : vector<48x96xf32> to vector<48x8xf32>
    %258 = vector.extract_strided_slice %211 {offsets = [0, 48], sizes = [48, 8], strides = [1, 1]} : vector<48x96xf32> to vector<48x8xf32>
    %259 = vector.extract_strided_slice %211 {offsets = [0, 80], sizes = [48, 8], strides = [1, 1]} : vector<48x96xf32> to vector<48x8xf32>
    %cst_118 = arith.constant dense<0.000000e+00> : vector<48x48xf32>
    %260 = tpu.matmul %257, %258, %cst_118 {dimension_numbers = #tpu.dot_dimension_numbers<[1], [1], [0], [0], [0, 0, 1, 0], [], []>} : vector<48x8xf32>, vector<48x8xf32>, vector<48x48xf32> -> vector<48x48xf32>
    %cst_119 = arith.constant 0.353553385 : f32
    %261 = vector.broadcast %cst_119 : f32 to vector<48x48xf32>
    %262 = arith.mulf %260, %261 : vector<48x48xf32>
    %263 = arith.addf %262, %5 : vector<48x48xf32>
    %cst_120 = arith.constant dense<0xFF800000> : vector<48xf32>
    %264 = vector.multi_reduction <maximumf>, %263, %cst_120 [1] : vector<48x48xf32> to vector<48xf32>
    %265 = vector.shape_cast %264 : vector<48xf32> to vector<48x1xf32>
    %266 = vector.broadcast %265 : vector<48x1xf32> to vector<48x48xf32>
    %267 = arith.subf %263, %266 : vector<48x48xf32>
    %268 = math.exp %267 : vector<48x48xf32>
    %cst_121 = arith.constant dense<0.000000e+00> : vector<48xf32>
    %269 = vector.multi_reduction <add>, %268, %cst_121 [1] : vector<48x48xf32> to vector<48xf32>
    %270 = vector.shape_cast %269 : vector<48xf32> to vector<48x1xf32>
    %271 = tpu.reciprocal %270 {approx = true} : vector<48x1xf32> -> vector<48x1xf32>
    %272 = vector.broadcast %271 : vector<48x1xf32> to vector<48x48xf32>
    %273 = arith.mulf %268, %272 : vector<48x48xf32>
    %cst_122 = arith.constant dense<0.000000e+00> : vector<48x8xf32>
    %274 = tpu.matmul %273, %259, %cst_122 {dimension_numbers = #tpu.dot_dimension_numbers<[1], [0], [0], [1], [0, 0, 1, 1], [], []>} : vector<48x48xf32>, vector<48x8xf32>, vector<48x8xf32> -> vector<48x8xf32>
    %275 = vector.extract_strided_slice %213 {offsets = [16, 0], sizes = [8, 32], strides = [1, 1]} : vector<32x32xf32> to vector<8x32xf32>
    %cst_123 = arith.constant dense<0.000000e+00> : vector<48x32xf32>
    %276 = tpu.matmul %274, %275, %cst_123 {dimension_numbers = #tpu.dot_dimension_numbers<[1], [0], [0], [1], [0, 0, 1, 1], [], []>} : vector<48x8xf32>, vector<8x32xf32>, vector<48x32xf32> -> vector<48x32xf32>
    %277 = arith.addf %256, %276 : vector<48x32xf32>
    %278 = vector.extract_strided_slice %211 {offsets = [0, 24], sizes = [48, 8], strides = [1, 1]} : vector<48x96xf32> to vector<48x8xf32>
    %279 = vector.extract_strided_slice %211 {offsets = [0, 56], sizes = [48, 8], strides = [1, 1]} : vector<48x96xf32> to vector<48x8xf32>
    %280 = vector.extract_strided_slice %211 {offsets = [0, 88], sizes = [48, 8], strides = [1, 1]} : vector<48x96xf32> to vector<48x8xf32>
    %cst_124 = arith.constant dense<0.000000e+00> : vector<48x48xf32>
    %281 = tpu.matmul %278, %279, %cst_124 {dimension_numbers = #tpu.dot_dimension_numbers<[1], [1], [0], [0], [0, 0, 1, 0], [], []>} : vector<48x8xf32>, vector<48x8xf32>, vector<48x48xf32> -> vector<48x48xf32>
    %cst_125 = arith.constant 0.353553385 : f32
    %282 = vector.broadcast %cst_125 : f32 to vector<48x48xf32>
    %283 = arith.mulf %281, %282 : vector<48x48xf32>
    %284 = arith.addf %283, %5 : vector<48x48xf32>
    %cst_126 = arith.constant dense<0xFF800000> : vector<48xf32>
    %285 = vector.multi_reduction <maximumf>, %284, %cst_126 [1] : vector<48x48xf32> to vector<48xf32>
    %286 = vector.shape_cast %285 : vector<48xf32> to vector<48x1xf32>
    %287 = vector.broadcast %286 : vector<48x1xf32> to vector<48x48xf32>
    %288 = arith.subf %284, %287 : vector<48x48xf32>
    %289 = math.exp %288 : vector<48x48xf32>
    %cst_127 = arith.constant dense<0.000000e+00> : vector<48xf32>
    %290 = vector.multi_reduction <add>, %289, %cst_127 [1] : vector<48x48xf32> to vector<48xf32>
    %291 = vector.shape_cast %290 : vector<48xf32> to vector<48x1xf32>
    %292 = tpu.reciprocal %291 {approx = true} : vector<48x1xf32> -> vector<48x1xf32>
    %293 = vector.broadcast %292 : vector<48x1xf32> to vector<48x48xf32>
    %294 = arith.mulf %289, %293 : vector<48x48xf32>
    %cst_128 = arith.constant dense<0.000000e+00> : vector<48x8xf32>
    %295 = tpu.matmul %294, %280, %cst_128 {dimension_numbers = #tpu.dot_dimension_numbers<[1], [0], [0], [1], [0, 0, 1, 1], [], []>} : vector<48x48xf32>, vector<48x8xf32>, vector<48x8xf32> -> vector<48x8xf32>
    %296 = vector.extract_strided_slice %213 {offsets = [24, 0], sizes = [8, 32], strides = [1, 1]} : vector<32x32xf32> to vector<8x32xf32>
    %cst_129 = arith.constant dense<0.000000e+00> : vector<48x32xf32>
    %297 = tpu.matmul %295, %296, %cst_129 {dimension_numbers = #tpu.dot_dimension_numbers<[1], [0], [0], [1], [0, 0, 1, 1], [], []>} : vector<48x8xf32>, vector<8x32xf32>, vector<48x32xf32> -> vector<48x32xf32>
    %298 = arith.addf %277, %297 : vector<48x32xf32>
    %c1_130 = arith.constant 1 : index
    %c0_131 = arith.constant 0 : index
    %c0_132 = arith.constant 0 : index
    %299 = vector.load %arg9[%c1_130, %c0_131, %c0_132] : memref<2x1x32xf32, #tpu.memory_space<vmem>>, vector<1x1x32xf32>
    %300 = vector.shape_cast %299 : vector<1x1x32xf32> to vector<1x32xf32>
    %301 = vector.broadcast %300 : vector<1x32xf32> to vector<48x32xf32>
    %302 = arith.addf %298, %301 : vector<48x32xf32>
    %303 = arith.addf %302, %180 : vector<48x32xf32>
    %c1_133 = arith.constant 1 : index
    %c0_134 = arith.constant 0 : index
    %c0_135 = arith.constant 0 : index
    %304 = vector.load %arg10[%c1_133, %c0_134, %c0_135] : memref<2x1x32xf32, #tpu.memory_space<vmem>>, vector<1x1x32xf32>
    %305 = vector.shape_cast %304 : vector<1x1x32xf32> to vector<1x32xf32>
    %c1_136 = arith.constant 1 : index
    %c0_137 = arith.constant 0 : index
    %c0_138 = arith.constant 0 : index
    %306 = vector.load %arg11[%c1_136, %c0_137, %c0_138] : memref<2x1x32xf32, #tpu.memory_space<vmem>>, vector<1x1x32xf32>
    %307 = vector.shape_cast %306 : vector<1x1x32xf32> to vector<1x32xf32>
    %cst_139 = arith.constant dense<0.000000e+00> : vector<48xf32>
    %308 = vector.multi_reduction <add>, %303, %cst_139 [1] : vector<48x32xf32> to vector<48xf32>
    %309 = vector.shape_cast %308 : vector<48xf32> to vector<48x1xf32>
    %cst_140 = arith.constant 3.200000e+01 : f32
    %310 = vector.broadcast %cst_140 : f32 to vector<48x1xf32>
    %311 = arith.divf %309, %310 : vector<48x1xf32>
    %312 = vector.broadcast %311 : vector<48x1xf32> to vector<48x32xf32>
    %313 = arith.subf %303, %312 : vector<48x32xf32>
    %314 = arith.mulf %313, %313 : vector<48x32xf32>
    %cst_141 = arith.constant dense<0.000000e+00> : vector<48xf32>
    %315 = vector.multi_reduction <add>, %314, %cst_141 [1] : vector<48x32xf32> to vector<48xf32>
    %316 = vector.shape_cast %315 : vector<48xf32> to vector<48x1xf32>
    %cst_142 = arith.constant 3.200000e+01 : f32
    %317 = vector.broadcast %cst_142 : f32 to vector<48x1xf32>
    %318 = arith.divf %316, %317 : vector<48x1xf32>
    %cst_143 = arith.constant 9.99999997E-7 : f32
    %319 = vector.broadcast %cst_143 : f32 to vector<48x1xf32>
    %320 = arith.addf %318, %319 : vector<48x1xf32>
    %321 = math.rsqrt %320 : vector<48x1xf32>
    %322 = vector.broadcast %321 : vector<48x1xf32> to vector<48x32xf32>
    %323 = arith.mulf %313, %322 : vector<48x32xf32>
    %324 = vector.broadcast %305 : vector<1x32xf32> to vector<48x32xf32>
    %325 = arith.mulf %323, %324 : vector<48x32xf32>
    %326 = vector.broadcast %307 : vector<1x32xf32> to vector<48x32xf32>
    %327 = arith.addf %325, %326 : vector<48x32xf32>
    %c1_144 = arith.constant 1 : index
    %c0_145 = arith.constant 0 : index
    %c0_146 = arith.constant 0 : index
    %328 = vector.load %arg12[%c1_144, %c0_145, %c0_146] : memref<2x32x128xf32, #tpu.memory_space<vmem>>, vector<1x32x128xf32>
    %329 = vector.shape_cast %328 : vector<1x32x128xf32> to vector<32x128xf32>
    %cst_147 = arith.constant dense<0.000000e+00> : vector<48x128xf32>
    %330 = tpu.matmul %327, %329, %cst_147 {dimension_numbers = #tpu.dot_dimension_numbers<[1], [0], [0], [1], [0, 0, 1, 1], [], []>} : vector<48x32xf32>, vector<32x128xf32>, vector<48x128xf32> -> vector<48x128xf32>
    %c1_148 = arith.constant 1 : index
    %c0_149 = arith.constant 0 : index
    %c0_150 = arith.constant 0 : index
    %331 = vector.load %arg13[%c1_148, %c0_149, %c0_150] : memref<2x1x128xf32, #tpu.memory_space<vmem>>, vector<1x1x128xf32>
    %332 = vector.shape_cast %331 : vector<1x1x128xf32> to vector<1x128xf32>
    %333 = vector.broadcast %332 : vector<1x128xf32> to vector<48x128xf32>
    %334 = arith.addf %330, %333 : vector<48x128xf32>
    %335 = arith.mulf %334, %334 : vector<48x128xf32>
    %336 = arith.mulf %334, %335 : vector<48x128xf32>
    %cst_151 = arith.constant 4.471500e-02 : f32
    %337 = vector.broadcast %cst_151 : f32 to vector<48x128xf32>
    %338 = arith.mulf %337, %336 : vector<48x128xf32>
    %339 = arith.addf %334, %338 : vector<48x128xf32>
    %cst_152 = arith.constant 0.797884583 : f32
    %340 = vector.broadcast %cst_152 : f32 to vector<48x128xf32>
    %341 = arith.mulf %340, %339 : vector<48x128xf32>
    %342 = math.tanh %341 : vector<48x128xf32>
    %cst_153 = arith.constant 1.000000e+00 : f32
    %343 = vector.broadcast %cst_153 : f32 to vector<48x128xf32>
    %344 = arith.addf %343, %342 : vector<48x128xf32>
    %cst_154 = arith.constant 5.000000e-01 : f32
    %345 = vector.broadcast %cst_154 : f32 to vector<48x128xf32>
    %346 = arith.mulf %345, %344 : vector<48x128xf32>
    %347 = arith.mulf %334, %346 : vector<48x128xf32>
    %c1_155 = arith.constant 1 : index
    %c0_156 = arith.constant 0 : index
    %c0_157 = arith.constant 0 : index
    %348 = vector.load %arg14[%c1_155, %c0_156, %c0_157] : memref<2x128x32xf32, #tpu.memory_space<vmem>>, vector<1x128x32xf32>
    %349 = vector.shape_cast %348 : vector<1x128x32xf32> to vector<128x32xf32>
    %cst_158 = arith.constant dense<0.000000e+00> : vector<48x32xf32>
    %350 = tpu.matmul %347, %349, %cst_158 {dimension_numbers = #tpu.dot_dimension_numbers<[1], [0], [0], [1], [0, 0, 1, 1], [], []>} : vector<48x128xf32>, vector<128x32xf32>, vector<48x32xf32> -> vector<48x32xf32>
    %c1_159 = arith.constant 1 : index
    %c0_160 = arith.constant 0 : index
    %c0_161 = arith.constant 0 : index
    %351 = vector.load %arg15[%c1_159, %c0_160, %c0_161] : memref<2x1x32xf32, #tpu.memory_space<vmem>>, vector<1x1x32xf32>
    %352 = vector.shape_cast %351 : vector<1x1x32xf32> to vector<1x32xf32>
    %353 = vector.broadcast %352 : vector<1x32xf32> to vector<48x32xf32>
    %354 = arith.addf %350, %353 : vector<48x32xf32>
    %355 = arith.addf %354, %303 : vector<48x32xf32>
    %c0_162 = arith.constant 0 : index
    %c0_163 = arith.constant 0 : index
    %356 = vector.load %arg16[%c0_162, %c0_163] : memref<1x32xf32, #tpu.memory_space<vmem>>, vector<1x32xf32>
    %c0_164 = arith.constant 0 : index
    %c0_165 = arith.constant 0 : index
    %357 = vector.load %arg17[%c0_164, %c0_165] : memref<1x32xf32, #tpu.memory_space<vmem>>, vector<1x32xf32>
    %c0_166 = arith.constant 0 : index
    %c0_167 = arith.constant 0 : index
    %358 = vector.load %arg18[%c0_166, %c0_167] : memref<32x128xf32, #tpu.memory_space<vmem>>, vector<32x128xf32>
    %c0_168 = arith.constant 0 : index
    %c0_169 = arith.constant 0 : index
    %359 = vector.load %arg19[%c0_168, %c0_169] : memref<1x128xf32, #tpu.memory_space<vmem>>, vector<1x128xf32>
    %360 = vector.extract_strided_slice %355 {offsets = [0, 0], sizes = [1, 32], strides = [1, 1]} : vector<48x32xf32> to vector<1x32xf32>
    %cst_170 = arith.constant dense<0.000000e+00> : vector<1xf32>
    %361 = vector.multi_reduction <add>, %360, %cst_170 [1] : vector<1x32xf32> to vector<1xf32>
    %362 = vector.shape_cast %361 : vector<1xf32> to vector<1x1xf32>
    %cst_171 = arith.constant 3.200000e+01 : f32
    %363 = vector.broadcast %cst_171 : f32 to vector<1x1xf32>
    %364 = arith.divf %362, %363 : vector<1x1xf32>
    %365 = vector.broadcast %364 : vector<1x1xf32> to vector<1x32xf32>
    %366 = arith.subf %360, %365 : vector<1x32xf32>
    %367 = arith.mulf %366, %366 : vector<1x32xf32>
    %cst_172 = arith.constant dense<0.000000e+00> : vector<1xf32>
    %368 = vector.multi_reduction <add>, %367, %cst_172 [1] : vector<1x32xf32> to vector<1xf32>
    %369 = vector.shape_cast %368 : vector<1xf32> to vector<1x1xf32>
    %cst_173 = arith.constant 3.200000e+01 : f32
    %370 = vector.broadcast %cst_173 : f32 to vector<1x1xf32>
    %371 = arith.divf %369, %370 : vector<1x1xf32>
    %cst_174 = arith.constant 9.99999997E-7 : f32
    %372 = vector.broadcast %cst_174 : f32 to vector<1x1xf32>
    %373 = arith.addf %371, %372 : vector<1x1xf32>
    %374 = math.rsqrt %373 : vector<1x1xf32>
    %375 = vector.broadcast %374 : vector<1x1xf32> to vector<1x32xf32>
    %376 = arith.mulf %366, %375 : vector<1x32xf32>
    %377 = arith.mulf %376, %356 : vector<1x32xf32>
    %378 = arith.addf %377, %357 : vector<1x32xf32>
    %cst_175 = arith.constant dense<0.000000e+00> : vector<1x128xf32>
    %379 = tpu.matmul %378, %358, %cst_175 {dimension_numbers = #tpu.dot_dimension_numbers<[1], [0], [0], [1], [0, 0, 1, 1], [], []>} : vector<1x32xf32>, vector<32x128xf32>, vector<1x128xf32> -> vector<1x128xf32>
    %380 = arith.addf %379, %359 : vector<1x128xf32>
    %c0_176 = arith.constant 0 : index
    %c0_177 = arith.constant 0 : index
    %381 = vector.load %arg20[%c0_176, %c0_177] : memref<2x128xf32, #tpu.memory_space<vmem>>, vector<1x128xf32>
    tpu.vector_store %arg20[%c0_176, %c0_177], %380 {strides = array<i32>} : memref<2x128xf32, #tpu.memory_space<vmem>>, vector<1x128xf32>,
    %382 = vector.extract_strided_slice %355 {offsets = [24, 0], sizes = [1, 32], strides = [1, 1]} : vector<48x32xf32> to vector<1x32xf32>
    %cst_178 = arith.constant dense<0.000000e+00> : vector<1xf32>
    %383 = vector.multi_reduction <add>, %382, %cst_178 [1] : vector<1x32xf32> to vector<1xf32>
    %384 = vector.shape_cast %383 : vector<1xf32> to vector<1x1xf32>
    %cst_179 = arith.constant 3.200000e+01 : f32
    %385 = vector.broadcast %cst_179 : f32 to vector<1x1xf32>
    %386 = arith.divf %384, %385 : vector<1x1xf32>
    %387 = vector.broadcast %386 : vector<1x1xf32> to vector<1x32xf32>
    %388 = arith.subf %382, %387 : vector<1x32xf32>
    %389 = arith.mulf %388, %388 : vector<1x32xf32>
    %cst_180 = arith.constant dense<0.000000e+00> : vector<1xf32>
    %390 = vector.multi_reduction <add>, %389, %cst_180 [1] : vector<1x32xf32> to vector<1xf32>
    %391 = vector.shape_cast %390 : vector<1xf32> to vector<1x1xf32>
    %cst_181 = arith.constant 3.200000e+01 : f32
    %392 = vector.broadcast %cst_181 : f32 to vector<1x1xf32>
    %393 = arith.divf %391, %392 : vector<1x1xf32>
    %cst_182 = arith.constant 9.99999997E-7 : f32
    %394 = vector.broadcast %cst_182 : f32 to vector<1x1xf32>
    %395 = arith.addf %393, %394 : vector<1x1xf32>
    %396 = math.rsqrt %395 : vector<1x1xf32>
    %397 = vector.broadcast %396 : vector<1x1xf32> to vector<1x32xf32>
    %398 = arith.mulf %388, %397 : vector<1x32xf32>
    %399 = arith.mulf %398, %356 : vector<1x32xf32>
    %400 = arith.addf %399, %357 : vector<1x32xf32>
    %cst_183 = arith.constant dense<0.000000e+00> : vector<1x128xf32>
    %401 = tpu.matmul %400, %358, %cst_183 {dimension_numbers = #tpu.dot_dimension_numbers<[1], [0], [0], [1], [0, 0, 1, 1], [], []>} : vector<1x32xf32>, vector<32x128xf32>, vector<1x128xf32> -> vector<1x128xf32>
    %402 = arith.addf %401, %359 : vector<1x128xf32>
    %c1_184 = arith.constant 1 : index
    %c0_185 = arith.constant 0 : index
    %403 = vector.load %arg20[%c1_184, %c0_185] : memref<2x128xf32, #tpu.memory_space<vmem>>, vector<1x128xf32>
    tpu.vector_store %arg20[%c1_184, %c0_185], %402 {strides = array<i32>} : memref<2x128xf32, #tpu.memory_space<vmem>>, vector<1x128xf32>,
    return
  }
}

</mosaic_0001>

<llo_original>
// kernel: vit_forward.1
$region0: #{vit_forward.1}
  #allocation0 [shape = 'u32[]', space=smem, size = 0x4, offset = 0x4, fixed_abs, tag = 'smem constant byte address 0x4 - core index']
  #allocation1 [shape = 'u32[72,128]{1,0:T(1,128)}', space=vmem, size = 0x9000, scoped, tag = 'internal scratch']
  %s0 = inlined_call_operand.vmem [shape: f32[48,48], index: 0, kind: input, shape index: {}]
  %s1 = inlined_call_operand.vmem [shape: f32[48,32], index: 1, kind: input, shape index: {}]
  %s2 = inlined_call_operand.vmem [shape: f32[48,32], index: 2, kind: input, shape index: {}]
  %s3 = inlined_call_operand.vmem [shape: f32[48,48], index: 3, kind: input, shape index: {}]
  %s4 = inlined_call_operand.vmem [shape: f32[2,1,32], index: 4, kind: input, shape index: {}]
  %s5 = inlined_call_operand.vmem [shape: f32[2,1,32], index: 5, kind: input, shape index: {}]
  %s6 = inlined_call_operand.vmem [shape: f32[2,32,96], index: 6, kind: input, shape index: {}]
  %s7 = inlined_call_operand.vmem [shape: f32[2,1,96], index: 7, kind: input, shape index: {}]
  %s8 = inlined_call_operand.vmem [shape: f32[2,32,32], index: 8, kind: input, shape index: {}]
  %s9 = inlined_call_operand.vmem [shape: f32[2,1,32], index: 9, kind: input, shape index: {}]
  %s10 = inlined_call_operand.vmem [shape: f32[2,1,32], index: 10, kind: input, shape index: {}]
  %s11 = inlined_call_operand.vmem [shape: f32[2,1,32], index: 11, kind: input, shape index: {}]
  %s12 = inlined_call_operand.vmem [shape: f32[2,32,128], index: 12, kind: input, shape index: {}]
  %s13 = inlined_call_operand.vmem [shape: f32[2,1,128], index: 13, kind: input, shape index: {}]
  %s14 = inlined_call_operand.vmem [shape: f32[2,128,32], index: 14, kind: input, shape index: {}]
  %s15 = inlined_call_operand.vmem [shape: f32[2,1,32], index: 15, kind: input, shape index: {}]
  %s16 = inlined_call_operand.vmem [shape: f32[1,32], index: 16, kind: input, shape index: {}]
  %s17 = inlined_call_operand.vmem [shape: f32[1,32], index: 17, kind: input, shape index: {}]
  %s18 = inlined_call_operand.vmem [shape: f32[32,128], index: 18, kind: input, shape index: {}]
  %s19 = inlined_call_operand.vmem [shape: f32[1,128], index: 19, kind: input, shape index: {}]
  %s20 = inlined_call_operand.hbm [shape: f32[2,128], index: 20, kind: output, shape index: {}]
  %s21 = sld [smem:[#allocation0]]
  $region90: #{vit_forward.1} parent=0
    _
  %s23 = ssub.s32 1, %s21
  %s24 = scalar_select 0, %s23, %s21
  $region1: #{vit_forward.1} parent=0
    #allocation2 [shape = 'u8[1024]{0}', space=vmem, size = 0x400, scoped, tag = 'output window, operand 0, single buffered']
    #allocation3 [shape = 's32[1]{0}', space=sflag, size = 0x4, scoped, tag = 'scoped memory for vit_forward.1']
    %25 = vsyncpa [#allocation3], 0
    // Predicated region
    $region2: #{vit_forward.1} parent=1 // pred_check
      _
    $region3: #{vit_forward.1} parent=1 // pred_check_branch
      %27 = sbr.rel (0) target = $region5
    $region4: #{vit_forward.1} parent=1 // pred_region
      _
    $region5: #{vit_forward.1} parent=1 // pred_fallthru
      _
    // Predicated region
    $region6: #{vit_forward.1} parent=1 // pred_check
      _
    $region7: #{vit_forward.1} parent=1 // pred_check_branch
      %29 = sbr.rel (0) target = $region9
    $region8: #{vit_forward.1} parent=1 // pred_region
      _
    $region9: #{vit_forward.1} parent=1 // pred_fallthru
      _
    // Predicated region
    $region10: #{vit_forward.1} parent=1 // pred_check
      _
    $region11: #{vit_forward.1} parent=1 // pred_check_branch
      %31 = sbr.rel (0) target = $region13
    $region12: #{vit_forward.1} parent=1 // pred_region
      _
    $region13: #{vit_forward.1} parent=1 // pred_fallthru
      _
    // Predicated region
    $region14: #{vit_forward.1} parent=1 // pred_check
      _
    $region15: #{vit_forward.1} parent=1 // pred_check_branch
      %33 = sbr.rel (0) target = $region17
    $region16: #{vit_forward.1} parent=1 // pred_region
      _
    $region17: #{vit_forward.1} parent=1 // pred_fallthru
      _
    // Predicated region
    $region18: #{vit_forward.1} parent=1 // pred_check
      _
    $region19: #{vit_forward.1} parent=1 // pred_check_branch
      %35 = sbr.rel (0) target = $region21
    $region20: #{vit_forward.1} parent=1 // pred_region
      _
    $region21: #{vit_forward.1} parent=1 // pred_fallthru
      _
    // Predicated region
    $region22: #{vit_forward.1} parent=1 // pred_check
      _
    $region23: #{vit_forward.1} parent=1 // pred_check_branch
      %37 = sbr.rel (0) target = $region25
    $region24: #{vit_forward.1} parent=1 // pred_region
      _
    $region25: #{vit_forward.1} parent=1 // pred_fallthru
      _
    // Predicated region
    $region26: #{vit_forward.1} parent=1 // pred_check
      _
    $region27: #{vit_forward.1} parent=1 // pred_check_branch
      %39 = sbr.rel (0) target = $region29
    $region28: #{vit_forward.1} parent=1 // pred_region
      _
    $region29: #{vit_forward.1} parent=1 // pred_fallthru
      _
    // Predicated region
    $region30: #{vit_forward.1} parent=1 // pred_check
      _
    $region31: #{vit_forward.1} parent=1 // pred_check_branch
      %41 = sbr.rel (0) target = $region33
    $region32: #{vit_forward.1} parent=1 // pred_region
      _
    $region33: #{vit_forward.1} parent=1 // pred_fallthru
      _
    // Predicated region
    $region34: #{vit_forward.1} parent=1 // pred_check
      _
    $region35: #{vit_forward.1} parent=1 // pred_check_branch
      %43 = sbr.rel (0) target = $region37
    $region36: #{vit_forward.1} parent=1 // pred_region
      _
    $region37: #{vit_forward.1} parent=1 // pred_fallthru
      _
    // Predicated region
    $region38: #{vit_forward.1} parent=1 // pred_check
      _
    $region39: #{vit_forward.1} parent=1 // pred_check_branch
      %45 = sbr.rel (0) target = $region41
    $region40: #{vit_forward.1} parent=1 // pred_region
      _
    $region41: #{vit_forward.1} parent=1 // pred_fallthru
      _
    // Predicated region
    $region42: #{vit_forward.1} parent=1 // pred_check
      _
    $region43: #{vit_forward.1} parent=1 // pred_check_branch
      %47 = sbr.rel (0) target = $region45
    $region44: #{vit_forward.1} parent=1 // pred_region
      _
    $region45: #{vit_forward.1} parent=1 // pred_fallthru
      _
    // Predicated region
    $region46: #{vit_forward.1} parent=1 // pred_check
      _
    $region47: #{vit_forward.1} parent=1 // pred_check_branch
      %49 = sbr.rel (0) target = $region49
    $region48: #{vit_forward.1} parent=1 // pred_region
      _
    $region49: #{vit_forward.1} parent=1 // pred_fallthru
      _
    // Predicated region
    $region50: #{vit_forward.1} parent=1 // pred_check
      _
    $region51: #{vit_forward.1} parent=1 // pred_check_branch
      %51 = sbr.rel (0) target = $region53
    $region52: #{vit_forward.1} parent=1 // pred_region
      _
    $region53: #{vit_forward.1} parent=1 // pred_fallthru
      _
    // Predicated region
    $region54: #{vit_forward.1} parent=1 // pred_check
      _
    $region55: #{vit_forward.1} parent=1 // pred_check_branch
      %53 = sbr.rel (0) target = $region57
    $region56: #{vit_forward.1} parent=1 // pred_region
      _
    $region57: #{vit_forward.1} parent=1 // pred_fallthru
      _
    // Predicated region
    $region58: #{vit_forward.1} parent=1 // pred_check
      _
    $region59: #{vit_forward.1} parent=1 // pred_check_branch
      %55 = sbr.rel (0) target = $region61
    $region60: #{vit_forward.1} parent=1 // pred_region
      _
    $region61: #{vit_forward.1} parent=1 // pred_fallthru
      _
    // Predicated region
    $region62: #{vit_forward.1} parent=1 // pred_check
      _
    $region63: #{vit_forward.1} parent=1 // pred_check_branch
      %57 = sbr.rel (0) target = $region65
    $region64: #{vit_forward.1} parent=1 // pred_region
      _
    $region65: #{vit_forward.1} parent=1 // pred_fallthru
      _
    // Predicated region
    $region66: #{vit_forward.1} parent=1 // pred_check
      _
    $region67: #{vit_forward.1} parent=1 // pred_check_branch
      %59 = sbr.rel (0) target = $region69
    $region68: #{vit_forward.1} parent=1 // pred_region
      _
    $region69: #{vit_forward.1} parent=1 // pred_fallthru
      _
    // Predicated region
    $region70: #{vit_forward.1} parent=1 // pred_check
      _
    $region71: #{vit_forward.1} parent=1 // pred_check_branch
      %61 = sbr.rel (0) target = $region73
    $region72: #{vit_forward.1} parent=1 // pred_region
      _
    $region73: #{vit_forward.1} parent=1 // pred_fallthru
      _
    // Predicated region
    $region74: #{vit_forward.1} parent=1 // pred_check
      _
    $region75: #{vit_forward.1} parent=1 // pred_check_branch
      %63 = sbr.rel (0) target = $region77
    $region76: #{vit_forward.1} parent=1 // pred_region
      _
    $region77: #{vit_forward.1} parent=1 // pred_fallthru
      _
    // Predicated region
    $region78: #{vit_forward.1} parent=1 // pred_check
      _
    $region79: #{vit_forward.1} parent=1 // pred_check_branch
      %65 = sbr.rel (0) target = $region81
    $region80: #{vit_forward.1} parent=1 // pred_region
      _
    $region81: #{vit_forward.1} parent=1 // pred_fallthru
      _
    %v66 = vld [vmem:[%s0] sm:$0xff]
    %v67 = vld [vmem:[%s0 + $0x8] sm:$0xff]
    %v68 = vld [vmem:[%s0 + $0x10] sm:$0xff]
    %v69 = vld [vmem:[%s0 + $0x18] sm:$0xff]
    %v70 = vld [vmem:[%s0 + $0x20] sm:$0xff]
    %v71 = vld [vmem:[%s0 + $0x28] sm:$0xff]
    %v72 = vld [vmem:[%s1] sm:$0xff]
    %v73 = vld [vmem:[%s1 + $0x8] sm:$0xff]
    %v74 = vld [vmem:[%s1 + $0x10] sm:$0xff]
    %v75 = vld [vmem:[%s1 + $0x18] sm:$0xff]
    %v76 = vld [vmem:[%s1 + $0x20] sm:$0xff]
    %v77 = vld [vmem:[%s1 + $0x28] sm:$0xff]
    %v78 = vld [vmem:[%s2] sm:$0xff]
    %v79 = vld [vmem:[%s2 + $0x8] sm:$0xff]
    %v80 = vld [vmem:[%s2 + $0x10] sm:$0xff]
    %v81 = vld [vmem:[%s2 + $0x18] sm:$0xff]
    %v82 = vld [vmem:[%s2 + $0x20] sm:$0xff]
    %v83 = vld [vmem:[%s2 + $0x28] sm:$0xff]
    %vm84 = vcmask 392192
    %v86 = vsel %vm84, %v66, 0
    %v89 = vsel %vm84, %v67, 0
    %v92 = vsel %vm84, %v68, 0
    %v95 = vsel %vm84, %v69, 0
    %v98 = vsel %vm84, %v70, 0
    %v101 = vsel %vm84, %v71, 0
    %103 = vmatpush.msra.mxu0 0.0
    %104 = vmatpush.msra.mxu0 0.0
    %105 = vmatpush.msra.mxu0 0.0
    %106 = vmatpush.msra.mxu0 0.0
    %107 = vmatpush.msra.mxu0 0.0
    %108 = vmatpush.msra.mxu0 0.0
    %109 = vmatpush.msra.mxu0 0.0
    %110 = vmatpush.msra.mxu0 0.0
    %111 = vmatpush.msra.mxu0 0.0
    %112 = vmatpush.msra.mxu0 0.0
    %113 = vmatpush.msra.mxu0 %v77
    %114 = vmatpush.msra.mxu0 %v76
    %115 = vmatpush.msra.mxu0 %v75
    %116 = vmatpush.msra.mxu0 %v74
    %117 = vmatpush.msra.mxu0 %v73
    %118 = vmatpush.msra.mxu0 %v72
    %119 = vmatmul.f32.gmra.mxu0 %v86
    %v120 = vpop.f32.mrf.mxu0
    %v121 = vadd.f32 %v78, %v120
    %122 = vmatmul.f32.gmra.mxu0 %v89
    %v123 = vpop.f32.mrf.mxu0
    %v124 = vadd.f32 %v79, %v123
    %125 = vmatmul.f32.gmra.mxu0 %v92
    %v126 = vpop.f32.mrf.mxu0
    %v127 = vadd.f32 %v80, %v126
    %128 = vmatmul.f32.gmra.mxu0 %v95
    %v129 = vpop.f32.mrf.mxu0
    %v130 = vadd.f32 %v81, %v129
    %131 = vmatmul.f32.gmra.mxu0 %v98
    %v132 = vpop.f32.mrf.mxu0
    %v133 = vadd.f32 %v82, %v132
    %134 = vmatmul.f32.gmra.mxu0 %v101
    %v135 = vpop.f32.mrf.mxu0
    %v136 = vadd.f32 %v83, %v135
    %137 = vdwg.mxu0
    %v138 = vld [vmem:[%s3] sm:$0xff]
    %v139 = vld [vmem:[%s3 + $0x8] sm:$0xff]
    %v140 = vld [vmem:[%s3 + $0x10] sm:$0xff]
    %v141 = vld [vmem:[%s3 + $0x18] sm:$0xff]
    %v142 = vld [vmem:[%s3 + $0x20] sm:$0xff]
    %v143 = vld [vmem:[%s3 + $0x28] sm:$0xff]
    %v144 = vld [vmem:[%s4] sm:$0x1]
    %v145 = vld [vmem:[%s5] sm:$0x1]
    %vm146 = vcmask 261120
    %v147 = vsel %vm146, %v121, 0.0
    %148 = vadd.xlane.f32.xlu0 %v147
    %v149 = vpop.xlane.xlu0 %148
    %v150 = vsel %vm146, %v124, 0.0
    %151 = vadd.xlane.f32.xlu0 %v150
    %v152 = vpop.xlane.xlu0 %151
    %v153 = vsel %vm146, %v127, 0.0
    %154 = vadd.xlane.f32.xlu0 %v153
    %v155 = vpop.xlane.xlu0 %154
    %v156 = vsel %vm146, %v130, 0.0
    %157 = vadd.xlane.f32.xlu0 %v156
    %v158 = vpop.xlane.xlu0 %157
    %v159 = vsel %vm146, %v133, 0.0
    %160 = vadd.xlane.f32.xlu0 %v159
    %v161 = vpop.xlane.xlu0 %160
    %v162 = vsel %vm146, %v136, 0.0
    %163 = vadd.xlane.f32.xlu0 %v162
    %v164 = vpop.xlane.xlu0 %163
    %v165 = vrcp.pop 32.0
    %v166 = vmul.f32 32.0, %v165
    %v167 = vsub.f32 1.0, %v166
    %v168 = vmul.f32 %v165, %v167
    %v169 = vadd.f32 %v165, %v168
    %vm170 = vweird.f32 %v165
    %v171 = vsel %vm170, %v165, %v169
    %v172 = vmul.f32 %v149, %v171
    %v173 = vmul.f32 %v152, %v171
    %v174 = vmul.f32 %v155, %v171
    %v175 = vmul.f32 %v158, %v171
    %v176 = vmul.f32 %v161, %v171
    %v177 = vmul.f32 %v164, %v171
    %v178 = vsub.f32 %v121, %v172
    %v179 = vsub.f32 %v124, %v173
    %v180 = vsub.f32 %v127, %v174
    %v181 = vsub.f32 %v130, %v175
    %v182 = vsub.f32 %v133, %v176
    %v183 = vsub.f32 %v136, %v177
    %v184 = vmul.f32 %v178, %v178
    %v185 = vmul.f32 %v179, %v179
    %v186 = vmul.f32 %v180, %v180
    %v187 = vmul.f32 %v181, %v181
    %v188 = vmul.f32 %v182, %v182
    %v189 = vmul.f32 %v183, %v183
    %v190 = vsel %vm146, %v184, 0.0
    %191 = vadd.xlane.f32.xlu0 %v190
    %v192 = vpop.xlane.xlu0 %191
    %v193 = vsel %vm146, %v185, 0.0
    %194 = vadd.xlane.f32.xlu0 %v193
    %v195 = vpop.xlane.xlu0 %194
    %v196 = vsel %vm146, %v186, 0.0
    %197 = vadd.xlane.f32.xlu0 %v196
    %v198 = vpop.xlane.xlu0 %197
    %v199 = vsel %vm146, %v187, 0.0
    %200 = vadd.xlane.f32.xlu0 %v199
    %v201 = vpop.xlane.xlu0 %200
    %v202 = vsel %vm146, %v188, 0.0
    %203 = vadd.xlane.f32.xlu0 %v202
    %v204 = vpop.xlane.xlu0 %203
    %v205 = vsel %vm146, %v189, 0.0
    %206 = vadd.xlane.f32.xlu0 %v205
    %v207 = vpop.xlane.xlu0 %206
    %v208 = vmul.f32 %v192, %v171
    %v209 = vmul.f32 %v195, %v171
    %v210 = vmul.f32 %v198, %v171
    %v211 = vmul.f32 %v201, %v171
    %v212 = vmul.f32 %v204, %v171
    %v213 = vmul.f32 %v207, %v171
    %v214 = vadd.f32 %v208, 1e-06
    %v215 = vadd.f32 %v209, 1e-06
    %v216 = vadd.f32 %v210, 1e-06
    %v217 = vadd.f32 %v211, 1e-06
    %v218 = vadd.f32 %v212, 1e-06
    %v219 = vadd.f32 %v213, 1e-06
    %v220 = vrsqrt.pop %v214
    %v221 = vmul.f32 %v220, %v214
    %v222 = vmul.f32 %v221, %v220
    %v223 = vmul.f32 0.5, %v222
    %v224 = vsub.f32 1.5, %v223
    %v225 = vmul.f32 %v220, %v224
    %vm226 = vweird.f32 %v214
    %vm227 = vweird.f32 %v220
    %vm228 = vmor %vm226, %vm227
    %v229 = vsel %vm228, %v220, %v225
    %v230 = vrsqrt.pop %v215
    %v231 = vmul.f32 %v230, %v215
    %v232 = vmul.f32 %v231, %v230
    %v233 = vmul.f32 0.5, %v232
    %v234 = vsub.f32 1.5, %v233
    %v235 = vmul.f32 %v230, %v234
    %vm236 = vweird.f32 %v215
    %vm237 = vweird.f32 %v230
    %vm238 = vmor %vm236, %vm237
    %v239 = vsel %vm238, %v230, %v235
    %v240 = vrsqrt.pop %v216
    %v241 = vmul.f32 %v240, %v216
    %v242 = vmul.f32 %v241, %v240
    %v243 = vmul.f32 0.5, %v242
    %v244 = vsub.f32 1.5, %v243
    %v245 = vmul.f32 %v240, %v244
    %vm246 = vweird.f32 %v216
    %vm247 = vweird.f32 %v240
    %vm248 = vmor %vm246, %vm247
    %v249 = vsel %vm248, %v240, %v245
    %v250 = vrsqrt.pop %v217
    %v251 = vmul.f32 %v250, %v217
    %v252 = vmul.f32 %v251, %v250
    %v253 = vmul.f32 0.5, %v252
    %v254 = vsub.f32 1.5, %v253
    %v255 = vmul.f32 %v250, %v254
    %vm256 = vweird.f32 %v217
    %vm257 = vweird.f32 %v250
    %vm258 = vmor %vm256, %vm257
    %v259 = vsel %vm258, %v250, %v255
    %v260 = vrsqrt.pop %v218
    %v261 = vmul.f32 %v260, %v218
    %v262 = vmul.f32 %v261, %v260
    %v263 = vmul.f32 0.5, %v262
    %v264 = vsub.f32 1.5, %v263
    %v265 = vmul.f32 %v260, %v264
    %vm266 = vweird.f32 %v218
    %vm267 = vweird.f32 %v260
    %vm268 = vmor %vm266, %vm267
    %v269 = vsel %vm268, %v260, %v265
    %v270 = vrsqrt.pop %v219
    %v271 = vmul.f32 %v270, %v219
    %v272 = vmul.f32 %v271, %v270
    %v273 = vmul.f32 0.5, %v272
    %v274 = vsub.f32 1.5, %v273
    %v275 = vmul.f32 %v270, %v274
    %vm276 = vweird.f32 %v219
    %vm277 = vweird.f32 %v270
    %vm278 = vmor %vm276, %vm277
    %v279 = vsel %vm278, %v270, %v275
    %v280 = vmul.f32 %v178, %v229
    %v281 = vmul.f32 %v179, %v239
    %v282 = vmul.f32 %v180, %v249
    %v283 = vmul.f32 %v181, %v259
    %v284 = vmul.f32 %v182, %v269
    %v285 = vmul.f32 %v183, %v279
    %v287 = vperm.slane %v144, 0
    %v289 = vmul.f32 %v280, %v287
    %v290 = vmul.f32 %v281, %v287
    %v291 = vmul.f32 %v282, %v287
    %v292 = vmul.f32 %v283, %v287
    %v293 = vmul.f32 %v284, %v287
    %v294 = vmul.f32 %v285, %v287
    %v296 = vperm.slane %v145, 0
    %v298 = vadd.f32 %v289, %v296
    %v299 = vadd.f32 %v290, %v296
    %v300 = vadd.f32 %v291, %v296
    %v301 = vadd.f32 %v292, %v296
    %v302 = vadd.f32 %v293, %v296
    %v303 = vadd.f32 %v294, %v296
    %v304 = vld [vmem:[%s6] sm:$0xff]
    %v305 = vld [vmem:[%s6 + $0x8] sm:$0xff]
    %v306 = vld [vmem:[%s6 + $0x10] sm:$0xff]
    %v307 = vld [vmem:[%s6 + $0x18] sm:$0xff]
    %v308 = vld [vmem:[%s7] sm:$0x1]
    %v310 = vperm.slane %v308, 0
    %v313 = vsel %vm146, %v298, 0
    %v316 = vsel %vm146, %v299, 0
    %v319 = vsel %vm146, %v300, 0
    %v322 = vsel %vm146, %v301, 0
    %v325 = vsel %vm146, %v302, 0
    %v328 = vsel %vm146, %v303, 0
    %330 = vmatpush.msra.mxu0 0.0
    %331 = vmatpush.msra.mxu0 0.0
    %332 = vmatpush.msra.mxu0 0.0
    %333 = vmatpush.msra.mxu0 0.0
    %334 = vmatpush.msra.mxu0 0.0
    %335 = vmatpush.msra.mxu0 0.0
    %336 = vmatpush.msra.mxu0 0.0
    %337 = vmatpush.msra.mxu0 0.0
    %338 = vmatpush.msra.mxu0 0.0
    %339 = vmatpush.msra.mxu0 0.0
    %340 = vmatpush.msra.mxu0 0.0
    %341 = vmatpush.msra.mxu0 0.0
    %342 = vmatpush.msra.mxu0 %v307
    %343 = vmatpush.msra.mxu0 %v306
    %344 = vmatpush.msra.mxu0 %v305
    %345 = vmatpush.msra.mxu0 %v304
    %346 = vmatmul.f32.gmra.mxu0 %v313
    %v347 = vpop.f32.mrf.mxu0
    %v348 = vadd.f32 %v310, %v347
    %349 = vmatmul.f32.gmra.mxu0 %v316
    %v350 = vpop.f32.mrf.mxu0
    %v351 = vadd.f32 %v310, %v350
    %352 = vmatmul.f32.gmra.mxu0 %v319
    %v353 = vpop.f32.mrf.mxu0
    %v354 = vadd.f32 %v310, %v353
    %355 = vmatmul.f32.gmra.mxu0 %v322
    %v356 = vpop.f32.mrf.mxu0
    %v357 = vadd.f32 %v310, %v356
    %358 = vmatmul.f32.gmra.mxu0 %v325
    %v359 = vpop.f32.mrf.mxu0
    %v360 = vadd.f32 %v310, %v359
    %361 = vmatmul.f32.gmra.mxu0 %v328
    %v362 = vpop.f32.mrf.mxu0
    %v363 = vadd.f32 %v310, %v362
    %364 = vdwg.mxu0
    %v365 = vld [vmem:[%s8] sm:$0xff]
    %v366 = vld [vmem:[%s8 + $0x8] sm:$0xff]
    %v367 = vld [vmem:[%s8 + $0x10] sm:$0xff]
    %v368 = vld [vmem:[%s8 + $0x18] sm:$0xff]
    %375 = vrot.lane.b32.xlu0 %v348, 96
    %v376 = vpop.permute.xlu0 %375
    %377 = vrot.lane.b32.xlu0 %v351, 96
    %v378 = vpop.permute.xlu0 %377
    %379 = vrot.lane.b32.xlu0 %v354, 96
    %v380 = vpop.permute.xlu0 %379
    %381 = vrot.lane.b32.xlu0 %v357, 96
    %v382 = vpop.permute.xlu0 %381
    %383 = vrot.lane.b32.xlu0 %v360, 96
    %v384 = vpop.permute.xlu0 %383
    %385 = vrot.lane.b32.xlu0 %v363, 96
    %v386 = vpop.permute.xlu0 %385
    %vm387 = vcmask 64512
    %v388 = vsel %vm387, %v348, 0
    %v390 = vsel %vm387, %v351, 0
    %v392 = vsel %vm387, %v354, 0
    %v394 = vsel %vm387, %v357, 0
    %v396 = vsel %vm387, %v360, 0
    %v398 = vsel %vm387, %v363, 0
    %v400 = vsel %vm387, %v376, 0
    %v402 = vsel %vm387, %v378, 0
    %v404 = vsel %vm387, %v380, 0
    %v406 = vsel %vm387, %v382, 0
    %v408 = vsel %vm387, %v384, 0
    %v410 = vsel %vm387, %v386, 0
    %412 = vmatpush.xpose.msra.mxu0 0.0
    %413 = vmatpush.xpose.msra.mxu0 0.0
    %414 = vmatpush.xpose.msra.mxu0 0.0
    %415 = vmatpush.xpose.msra.mxu0 0.0
    %416 = vmatpush.xpose.msra.mxu0 0.0
    %417 = vmatpush.xpose.msra.mxu0 0.0
    %418 = vmatpush.xpose.msra.mxu0 0.0
    %419 = vmatpush.xpose.msra.mxu0 0.0
    %420 = vmatpush.xpose.msra.mxu0 0.0
    %421 = vmatpush.xpose.msra.mxu0 0.0
    %422 = vmatpush.xpose.msra.mxu0 %v410
    %423 = vmatpush.xpose.msra.mxu0 %v408
    %424 = vmatpush.xpose.msra.mxu0 %v406
    %425 = vmatpush.xpose.msra.mxu0 %v404
    %426 = vmatpush.xpose.msra.mxu0 %v402
    %427 = vmatpush.xpose.msra.mxu0 %v400
    %428 = vmatmul.f32.gmra.mxu0 %v388
    %v429 = vpop.f32.mrf.mxu0
    %v430 = vadd.f32 0.0, %v429
    %431 = vmatmul.f32.gmra.mxu0 %v390
    %v432 = vpop.f32.mrf.mxu0
    %v433 = vadd.f32 0.0, %v432
    %434 = vmatmul.f32.gmra.mxu0 %v392
    %v435 = vpop.f32.mrf.mxu0
    %v436 = vadd.f32 0.0, %v435
    %437 = vmatmul.f32.gmra.mxu0 %v394
    %v438 = vpop.f32.mrf.mxu0
    %v439 = vadd.f32 0.0, %v438
    %440 = vmatmul.f32.gmra.mxu0 %v396
    %v441 = vpop.f32.mrf.mxu0
    %v442 = vadd.f32 0.0, %v441
    %443 = vmatmul.f32.gmra.mxu0 %v398
    %v444 = vpop.f32.mrf.mxu0
    %v445 = vadd.f32 0.0, %v444
    %446 = vdwg.mxu0
    %v447 = vmul.f32 %v430, 0.35355338
    %v448 = vmul.f32 %v433, 0.35355338
    %v449 = vmul.f32 %v436, 0.35355338
    %v450 = vmul.f32 %v439, 0.35355338
    %v451 = vmul.f32 %v442, 0.35355338
    %v452 = vmul.f32 %v445, 0.35355338
    %v453 = vadd.f32 %v447, %v138
    %v454 = vadd.f32 %v448, %v139
    %v455 = vadd.f32 %v449, %v140
    %v456 = vadd.f32 %v450, %v141
    %v457 = vadd.f32 %v451, %v142
    %v458 = vadd.f32 %v452, %v143
    %v459 = vsel %vm84, %v453, -inf
    %460 = vmax.xlane.f32.xlu0 %v459
    %v461 = vpop.xlane.xlu0 %460
    %v462 = vsel %vm84, %v454, -inf
    %463 = vmax.xlane.f32.xlu0 %v462
    %v464 = vpop.xlane.xlu0 %463
    %v465 = vsel %vm84, %v455, -inf
    %466 = vmax.xlane.f32.xlu0 %v465
    %v467 = vpop.xlane.xlu0 %466
    %v468 = vsel %vm84, %v456, -inf
    %469 = vmax.xlane.f32.xlu0 %v468
    %v470 = vpop.xlane.xlu0 %469
    %v471 = vsel %vm84, %v457, -inf
    %472 = vmax.xlane.f32.xlu0 %v471
    %v473 = vpop.xlane.xlu0 %472
    %v474 = vsel %vm84, %v458, -inf
    %475 = vmax.xlane.f32.xlu0 %v474
    %v476 = vpop.xlane.xlu0 %475
    %v477 = vsub.f32 %v453, %v461
    %v478 = vsub.f32 %v454, %v464
    %v479 = vsub.f32 %v455, %v467
    %v480 = vsub.f32 %v456, %v470
    %v481 = vsub.f32 %v457, %v473
    %v482 = vsub.f32 %v458, %v476
    %v483 = vmul.f32 %v477, 1.442695
    %v484 = vpow.pop %v483
    %v485 = vmul.f32 %v478, 1.442695
    %v486 = vpow.pop %v485
    %v487 = vmul.f32 %v479, 1.442695
    %v488 = vpow.pop %v487
    %v489 = vmul.f32 %v480, 1.442695
    %v490 = vpow.pop %v489
    %v491 = vmul.f32 %v481, 1.442695
    %v492 = vpow.pop %v491
    %v493 = vmul.f32 %v482, 1.442695
    %v494 = vpow.pop %v493
    %v495 = vsel %vm84, %v484, 0.0
    %496 = vadd.xlane.f32.xlu0 %v495
    %v497 = vpop.xlane.xlu0 %496
    %v498 = vsel %vm84, %v486, 0.0
    %499 = vadd.xlane.f32.xlu0 %v498
    %v500 = vpop.xlane.xlu0 %499
    %v501 = vsel %vm84, %v488, 0.0
    %502 = vadd.xlane.f32.xlu0 %v501
    %v503 = vpop.xlane.xlu0 %502
    %v504 = vsel %vm84, %v490, 0.0
    %505 = vadd.xlane.f32.xlu0 %v504
    %v506 = vpop.xlane.xlu0 %505
    %v507 = vsel %vm84, %v492, 0.0
    %508 = vadd.xlane.f32.xlu0 %v507
    %v509 = vpop.xlane.xlu0 %508
    %v510 = vsel %vm84, %v494, 0.0
    %511 = vadd.xlane.f32.xlu0 %v510
    %v512 = vpop.xlane.xlu0 %511
    %v513 = vrcp.pop %v497
    %v514 = vrcp.pop %v500
    %v515 = vrcp.pop %v503
    %v516 = vrcp.pop %v506
    %v517 = vrcp.pop %v509
    %v518 = vrcp.pop %v512
    %v519 = vmul.f32 %v484, %v513
    %v520 = vmul.f32 %v486, %v514
    %v521 = vmul.f32 %v488, %v515
    %v522 = vmul.f32 %v490, %v516
    %v523 = vmul.f32 %v492, %v517
    %v524 = vmul.f32 %v494, %v518
    %525 = vrot.lane.b32.xlu0 %v348, 64
    %v526 = vpop.permute.xlu0 %525
    %527 = vrot.lane.b32.xlu0 %v351, 64
    %v528 = vpop.permute.xlu0 %527
    %529 = vrot.lane.b32.xlu0 %v354, 64
    %v530 = vpop.permute.xlu0 %529
    %531 = vrot.lane.b32.xlu0 %v357, 64
    %v532 = vpop.permute.xlu0 %531
    %533 = vrot.lane.b32.xlu0 %v360, 64
    %v534 = vpop.permute.xlu0 %533
    %535 = vrot.lane.b32.xlu0 %v363, 64
    %v536 = vpop.permute.xlu0 %535
    %v544 = vsel %vm84, %v519, 0
    %v547 = vsel %vm84, %v520, 0
    %v550 = vsel %vm84, %v521, 0
    %v553 = vsel %vm84, %v522, 0
    %v556 = vsel %vm84, %v523, 0
    %v559 = vsel %vm84, %v524, 0
    %561 = vmatpush.msra.mxu0 0.0
    %562 = vmatpush.msra.mxu0 0.0
    %563 = vmatpush.msra.mxu0 0.0
    %564 = vmatpush.msra.mxu0 0.0
    %565 = vmatpush.msra.mxu0 0.0
    %566 = vmatpush.msra.mxu0 0.0
    %567 = vmatpush.msra.mxu0 0.0
    %568 = vmatpush.msra.mxu0 0.0
    %569 = vmatpush.msra.mxu0 0.0
    %570 = vmatpush.msra.mxu0 0.0
    %571 = vmatpush.msra.mxu0 %v536
    %572 = vmatpush.msra.mxu0 %v534
    %573 = vmatpush.msra.mxu0 %v532
    %574 = vmatpush.msra.mxu0 %v530
    %575 = vmatpush.msra.mxu0 %v528
    %576 = vmatpush.msra.mxu0 %v526
    %577 = vmatmul.f32.gmra.mxu0 %v544
    %v578 = vpop.f32.mrf.mxu0
    %v579 = vadd.f32 0.0, %v578
    %580 = vmatmul.f32.gmra.mxu0 %v547
    %v581 = vpop.f32.mrf.mxu0
    %v582 = vadd.f32 0.0, %v581
    %583 = vmatmul.f32.gmra.mxu0 %v550
    %v584 = vpop.f32.mrf.mxu0
    %v585 = vadd.f32 0.0, %v584
    %586 = vmatmul.f32.gmra.mxu0 %v553
    %v587 = vpop.f32.mrf.mxu0
    %v588 = vadd.f32 0.0, %v587
    %589 = vmatmul.f32.gmra.mxu0 %v556
    %v590 = vpop.f32.mrf.mxu0
    %v591 = vadd.f32 0.0, %v590
    %592 = vmatmul.f32.gmra.mxu0 %v559
    %v593 = vpop.f32.mrf.mxu0
    %v594 = vadd.f32 0.0, %v593
    %595 = vdwg.mxu0
    %596 = vrot.lane.b32.xlu0 %v348, 120
    %v597 = vpop.permute.xlu0 %596
    %598 = vrot.lane.b32.xlu0 %v351, 120
    %v599 = vpop.permute.xlu0 %598
    %600 = vrot.lane.b32.xlu0 %v354, 120
    %v601 = vpop.permute.xlu0 %600
    %602 = vrot.lane.b32.xlu0 %v357, 120
    %v603 = vpop.permute.xlu0 %602
    %604 = vrot.lane.b32.xlu0 %v360, 120
    %v605 = vpop.permute.xlu0 %604
    %606 = vrot.lane.b32.xlu0 %v363, 120
    %v607 = vpop.permute.xlu0 %606
    %608 = vrot.lane.b32.xlu0 %v348, 88
    %v609 = vpop.permute.xlu0 %608
    %610 = vrot.lane.b32.xlu0 %v351, 88
    %v611 = vpop.permute.xlu0 %610
    %612 = vrot.lane.b32.xlu0 %v354, 88
    %v613 = vpop.permute.xlu0 %612
    %614 = vrot.lane.b32.xlu0 %v357, 88
    %v615 = vpop.permute.xlu0 %614
    %616 = vrot.lane.b32.xlu0 %v360, 88
    %v617 = vpop.permute.xlu0 %616
    %618 = vrot.lane.b32.xlu0 %v363, 88
    %v619 = vpop.permute.xlu0 %618
    %v620 = vsel %vm387, %v597, 0
    %v622 = vsel %vm387, %v599, 0
    %v624 = vsel %vm387, %v601, 0
    %v626 = vsel %vm387, %v603, 0
    %v628 = vsel %vm387, %v605, 0
    %v630 = vsel %vm387, %v607, 0
    %v632 = vsel %vm387, %v609, 0
    %v634 = vsel %vm387, %v611, 0
    %v636 = vsel %vm387, %v613, 0
    %v638 = vsel %vm387, %v615, 0
    %v640 = vsel %vm387, %v617, 0
    %v642 = vsel %vm387, %v619, 0
    %644 = vmatpush.xpose.msra.mxu0 0.0
    %645 = vmatpush.xpose.msra.mxu0 0.0
    %646 = vmatpush.xpose.msra.mxu0 0.0
    %647 = vmatpush.xpose.msra.mxu0 0.0
    %648 = vmatpush.xpose.msra.mxu0 0.0
    %649 = vmatpush.xpose.msra.mxu0 0.0
    %650 = vmatpush.xpose.msra.mxu0 0.0
    %651 = vmatpush.xpose.msra.mxu0 0.0
    %652 = vmatpush.xpose.msra.mxu0 0.0
    %653 = vmatpush.xpose.msra.mxu0 0.0
    %654 = vmatpush.xpose.msra.mxu0 %v642
    %655 = vmatpush.xpose.msra.mxu0 %v640
    %656 = vmatpush.xpose.msra.mxu0 %v638
    %657 = vmatpush.xpose.msra.mxu0 %v636
    %658 = vmatpush.xpose.msra.mxu0 %v634
    %659 = vmatpush.xpose.msra.mxu0 %v632
    %660 = vmatmul.f32.gmra.mxu0 %v620
    %v661 = vpop.f32.mrf.mxu0
    %v662 = vadd.f32 0.0, %v661
    %663 = vmatmul.f32.gmra.mxu0 %v622
    %v664 = vpop.f32.mrf.mxu0
    %v665 = vadd.f32 0.0, %v664
    %666 = vmatmul.f32.gmra.mxu0 %v624
    %v667 = vpop.f32.mrf.mxu0
    %v668 = vadd.f32 0.0, %v667
    %669 = vmatmul.f32.gmra.mxu0 %v626
    %v670 = vpop.f32.mrf.mxu0
    %v671 = vadd.f32 0.0, %v670
    %672 = vmatmul.f32.gmra.mxu0 %v628
    %v673 = vpop.f32.mrf.mxu0
    %v674 = vadd.f32 0.0, %v673
    %675 = vmatmul.f32.gmra.mxu0 %v630
    %v676 = vpop.f32.mrf.mxu0
    %v677 = vadd.f32 0.0, %v676
    %678 = vdwg.mxu0
    %v679 = vmul.f32 %v662, 0.35355338
    %v680 = vmul.f32 %v665, 0.35355338
    %v681 = vmul.f32 %v668, 0.35355338
    %v682 = vmul.f32 %v671, 0.35355338
    %v683 = vmul.f32 %v674, 0.35355338
    %v684 = vmul.f32 %v677, 0.35355338
    %v685 = vadd.f32 %v679, %v138
    %v686 = vadd.f32 %v680, %v139
    %v687 = vadd.f32 %v681, %v140
    %v688 = vadd.f32 %v682, %v141
    %v689 = vadd.f32 %v683, %v142
    %v690 = vadd.f32 %v684, %v143
    %v691 = vsel %vm84, %v685, -inf
    %692 = vmax.xlane.f32.xlu0 %v691
    %v693 = vpop.xlane.xlu0 %692
    %v694 = vsel %vm84, %v686, -inf
    %695 = vmax.xlane.f32.xlu0 %v694
    %v696 = vpop.xlane.xlu0 %695
    %v697 = vsel %vm84, %v687, -inf
    %698 = vmax.xlane.f32.xlu0 %v697
    %v699 = vpop.xlane.xlu0 %698
    %v700 = vsel %vm84, %v688, -inf
    %701 = vmax.xlane.f32.xlu0 %v700
    %v702 = vpop.xlane.xlu0 %701
    %v703 = vsel %vm84, %v689, -inf
    %704 = vmax.xlane.f32.xlu0 %v703
    %v705 = vpop.xlane.xlu0 %704
    %v706 = vsel %vm84, %v690, -inf
    %707 = vmax.xlane.f32.xlu0 %v706
    %v708 = vpop.xlane.xlu0 %707
    %v709 = vsub.f32 %v685, %v693
    %v710 = vsub.f32 %v686, %v696
    %v711 = vsub.f32 %v687, %v699
    %v712 = vsub.f32 %v688, %v702
    %v713 = vsub.f32 %v689, %v705
    %v714 = vsub.f32 %v690, %v708
    %v715 = vmul.f32 %v709, 1.442695
    %v716 = vpow.pop %v715
    %v717 = vmul.f32 %v710, 1.442695
    %v718 = vpow.pop %v717
    %v719 = vmul.f32 %v711, 1.442695
    %v720 = vpow.pop %v719
    %v721 = vmul.f32 %v712, 1.442695
    %v722 = vpow.pop %v721
    %v723 = vmul.f32 %v713, 1.442695
    %v724 = vpow.pop %v723
    %v725 = vmul.f32 %v714, 1.442695
    %v726 = vpow.pop %v725
    %v727 = vsel %vm84, %v716, 0.0
    %728 = vadd.xlane.f32.xlu0 %v727
    %v729 = vpop.xlane.xlu0 %728
    %v730 = vsel %vm84, %v718, 0.0
    %731 = vadd.xlane.f32.xlu0 %v730
    %v732 = vpop.xlane.xlu0 %731
    %v733 = vsel %vm84, %v720, 0.0
    %734 = vadd.xlane.f32.xlu0 %v733
    %v735 = vpop.xlane.xlu0 %734
    %v736 = vsel %vm84, %v722, 0.0
    %737 = vadd.xlane.f32.xlu0 %v736
    %v738 = vpop.xlane.xlu0 %737
    %v739 = vsel %vm84, %v724, 0.0
    %740 = vadd.xlane.f32.xlu0 %v739
    %v741 = vpop.xlane.xlu0 %740
    %v742 = vsel %vm84, %v726, 0.0
    %743 = vadd.xlane.f32.xlu0 %v742
    %v744 = vpop.xlane.xlu0 %743
    %v745 = vrcp.pop %v729
    %v746 = vrcp.pop %v732
    %v747 = vrcp.pop %v735
    %v748 = vrcp.pop %v738
    %v749 = vrcp.pop %v741
    %v750 = vrcp.pop %v744
    %v751 = vmul.f32 %v716, %v745
    %v752 = vmul.f32 %v718, %v746
    %v753 = vmul.f32 %v720, %v747
    %v754 = vmul.f32 %v722, %v748
    %v755 = vmul.f32 %v724, %v749
    %v756 = vmul.f32 %v726, %v750
    %757 = vrot.lane.b32.xlu0 %v348, 56
    %v758 = vpop.permute.xlu0 %757
    %759 = vrot.lane.b32.xlu0 %v351, 56
    %v760 = vpop.permute.xlu0 %759
    %761 = vrot.lane.b32.xlu0 %v354, 56
    %v762 = vpop.permute.xlu0 %761
    %763 = vrot.lane.b32.xlu0 %v357, 56
    %v764 = vpop.permute.xlu0 %763
    %765 = vrot.lane.b32.xlu0 %v360, 56
    %v766 = vpop.permute.xlu0 %765
    %767 = vrot.lane.b32.xlu0 %v363, 56
    %v768 = vpop.permute.xlu0 %767
    %v776 = vsel %vm84, %v751, 0
    %v779 = vsel %vm84, %v752, 0
    %v782 = vsel %vm84, %v753, 0
    %v785 = vsel %vm84, %v754, 0
    %v788 = vsel %vm84, %v755, 0
    %v791 = vsel %vm84, %v756, 0
    %793 = vmatpush.msra.mxu0 0.0
    %794 = vmatpush.msra.mxu0 0.0
    %795 = vmatpush.msra.mxu0 0.0
    %796 = vmatpush.msra.mxu0 0.0
    %797 = vmatpush.msra.mxu0 0.0
    %798 = vmatpush.msra.mxu0 0.0
    %799 = vmatpush.msra.mxu0 0.0
    %800 = vmatpush.msra.mxu0 0.0
    %801 = vmatpush.msra.mxu0 0.0
    %802 = vmatpush.msra.mxu0 0.0
    %803 = vmatpush.msra.mxu0 %v768
    %804 = vmatpush.msra.mxu0 %v766
    %805 = vmatpush.msra.mxu0 %v764
    %806 = vmatpush.msra.mxu0 %v762
    %807 = vmatpush.msra.mxu0 %v760
    %808 = vmatpush.msra.mxu0 %v758
    %809 = vmatmul.f32.gmra.mxu0 %v776
    %v810 = vpop.f32.mrf.mxu0
    %v811 = vadd.f32 0.0, %v810
    %812 = vmatmul.f32.gmra.mxu0 %v779
    %v813 = vpop.f32.mrf.mxu0
    %v814 = vadd.f32 0.0, %v813
    %815 = vmatmul.f32.gmra.mxu0 %v782
    %v816 = vpop.f32.mrf.mxu0
    %v817 = vadd.f32 0.0, %v816
    %818 = vmatmul.f32.gmra.mxu0 %v785
    %v819 = vpop.f32.mrf.mxu0
    %v820 = vadd.f32 0.0, %v819
    %821 = vmatmul.f32.gmra.mxu0 %v788
    %v822 = vpop.f32.mrf.mxu0
    %v823 = vadd.f32 0.0, %v822
    %824 = vmatmul.f32.gmra.mxu0 %v791
    %v825 = vpop.f32.mrf.mxu0
    %v826 = vadd.f32 0.0, %v825
    %827 = vdwg.mxu0
    %v829 = vsel %vm387, %v811, 0
    %v832 = vsel %vm387, %v814, 0
    %v835 = vsel %vm387, %v817, 0
    %v838 = vsel %vm387, %v820, 0
    %v841 = vsel %vm387, %v823, 0
    %v844 = vsel %vm387, %v826, 0
    %846 = vmatpush.msra.mxu0 0.0
    %847 = vmatpush.msra.mxu0 0.0
    %848 = vmatpush.msra.mxu0 0.0
    %849 = vmatpush.msra.mxu0 0.0
    %850 = vmatpush.msra.mxu0 0.0
    %851 = vmatpush.msra.mxu0 0.0
    %852 = vmatpush.msra.mxu0 0.0
    %853 = vmatpush.msra.mxu0 0.0
    %854 = vmatpush.msra.mxu0 0.0
    %855 = vmatpush.msra.mxu0 0.0
    %856 = vmatpush.msra.mxu0 0.0
    %857 = vmatpush.msra.mxu0 0.0
    %858 = vmatpush.msra.mxu0 0.0
    %859 = vmatpush.msra.mxu0 0.0
    %860 = vmatpush.msra.mxu0 0.0
    %861 = vmatpush.msra.mxu0 %v366
    %862 = vmatmul.f32.gmra.mxu0 %v829
    %v863 = vpop.f32.mrf.mxu0
    %v864 = vadd.f32 0.0, %v863
    %865 = vmatmul.f32.gmra.mxu0 %v832
    %v866 = vpop.f32.mrf.mxu0
    %v867 = vadd.f32 0.0, %v866
    %868 = vmatmul.f32.gmra.mxu0 %v835
    %v869 = vpop.f32.mrf.mxu0
    %v870 = vadd.f32 0.0, %v869
    %871 = vmatmul.f32.gmra.mxu0 %v838
    %v872 = vpop.f32.mrf.mxu0
    %v873 = vadd.f32 0.0, %v872
    %874 = vmatmul.f32.gmra.mxu0 %v841
    %v875 = vpop.f32.mrf.mxu0
    %v876 = vadd.f32 0.0, %v875
    %877 = vmatmul.f32.gmra.mxu0 %v844
    %v878 = vpop.f32.mrf.mxu0
    %v879 = vadd.f32 0.0, %v878
    %880 = vdwg.mxu0
    %v882 = vsel %vm387, %v579, 0
    %v885 = vsel %vm387, %v582, 0
    %v888 = vsel %vm387, %v585, 0
    %v891 = vsel %vm387, %v588, 0
    %v894 = vsel %vm387, %v591, 0
    %v897 = vsel %vm387, %v594, 0
    %899 = vmatpush.msra.mxu0 0.0
    %900 = vmatpush.msra.mxu0 0.0
    %901 = vmatpush.msra.mxu0 0.0
    %902 = vmatpush.msra.mxu0 0.0
    %903 = vmatpush.msra.mxu0 0.0
    %904 = vmatpush.msra.mxu0 0.0
    %905 = vmatpush.msra.mxu0 0.0
    %906 = vmatpush.msra.mxu0 0.0
    %907 = vmatpush.msra.mxu0 0.0
    %908 = vmatpush.msra.mxu0 0.0
    %909 = vmatpush.msra.mxu0 0.0
    %910 = vmatpush.msra.mxu0 0.0
    %911 = vmatpush.msra.mxu0 0.0
    %912 = vmatpush.msra.mxu0 0.0
    %913 = vmatpush.msra.mxu0 0.0
    %914 = vmatpush.msra.mxu0 %v365
    %915 = vmatmul.f32.gmra.mxu0 %v882
    %v916 = vpop.f32.mrf.mxu0
    %v917 = vadd.f32 %v864, %v916
    %918 = vmatmul.f32.gmra.mxu0 %v885
    %v919 = vpop.f32.mrf.mxu0
    %v920 = vadd.f32 %v867, %v919
    %921 = vmatmul.f32.gmra.mxu0 %v888
    %v922 = vpop.f32.mrf.mxu0
    %v923 = vadd.f32 %v870, %v922
    %924 = vmatmul.f32.gmra.mxu0 %v891
    %v925 = vpop.f32.mrf.mxu0
    %v926 = vadd.f32 %v873, %v925
    %927 = vmatmul.f32.gmra.mxu0 %v894
    %v928 = vpop.f32.mrf.mxu0
    %v929 = vadd.f32 %v876, %v928
    %930 = vmatmul.f32.gmra.mxu0 %v897
    %v931 = vpop.f32.mrf.mxu0
    %v932 = vadd.f32 %v879, %v931
    %933 = vdwg.mxu0
    %934 = vrot.lane.b32.xlu0 %v348, 112
    %v935 = vpop.permute.xlu0 %934
    %936 = vrot.lane.b32.xlu0 %v351, 112
    %v937 = vpop.permute.xlu0 %936
    %938 = vrot.lane.b32.xlu0 %v354, 112
    %v939 = vpop.permute.xlu0 %938
    %940 = vrot.lane.b32.xlu0 %v357, 112
    %v941 = vpop.permute.xlu0 %940
    %942 = vrot.lane.b32.xlu0 %v360, 112
    %v943 = vpop.permute.xlu0 %942
    %944 = vrot.lane.b32.xlu0 %v363, 112
    %v945 = vpop.permute.xlu0 %944
    %946 = vrot.lane.b32.xlu0 %v348, 80
    %v947 = vpop.permute.xlu0 %946
    %948 = vrot.lane.b32.xlu0 %v351, 80
    %v949 = vpop.permute.xlu0 %948
    %950 = vrot.lane.b32.xlu0 %v354, 80
    %v951 = vpop.permute.xlu0 %950
    %952 = vrot.lane.b32.xlu0 %v357, 80
    %v953 = vpop.permute.xlu0 %952
    %954 = vrot.lane.b32.xlu0 %v360, 80
    %v955 = vpop.permute.xlu0 %954
    %956 = vrot.lane.b32.xlu0 %v363, 80
    %v957 = vpop.permute.xlu0 %956
    %v958 = vsel %vm387, %v935, 0
    %v960 = vsel %vm387, %v937, 0
    %v962 = vsel %vm387, %v939, 0
    %v964 = vsel %vm387, %v941, 0
    %v966 = vsel %vm387, %v943, 0
    %v968 = vsel %vm387, %v945, 0
    %v970 = vsel %vm387, %v947, 0
    %v972 = vsel %vm387, %v949, 0
    %v974 = vsel %vm387, %v951, 0
    %v976 = vsel %vm387, %v953, 0
    %v978 = vsel %vm387, %v955, 0
    %v980 = vsel %vm387, %v957, 0
    %982 = vmatpush.xpose.msra.mxu0 0.0
    %983 = vmatpush.xpose.msra.mxu0 0.0
    %984 = vmatpush.xpose.msra.mxu0 0.0
    %985 = vmatpush.xpose.msra.mxu0 0.0
    %986 = vmatpush.xpose.msra.mxu0 0.0
    %987 = vmatpush.xpose.msra.mxu0 0.0
    %988 = vmatpush.xpose.msra.mxu0 0.0
    %989 = vmatpush.xpose.msra.mxu0 0.0
    %990 = vmatpush.xpose.msra.mxu0 0.0
    %991 = vmatpush.xpose.msra.mxu0 0.0
    %992 = vmatpush.xpose.msra.mxu0 %v980
    %993 = vmatpush.xpose.msra.mxu0 %v978
    %994 = vmatpush.xpose.msra.mxu0 %v976
    %995 = vmatpush.xpose.msra.mxu0 %v974
    %996 = vmatpush.xpose.msra.mxu0 %v972
    %997 = vmatpush.xpose.msra.mxu0 %v970
    %998 = vmatmul.f32.gmra.mxu0 %v958
    %v999 = vpop.f32.mrf.mxu0
    %v1000 = vadd.f32 0.0, %v999
    %1001 = vmatmul.f32.gmra.mxu0 %v960
    %v1002 = vpop.f32.mrf.mxu0
    %v1003 = vadd.f32 0.0, %v1002
    %1004 = vmatmul.f32.gmra.mxu0 %v962
    %v1005 = vpop.f32.mrf.mxu0
    %v1006 = vadd.f32 0.0, %v1005
    %1007 = vmatmul.f32.gmra.mxu0 %v964
    %v1008 = vpop.f32.mrf.mxu0
    %v1009 = vadd.f32 0.0, %v1008
    %1010 = vmatmul.f32.gmra.mxu0 %v966
    %v1011 = vpop.f32.mrf.mxu0
    %v1012 = vadd.f32 0.0, %v1011
    %1013 = vmatmul.f32.gmra.mxu0 %v968
    %v1014 = vpop.f32.mrf.mxu0
    %v1015 = vadd.f32 0.0, %v1014
    %1016 = vdwg.mxu0
    %v1017 = vmul.f32 %v1000, 0.35355338
    %v1018 = vmul.f32 %v1003, 0.35355338
    %v1019 = vmul.f32 %v1006, 0.35355338
    %v1020 = vmul.f32 %v1009, 0.35355338
    %v1021 = vmul.f32 %v1012, 0.35355338
    %v1022 = vmul.f32 %v1015, 0.35355338
    %v1023 = vadd.f32 %v1017, %v138
    %v1024 = vadd.f32 %v1018, %v139
    %v1025 = vadd.f32 %v1019, %v140
    %v1026 = vadd.f32 %v1020, %v141
    %v1027 = vadd.f32 %v1021, %v142
    %v1028 = vadd.f32 %v1022, %v143
    %v1029 = vsel %vm84, %v1023, -inf
    %1030 = vmax.xlane.f32.xlu0 %v1029
    %v1031 = vpop.xlane.xlu0 %1030
    %v1032 = vsel %vm84, %v1024, -inf
    %1033 = vmax.xlane.f32.xlu0 %v1032
    %v1034 = vpop.xlane.xlu0 %1033
    %v1035 = vsel %vm84, %v1025, -inf
    %1036 = vmax.xlane.f32.xlu0 %v1035
    %v1037 = vpop.xlane.xlu0 %1036
    %v1038 = vsel %vm84, %v1026, -inf
    %1039 = vmax.xlane.f32.xlu0 %v1038
    %v1040 = vpop.xlane.xlu0 %1039
    %v1041 = vsel %vm84, %v1027, -inf
    %1042 = vmax.xlane.f32.xlu0 %v1041
    %v1043 = vpop.xlane.xlu0 %1042
    %v1044 = vsel %vm84, %v1028, -inf
    %1045 = vmax.xlane.f32.xlu0 %v1044
    %v1046 = vpop.xlane.xlu0 %1045
    %v1047 = vsub.f32 %v1023, %v1031
    %v1048 = vsub.f32 %v1024, %v1034
    %v1049 = vsub.f32 %v1025, %v1037
    %v1050 = vsub.f32 %v1026, %v1040
    %v1051 = vsub.f32 %v1027, %v1043
    %v1052 = vsub.f32 %v1028, %v1046
    %v1053 = vmul.f32 %v1047, 1.442695
    %v1054 = vpow.pop %v1053
    %v1055 = vmul.f32 %v1048, 1.442695
    %v1056 = vpow.pop %v1055
    %v1057 = vmul.f32 %v1049, 1.442695
    %v1058 = vpow.pop %v1057
    %v1059 = vmul.f32 %v1050, 1.442695
    %v1060 = vpow.pop %v1059
    %v1061 = vmul.f32 %v1051, 1.442695
    %v1062 = vpow.pop %v1061
    %v1063 = vmul.f32 %v1052, 1.442695
    %v1064 = vpow.pop %v1063
    %v1065 = vsel %vm84, %v1054, 0.0
    %1066 = vadd.xlane.f32.xlu0 %v1065
    %v1067 = vpop.xlane.xlu0 %1066
    %v1068 = vsel %vm84, %v1056, 0.0
    %1069 = vadd.xlane.f32.xlu0 %v1068
    %v1070 = vpop.xlane.xlu0 %1069
    %v1071 = vsel %vm84, %v1058, 0.0
    %1072 = vadd.xlane.f32.xlu0 %v1071
    %v1073 = vpop.xlane.xlu0 %1072
    %v1074 = vsel %vm84, %v1060, 0.0
    %1075 = vadd.xlane.f32.xlu0 %v1074
    %v1076 = vpop.xlane.xlu0 %1075
    %v1077 = vsel %vm84, %v1062, 0.0
    %1078 = vadd.xlane.f32.xlu0 %v1077
    %v1079 = vpop.xlane.xlu0 %1078
    %v1080 = vsel %vm84, %v1064, 0.0
    %1081 = vadd.xlane.f32.xlu0 %v1080
    %v1082 = vpop.xlane.xlu0 %1081
    %v1083 = vrcp.pop %v1067
    %v1084 = vrcp.pop %v1070
    %v1085 = vrcp.pop %v1073
    %v1086 = vrcp.pop %v1076
    %v1087 = vrcp.pop %v1079
    %v1088 = vrcp.pop %v1082
    %v1089 = vmul.f32 %v1054, %v1083
    %v1090 = vmul.f32 %v1056, %v1084
    %v1091 = vmul.f32 %v1058, %v1085
    %v1092 = vmul.f32 %v1060, %v1086
    %v1093 = vmul.f32 %v1062, %v1087
    %v1094 = vmul.f32 %v1064, %v1088
    %1095 = vrot.lane.b32.xlu0 %v348, 48
    %v1096 = vpop.permute.xlu0 %1095
    %1097 = vrot.lane.b32.xlu0 %v351, 48
    %v1098 = vpop.permute.xlu0 %1097
    %1099 = vrot.lane.b32.xlu0 %v354, 48
    %v1100 = vpop.permute.xlu0 %1099
    %1101 = vrot.lane.b32.xlu0 %v357, 48
    %v1102 = vpop.permute.xlu0 %1101
    %1103 = vrot.lane.b32.xlu0 %v360, 48
    %v1104 = vpop.permute.xlu0 %1103
    %1105 = vrot.lane.b32.xlu0 %v363, 48
    %v1106 = vpop.permute.xlu0 %1105
    %v1114 = vsel %vm84, %v1089, 0
    %v1117 = vsel %vm84, %v1090, 0
    %v1120 = vsel %vm84, %v1091, 0
    %v1123 = vsel %vm84, %v1092, 0
    %v1126 = vsel %vm84, %v1093, 0
    %v1129 = vsel %vm84, %v1094, 0
    %1131 = vmatpush.msra.mxu0 0.0
    %1132 = vmatpush.msra.mxu0 0.0
    %1133 = vmatpush.msra.mxu0 0.0
    %1134 = vmatpush.msra.mxu0 0.0
    %1135 = vmatpush.msra.mxu0 0.0
    %1136 = vmatpush.msra.mxu0 0.0
    %1137 = vmatpush.msra.mxu0 0.0
    %1138 = vmatpush.msra.mxu0 0.0
    %1139 = vmatpush.msra.mxu0 0.0
    %1140 = vmatpush.msra.mxu0 0.0
    %1141 = vmatpush.msra.mxu0 %v1106
    %1142 = vmatpush.msra.mxu0 %v1104
    %1143 = vmatpush.msra.mxu0 %v1102
    %1144 = vmatpush.msra.mxu0 %v1100
    %1145 = vmatpush.msra.mxu0 %v1098
    %1146 = vmatpush.msra.mxu0 %v1096
    %1147 = vmatmul.f32.gmra.mxu0 %v1114
    %v1148 = vpop.f32.mrf.mxu0
    %v1149 = vadd.f32 0.0, %v1148
    %1150 = vmatmul.f32.gmra.mxu0 %v1117
    %v1151 = vpop.f32.mrf.mxu0
    %v1152 = vadd.f32 0.0, %v1151
    %1153 = vmatmul.f32.gmra.mxu0 %v1120
    %v1154 = vpop.f32.mrf.mxu0
    %v1155 = vadd.f32 0.0, %v1154
    %1156 = vmatmul.f32.gmra.mxu0 %v1123
    %v1157 = vpop.f32.mrf.mxu0
    %v1158 = vadd.f32 0.0, %v1157
    %1159 = vmatmul.f32.gmra.mxu0 %v1126
    %v1160 = vpop.f32.mrf.mxu0
    %v1161 = vadd.f32 0.0, %v1160
    %1162 = vmatmul.f32.gmra.mxu0 %v1129
    %v1163 = vpop.f32.mrf.mxu0
    %v1164 = vadd.f32 0.0, %v1163
    %1165 = vdwg.mxu0
    %v1167 = vsel %vm387, %v1149, 0
    %v1170 = vsel %vm387, %v1152, 0
    %v1173 = vsel %vm387, %v1155, 0
    %v1176 = vsel %vm387, %v1158, 0
    %v1179 = vsel %vm387, %v1161, 0
    %v1182 = vsel %vm387, %v1164, 0
    %1184 = vmatpush.msra.mxu0 0.0
    %1185 = vmatpush.msra.mxu0 0.0
    %1186 = vmatpush.msra.mxu0 0.0
    %1187 = vmatpush.msra.mxu0 0.0
    %1188 = vmatpush.msra.mxu0 0.0
    %1189 = vmatpush.msra.mxu0 0.0
    %1190 = vmatpush.msra.mxu0 0.0
    %1191 = vmatpush.msra.mxu0 0.0
    %1192 = vmatpush.msra.mxu0 0.0
    %1193 = vmatpush.msra.mxu0 0.0
    %1194 = vmatpush.msra.mxu0 0.0
    %1195 = vmatpush.msra.mxu0 0.0
    %1196 = vmatpush.msra.mxu0 0.0
    %1197 = vmatpush.msra.mxu0 0.0
    %1198 = vmatpush.msra.mxu0 0.0
    %1199 = vmatpush.msra.mxu0 %v367
    %1200 = vmatmul.f32.gmra.mxu0 %v1167
    %v1201 = vpop.f32.mrf.mxu0
    %v1202 = vadd.f32 0.0, %v1201
    %1203 = vmatmul.f32.gmra.mxu0 %v1170
    %v1204 = vpop.f32.mrf.mxu0
    %v1205 = vadd.f32 0.0, %v1204
    %1206 = vmatmul.f32.gmra.mxu0 %v1173
    %v1207 = vpop.f32.mrf.mxu0
    %v1208 = vadd.f32 0.0, %v1207
    %1209 = vmatmul.f32.gmra.mxu0 %v1176
    %v1210 = vpop.f32.mrf.mxu0
    %v1211 = vadd.f32 0.0, %v1210
    %1212 = vmatmul.f32.gmra.mxu0 %v1179
    %v1213 = vpop.f32.mrf.mxu0
    %v1214 = vadd.f32 0.0, %v1213
    %1215 = vmatmul.f32.gmra.mxu0 %v1182
    %v1216 = vpop.f32.mrf.mxu0
    %v1217 = vadd.f32 0.0, %v1216
    %1218 = vdwg.mxu0
    %v1219 = vadd.f32 %v917, %v1202
    %v1220 = vadd.f32 %v920, %v1205
    %v1221 = vadd.f32 %v923, %v1208
    %v1222 = vadd.f32 %v926, %v1211
    %v1223 = vadd.f32 %v929, %v1214
    %v1224 = vadd.f32 %v932, %v1217
    %1225 = vrot.lane.b32.xlu0 %v348, 104
    %v1226 = vpop.permute.xlu0 %1225
    %1227 = vrot.lane.b32.xlu0 %v351, 104
    %v1228 = vpop.permute.xlu0 %1227
    %1229 = vrot.lane.b32.xlu0 %v354, 104
    %v1230 = vpop.permute.xlu0 %1229
    %1231 = vrot.lane.b32.xlu0 %v357, 104
    %v1232 = vpop.permute.xlu0 %1231
    %1233 = vrot.lane.b32.xlu0 %v360, 104
    %v1234 = vpop.permute.xlu0 %1233
    %1235 = vrot.lane.b32.xlu0 %v363, 104
    %v1236 = vpop.permute.xlu0 %1235
    %1237 = vrot.lane.b32.xlu0 %v348, 72
    %v1238 = vpop.permute.xlu0 %1237
    %1239 = vrot.lane.b32.xlu0 %v351, 72
    %v1240 = vpop.permute.xlu0 %1239
    %1241 = vrot.lane.b32.xlu0 %v354, 72
    %v1242 = vpop.permute.xlu0 %1241
    %1243 = vrot.lane.b32.xlu0 %v357, 72
    %v1244 = vpop.permute.xlu0 %1243
    %1245 = vrot.lane.b32.xlu0 %v360, 72
    %v1246 = vpop.permute.xlu0 %1245
    %1247 = vrot.lane.b32.xlu0 %v363, 72
    %v1248 = vpop.permute.xlu0 %1247
    %v1249 = vsel %vm387, %v1226, 0
    %v1251 = vsel %vm387, %v1228, 0
    %v1253 = vsel %vm387, %v1230, 0
    %v1255 = vsel %vm387, %v1232, 0
    %v1257 = vsel %vm387, %v1234, 0
    %v1259 = vsel %vm387, %v1236, 0
    %v1261 = vsel %vm387, %v1238, 0
    %v1263 = vsel %vm387, %v1240, 0
    %v1265 = vsel %vm387, %v1242, 0
    %v1267 = vsel %vm387, %v1244, 0
    %v1269 = vsel %vm387, %v1246, 0
    %v1271 = vsel %vm387, %v1248, 0
    %1273 = vmatpush.xpose.msra.mxu0 0.0
    %1274 = vmatpush.xpose.msra.mxu0 0.0
    %1275 = vmatpush.xpose.msra.mxu0 0.0
    %1276 = vmatpush.xpose.msra.mxu0 0.0
    %1277 = vmatpush.xpose.msra.mxu0 0.0
    %1278 = vmatpush.xpose.msra.mxu0 0.0
    %1279 = vmatpush.xpose.msra.mxu0 0.0
    %1280 = vmatpush.xpose.msra.mxu0 0.0
    %1281 = vmatpush.xpose.msra.mxu0 0.0
    %1282 = vmatpush.xpose.msra.mxu0 0.0
    %1283 = vmatpush.xpose.msra.mxu0 %v1271
    %1284 = vmatpush.xpose.msra.mxu0 %v1269
    %1285 = vmatpush.xpose.msra.mxu0 %v1267
    %1286 = vmatpush.xpose.msra.mxu0 %v1265
    %1287 = vmatpush.xpose.msra.mxu0 %v1263
    %1288 = vmatpush.xpose.msra.mxu0 %v1261
    %1289 = vmatmul.f32.gmra.mxu0 %v1249
    %v1290 = vpop.f32.mrf.mxu0
    %v1291 = vadd.f32 0.0, %v1290
    %1292 = vmatmul.f32.gmra.mxu0 %v1251
    %v1293 = vpop.f32.mrf.mxu0
    %v1294 = vadd.f32 0.0, %v1293
    %1295 = vmatmul.f32.gmra.mxu0 %v1253
    %v1296 = vpop.f32.mrf.mxu0
    %v1297 = vadd.f32 0.0, %v1296
    %1298 = vmatmul.f32.gmra.mxu0 %v1255
    %v1299 = vpop.f32.mrf.mxu0
    %v1300 = vadd.f32 0.0, %v1299
    %1301 = vmatmul.f32.gmra.mxu0 %v1257
    %v1302 = vpop.f32.mrf.mxu0
    %v1303 = vadd.f32 0.0, %v1302
    %1304 = vmatmul.f32.gmra.mxu0 %v1259
    %v1305 = vpop.f32.mrf.mxu0
    %v1306 = vadd.f32 0.0, %v1305
    %1307 = vdwg.mxu0
    %v1308 = vmul.f32 %v1291, 0.35355338
    %v1309 = vmul.f32 %v1294, 0.35355338
    %v1310 = vmul.f32 %v1297, 0.35355338
    %v1311 = vmul.f32 %v1300, 0.35355338
    %v1312 = vmul.f32 %v1303, 0.35355338
    %v1313 = vmul.f32 %v1306, 0.35355338
    %v1314 = vadd.f32 %v1308, %v138
    %v1315 = vadd.f32 %v1309, %v139
    %v1316 = vadd.f32 %v1310, %v140
    %v1317 = vadd.f32 %v1311, %v141
    %v1318 = vadd.f32 %v1312, %v142
    %v1319 = vadd.f32 %v1313, %v143
    %v1320 = vsel %vm84, %v1314, -inf
    %1321 = vmax.xlane.f32.xlu0 %v1320
    %v1322 = vpop.xlane.xlu0 %1321
    %v1323 = vsel %vm84, %v1315, -inf
    %1324 = vmax.xlane.f32.xlu0 %v1323
    %v1325 = vpop.xlane.xlu0 %1324
    %v1326 = vsel %vm84, %v1316, -inf
    %1327 = vmax.xlane.f32.xlu0 %v1326
    %v1328 = vpop.xlane.xlu0 %1327
    %v1329 = vsel %vm84, %v1317, -inf
    %1330 = vmax.xlane.f32.xlu0 %v1329
    %v1331 = vpop.xlane.xlu0 %1330
    %v1332 = vsel %vm84, %v1318, -inf
    %1333 = vmax.xlane.f32.xlu0 %v1332
    %v1334 = vpop.xlane.xlu0 %1333
    %v1335 = vsel %vm84, %v1319, -inf
    %1336 = vmax.xlane.f32.xlu0 %v1335
    %v1337 = vpop.xlane.xlu0 %1336
    %v1338 = vsub.f32 %v1314, %v1322
    %v1339 = vsub.f32 %v1315, %v1325
    %v1340 = vsub.f32 %v1316, %v1328
    %v1341 = vsub.f32 %v1317, %v1331
    %v1342 = vsub.f32 %v1318, %v1334
    %v1343 = vsub.f32 %v1319, %v1337
    %v1344 = vmul.f32 %v1338, 1.442695
    %v1345 = vpow.pop %v1344
    %v1346 = vmul.f32 %v1339, 1.442695
    %v1347 = vpow.pop %v1346
    %v1348 = vmul.f32 %v1340, 1.442695
    %v1349 = vpow.pop %v1348
    %v1350 = vmul.f32 %v1341, 1.442695
    %v1351 = vpow.pop %v1350
    %v1352 = vmul.f32 %v1342, 1.442695
    %v1353 = vpow.pop %v1352
    %v1354 = vmul.f32 %v1343, 1.442695
    %v1355 = vpow.pop %v1354
    %v1356 = vsel %vm84, %v1345, 0.0
    %1357 = vadd.xlane.f32.xlu0 %v1356
    %v1358 = vpop.xlane.xlu0 %1357
    %v1359 = vsel %vm84, %v1347, 0.0
    %1360 = vadd.xlane.f32.xlu0 %v1359
    %v1361 = vpop.xlane.xlu0 %1360
    %v1362 = vsel %vm84, %v1349, 0.0
    %1363 = vadd.xlane.f32.xlu0 %v1362
    %v1364 = vpop.xlane.xlu0 %1363
    %v1365 = vsel %vm84, %v1351, 0.0
    %1366 = vadd.xlane.f32.xlu0 %v1365
    %v1367 = vpop.xlane.xlu0 %1366
    %v1368 = vsel %vm84, %v1353, 0.0
    %1369 = vadd.xlane.f32.xlu0 %v1368
    %v1370 = vpop.xlane.xlu0 %1369
    %v1371 = vsel %vm84, %v1355, 0.0
    %1372 = vadd.xlane.f32.xlu0 %v1371
    %v1373 = vpop.xlane.xlu0 %1372
    %v1374 = vrcp.pop %v1358
    %v1375 = vrcp.pop %v1361
    %v1376 = vrcp.pop %v1364
    %v1377 = vrcp.pop %v1367
    %v1378 = vrcp.pop %v1370
    %v1379 = vrcp.pop %v1373
    %v1380 = vmul.f32 %v1345, %v1374
    %v1381 = vmul.f32 %v1347, %v1375
    %v1382 = vmul.f32 %v1349, %v1376
    %v1383 = vmul.f32 %v1351, %v1377
    %v1384 = vmul.f32 %v1353, %v1378
    %v1385 = vmul.f32 %v1355, %v1379
    %1386 = vrot.lane.b32.xlu0 %v348, 40
    %v1387 = vpop.permute.xlu0 %1386
    %1388 = vrot.lane.b32.xlu0 %v351, 40
    %v1389 = vpop.permute.xlu0 %1388
    %1390 = vrot.lane.b32.xlu0 %v354, 40
    %v1391 = vpop.permute.xlu0 %1390
    %1392 = vrot.lane.b32.xlu0 %v357, 40
    %v1393 = vpop.permute.xlu0 %1392
    %1394 = vrot.lane.b32.xlu0 %v360, 40
    %v1395 = vpop.permute.xlu0 %1394
    %1396 = vrot.lane.b32.xlu0 %v363, 40
    %v1397 = vpop.permute.xlu0 %1396
    %v1405 = vsel %vm84, %v1380, 0
    %v1408 = vsel %vm84, %v1381, 0
    %v1411 = vsel %vm84, %v1382, 0
    %v1414 = vsel %vm84, %v1383, 0
    %v1417 = vsel %vm84, %v1384, 0
    %v1420 = vsel %vm84, %v1385, 0
    %1422 = vmatpush.msra.mxu0 0.0
    %1423 = vmatpush.msra.mxu0 0.0
    %1424 = vmatpush.msra.mxu0 0.0
    %1425 = vmatpush.msra.mxu0 0.0
    %1426 = vmatpush.msra.mxu0 0.0
    %1427 = vmatpush.msra.mxu0 0.0
    %1428 = vmatpush.msra.mxu0 0.0
    %1429 = vmatpush.msra.mxu0 0.0
    %1430 = vmatpush.msra.mxu0 0.0
    %1431 = vmatpush.msra.mxu0 0.0
    %1432 = vmatpush.msra.mxu0 %v1397
    %1433 = vmatpush.msra.mxu0 %v1395
    %1434 = vmatpush.msra.mxu0 %v1393
    %1435 = vmatpush.msra.mxu0 %v1391
    %1436 = vmatpush.msra.mxu0 %v1389
    %1437 = vmatpush.msra.mxu0 %v1387
    %1438 = vmatmul.f32.gmra.mxu0 %v1405
    %v1439 = vpop.f32.mrf.mxu0
    %v1440 = vadd.f32 0.0, %v1439
    %1441 = vmatmul.f32.gmra.mxu0 %v1408
    %v1442 = vpop.f32.mrf.mxu0
    %v1443 = vadd.f32 0.0, %v1442
    %1444 = vmatmul.f32.gmra.mxu0 %v1411
    %v1445 = vpop.f32.mrf.mxu0
    %v1446 = vadd.f32 0.0, %v1445
    %1447 = vmatmul.f32.gmra.mxu0 %v1414
    %v1448 = vpop.f32.mrf.mxu0
    %v1449 = vadd.f32 0.0, %v1448
    %1450 = vmatmul.f32.gmra.mxu0 %v1417
    %v1451 = vpop.f32.mrf.mxu0
    %v1452 = vadd.f32 0.0, %v1451
    %1453 = vmatmul.f32.gmra.mxu0 %v1420
    %v1454 = vpop.f32.mrf.mxu0
    %v1455 = vadd.f32 0.0, %v1454
    %1456 = vdwg.mxu0
    %v1458 = vsel %vm387, %v1440, 0
    %v1461 = vsel %vm387, %v1443, 0
    %v1464 = vsel %vm387, %v1446, 0
    %v1467 = vsel %vm387, %v1449, 0
    %v1470 = vsel %vm387, %v1452, 0
    %v1473 = vsel %vm387, %v1455, 0
    %1475 = vmatpush.msra.mxu0 0.0
    %1476 = vmatpush.msra.mxu0 0.0
    %1477 = vmatpush.msra.mxu0 0.0
    %1478 = vmatpush.msra.mxu0 0.0
    %1479 = vmatpush.msra.mxu0 0.0
    %1480 = vmatpush.msra.mxu0 0.0
    %1481 = vmatpush.msra.mxu0 0.0
    %1482 = vmatpush.msra.mxu0 0.0
    %1483 = vmatpush.msra.mxu0 0.0
    %1484 = vmatpush.msra.mxu0 0.0
    %1485 = vmatpush.msra.mxu0 0.0
    %1486 = vmatpush.msra.mxu0 0.0
    %1487 = vmatpush.msra.mxu0 0.0
    %1488 = vmatpush.msra.mxu0 0.0
    %1489 = vmatpush.msra.mxu0 0.0
    %1490 = vmatpush.msra.mxu0 %v368
    %1491 = vmatmul.f32.gmra.mxu0 %v1458
    %v1492 = vpop.f32.mrf.mxu0
    %v1493 = vadd.f32 0.0, %v1492
    %1494 = vmatmul.f32.gmra.mxu0 %v1461
    %v1495 = vpop.f32.mrf.mxu0
    %v1496 = vadd.f32 0.0, %v1495
    %1497 = vmatmul.f32.gmra.mxu0 %v1464
    %v1498 = vpop.f32.mrf.mxu0
    %v1499 = vadd.f32 0.0, %v1498
    %1500 = vmatmul.f32.gmra.mxu0 %v1467
    %v1501 = vpop.f32.mrf.mxu0
    %v1502 = vadd.f32 0.0, %v1501
    %1503 = vmatmul.f32.gmra.mxu0 %v1470
    %v1504 = vpop.f32.mrf.mxu0
    %v1505 = vadd.f32 0.0, %v1504
    %1506 = vmatmul.f32.gmra.mxu0 %v1473
    %v1507 = vpop.f32.mrf.mxu0
    %v1508 = vadd.f32 0.0, %v1507
    %1509 = vdwg.mxu0
    %v1510 = vadd.f32 %v1219, %v1493
    %v1511 = vadd.f32 %v1220, %v1496
    %v1512 = vadd.f32 %v1221, %v1499
    %v1513 = vadd.f32 %v1222, %v1502
    %v1514 = vadd.f32 %v1223, %v1505
    %v1515 = vadd.f32 %v1224, %v1508
    %v1516 = vld [vmem:[%s9] sm:$0x1]
    %v1518 = vperm.slane %v1516, 0
    %v1520 = vadd.f32 %v1510, %v1518
    %v1521 = vadd.f32 %v1511, %v1518
    %v1522 = vadd.f32 %v1512, %v1518
    %v1523 = vadd.f32 %v1513, %v1518
    %v1524 = vadd.f32 %v1514, %v1518
    %v1525 = vadd.f32 %v1515, %v1518
    %v1526 = vadd.f32 %v1520, %v121
    %v1527 = vadd.f32 %v1521, %v124
    %v1528 = vadd.f32 %v1522, %v127
    %v1529 = vadd.f32 %v1523, %v130
    %v1530 = vadd.f32 %v1524, %v133
    %v1531 = vadd.f32 %v1525, %v136
    %v1532 = vld [vmem:[%s10] sm:$0x1]
    %v1533 = vld [vmem:[%s11] sm:$0x1]
    %v1534 = vsel %vm146, %v1526, 0.0
    %1535 = vadd.xlane.f32.xlu0 %v1534
    %v1536 = vpop.xlane.xlu0 %1535
    %v1537 = vsel %vm146, %v1527, 0.0
    %1538 = vadd.xlane.f32.xlu0 %v1537
    %v1539 = vpop.xlane.xlu0 %1538
    %v1540 = vsel %vm146, %v1528, 0.0
    %1541 = vadd.xlane.f32.xlu0 %v1540
    %v1542 = vpop.xlane.xlu0 %1541
    %v1543 = vsel %vm146, %v1529, 0.0
    %1544 = vadd.xlane.f32.xlu0 %v1543
    %v1545 = vpop.xlane.xlu0 %1544
    %v1546 = vsel %vm146, %v1530, 0.0
    %1547 = vadd.xlane.f32.xlu0 %v1546
    %v1548 = vpop.xlane.xlu0 %1547
    %v1549 = vsel %vm146, %v1531, 0.0
    %1550 = vadd.xlane.f32.xlu0 %v1549
    %v1551 = vpop.xlane.xlu0 %1550
    %v1552 = vmul.f32 %v1536, %v171
    %v1553 = vmul.f32 %v1539, %v171
    %v1554 = vmul.f32 %v1542, %v171
    %v1555 = vmul.f32 %v1545, %v171
    %v1556 = vmul.f32 %v1548, %v171
    %v1557 = vmul.f32 %v1551, %v171
    %v1558 = vsub.f32 %v1526, %v1552
    %v1559 = vsub.f32 %v1527, %v1553
    %v1560 = vsub.f32 %v1528, %v1554
    %v1561 = vsub.f32 %v1529, %v1555
    %v1562 = vsub.f32 %v1530, %v1556
    %v1563 = vsub.f32 %v1531, %v1557
    %v1564 = vmul.f32 %v1558, %v1558
    %v1565 = vmul.f32 %v1559, %v1559
    %v1566 = vmul.f32 %v1560, %v1560
    %v1567 = vmul.f32 %v1561, %v1561
    %v1568 = vmul.f32 %v1562, %v1562
    %v1569 = vmul.f32 %v1563, %v1563
    %v1570 = vsel %vm146, %v1564, 0.0
    %1571 = vadd.xlane.f32.xlu0 %v1570
    %v1572 = vpop.xlane.xlu0 %1571
    %v1573 = vsel %vm146, %v1565, 0.0
    %1574 = vadd.xlane.f32.xlu0 %v1573
    %v1575 = vpop.xlane.xlu0 %1574
    %v1576 = vsel %vm146, %v1566, 0.0
    %1577 = vadd.xlane.f32.xlu0 %v1576
    %v1578 = vpop.xlane.xlu0 %1577
    %v1579 = vsel %vm146, %v1567, 0.0
    %1580 = vadd.xlane.f32.xlu0 %v1579
    %v1581 = vpop.xlane.xlu0 %1580
    %v1582 = vsel %vm146, %v1568, 0.0
    %1583 = vadd.xlane.f32.xlu0 %v1582
    %v1584 = vpop.xlane.xlu0 %1583
    %v1585 = vsel %vm146, %v1569, 0.0
    %1586 = vadd.xlane.f32.xlu0 %v1585
    %v1587 = vpop.xlane.xlu0 %1586
    %v1588 = vmul.f32 %v1572, %v171
    %v1589 = vmul.f32 %v1575, %v171
    %v1590 = vmul.f32 %v1578, %v171
    %v1591 = vmul.f32 %v1581, %v171
    %v1592 = vmul.f32 %v1584, %v171
    %v1593 = vmul.f32 %v1587, %v171
    %v1594 = vadd.f32 %v1588, 1e-06
    %v1595 = vadd.f32 %v1589, 1e-06
    %v1596 = vadd.f32 %v1590, 1e-06
    %v1597 = vadd.f32 %v1591, 1e-06
    %v1598 = vadd.f32 %v1592, 1e-06
    %v1599 = vadd.f32 %v1593, 1e-06
    %v1600 = vrsqrt.pop %v1594
    %v1601 = vmul.f32 %v1600, %v1594
    %v1602 = vmul.f32 %v1601, %v1600
    %v1603 = vmul.f32 0.5, %v1602
    %v1604 = vsub.f32 1.5, %v1603
    %v1605 = vmul.f32 %v1600, %v1604
    %vm1606 = vweird.f32 %v1594
    %vm1607 = vweird.f32 %v1600
    %vm1608 = vmor %vm1606, %vm1607
    %v1609 = vsel %vm1608, %v1600, %v1605
    %v1610 = vrsqrt.pop %v1595
    %v1611 = vmul.f32 %v1610, %v1595
    %v1612 = vmul.f32 %v1611, %v1610
    %v1613 = vmul.f32 0.5, %v1612
    %v1614 = vsub.f32 1.5, %v1613
    %v1615 = vmul.f32 %v1610, %v1614
    %vm1616 = vweird.f32 %v1595
    %vm1617 = vweird.f32 %v1610
    %vm1618 = vmor %vm1616, %vm1617
    %v1619 = vsel %vm1618, %v1610, %v1615
    %v1620 = vrsqrt.pop %v1596
    %v1621 = vmul.f32 %v1620, %v1596
    %v1622 = vmul.f32 %v1621, %v1620
    %v1623 = vmul.f32 0.5, %v1622
    %v1624 = vsub.f32 1.5, %v1623
    %v1625 = vmul.f32 %v1620, %v1624
    %vm1626 = vweird.f32 %v1596
    %vm1627 = vweird.f32 %v1620
    %vm1628 = vmor %vm1626, %vm1627
    %v1629 = vsel %vm1628, %v1620, %v1625
    %v1630 = vrsqrt.pop %v1597
    %v1631 = vmul.f32 %v1630, %v1597
    %v1632 = vmul.f32 %v1631, %v1630
    %v1633 = vmul.f32 0.5, %v1632
    %v1634 = vsub.f32 1.5, %v1633
    %v1635 = vmul.f32 %v1630, %v1634
    %vm1636 = vweird.f32 %v1597
    %vm1637 = vweird.f32 %v1630
    %vm1638 = vmor %vm1636, %vm1637
    %v1639 = vsel %vm1638, %v1630, %v1635
    %v1640 = vrsqrt.pop %v1598
    %v1641 = vmul.f32 %v1640, %v1598
    %v1642 = vmul.f32 %v1641, %v1640
    %v1643 = vmul.f32 0.5, %v1642
    %v1644 = vsub.f32 1.5, %v1643
    %v1645 = vmul.f32 %v1640, %v1644
    %vm1646 = vweird.f32 %v1598
    %vm1647 = vweird.f32 %v1640
    %vm1648 = vmor %vm1646, %vm1647
    %v1649 = vsel %vm1648, %v1640, %v1645
    %v1650 = vrsqrt.pop %v1599
    %v1651 = vmul.f32 %v1650, %v1599
    %v1652 = vmul.f32 %v1651, %v1650
    %v1653 = vmul.f32 0.5, %v1652
    %v1654 = vsub.f32 1.5, %v1653
    %v1655 = vmul.f32 %v1650, %v1654
    %vm1656 = vweird.f32 %v1599
    %vm1657 = vweird.f32 %v1650
    %vm1658 = vmor %vm1656, %vm1657
    %v1659 = vsel %vm1658, %v1650, %v1655
    %v1660 = vmul.f32 %v1558, %v1609
    %v1661 = vmul.f32 %v1559, %v1619
    %v1662 = vmul.f32 %v1560, %v1629
    %v1663 = vmul.f32 %v1561, %v1639
    %v1664 = vmul.f32 %v1562, %v1649
    %v1665 = vmul.f32 %v1563, %v1659
    %v1667 = vperm.slane %v1532, 0
    %v1669 = vmul.f32 %v1660, %v1667
    %v1670 = vmul.f32 %v1661, %v1667
    %v1671 = vmul.f32 %v1662, %v1667
    %v1672 = vmul.f32 %v1663, %v1667
    %v1673 = vmul.f32 %v1664, %v1667
    %v1674 = vmul.f32 %v1665, %v1667
    %v1676 = vperm.slane %v1533, 0
    %v1678 = vadd.f32 %v1669, %v1676
    %v1679 = vadd.f32 %v1670, %v1676
    %v1680 = vadd.f32 %v1671, %v1676
    %v1681 = vadd.f32 %v1672, %v1676
    %v1682 = vadd.f32 %v1673, %v1676
    %v1683 = vadd.f32 %v1674, %v1676
    %v1684 = vld [vmem:[%s12] sm:$0xff]
    %v1685 = vld [vmem:[%s12 + $0x8] sm:$0xff]
    %v1686 = vld [vmem:[%s12 + $0x10] sm:$0xff]
    %v1687 = vld [vmem:[%s12 + $0x18] sm:$0xff]
    %v1688 = vld [vmem:[%s13] sm:$0x1]
    %v1690 = vperm.slane %v1688, 0
    %v1693 = vsel %vm146, %v1678, 0
    %v1696 = vsel %vm146, %v1679, 0
    %v1699 = vsel %vm146, %v1680, 0
    %v1702 = vsel %vm146, %v1681, 0
    %v1705 = vsel %vm146, %v1682, 0
    %v1708 = vsel %vm146, %v1683, 0
    %1710 = vmatpush.msra.mxu0 0.0
    %1711 = vmatpush.msra.mxu0 0.0
    %1712 = vmatpush.msra.mxu0 0.0
    %1713 = vmatpush.msra.mxu0 0.0
    %1714 = vmatpush.msra.mxu0 0.0
    %1715 = vmatpush.msra.mxu0 0.0
    %1716 = vmatpush.msra.mxu0 0.0
    %1717 = vmatpush.msra.mxu0 0.0
    %1718 = vmatpush.msra.mxu0 0.0
    %1719 = vmatpush.msra.mxu0 0.0
    %1720 = vmatpush.msra.mxu0 0.0
    %1721 = vmatpush.msra.mxu0 0.0
    %1722 = vmatpush.msra.mxu0 %v1687
    %1723 = vmatpush.msra.mxu0 %v1686
    %1724 = vmatpush.msra.mxu0 %v1685
    %1725 = vmatpush.msra.mxu0 %v1684
    %1726 = vmatmul.f32.gmra.mxu0 %v1693
    %v1727 = vpop.f32.mrf.mxu0
    %v1728 = vadd.f32 %v1690, %v1727
    %1729 = vmatmul.f32.gmra.mxu0 %v1696
    %v1730 = vpop.f32.mrf.mxu0
    %v1731 = vadd.f32 %v1690, %v1730
    %1732 = vmatmul.f32.gmra.mxu0 %v1699
    %v1733 = vpop.f32.mrf.mxu0
    %v1734 = vadd.f32 %v1690, %v1733
    %1735 = vmatmul.f32.gmra.mxu0 %v1702
    %v1736 = vpop.f32.mrf.mxu0
    %v1737 = vadd.f32 %v1690, %v1736
    %1738 = vmatmul.f32.gmra.mxu0 %v1705
    %v1739 = vpop.f32.mrf.mxu0
    %v1740 = vadd.f32 %v1690, %v1739
    %1741 = vmatmul.f32.gmra.mxu0 %v1708
    %v1742 = vpop.f32.mrf.mxu0
    %v1743 = vadd.f32 %v1690, %v1742
    %1744 = vdwg.mxu0
    %v1745 = vmul.f32 %v1728, %v1728
    %v1746 = vmul.f32 %v1731, %v1731
    %v1747 = vmul.f32 %v1734, %v1734
    %v1748 = vmul.f32 %v1737, %v1737
    %v1749 = vmul.f32 %v1740, %v1740
    %v1750 = vmul.f32 %v1743, %v1743
    %v1751 = vmul.f32 %v1728, %v1745
    %v1752 = vmul.f32 %v1731, %v1746
    %v1753 = vmul.f32 %v1734, %v1747
    %v1754 = vmul.f32 %v1737, %v1748
    %v1755 = vmul.f32 %v1740, %v1749
    %v1756 = vmul.f32 %v1743, %v1750
    %v1757 = vmul.f32 %v1751, 0.044715
    %v1758 = vmul.f32 %v1752, 0.044715
    %v1759 = vmul.f32 %v1753, 0.044715
    %v1760 = vmul.f32 %v1754, 0.044715
    %v1761 = vmul.f32 %v1755, 0.044715
    %v1762 = vmul.f32 %v1756, 0.044715
    %v1763 = vadd.f32 %v1728, %v1757
    %v1764 = vadd.f32 %v1731, %v1758
    %v1765 = vadd.f32 %v1734, %v1759
    %v1766 = vadd.f32 %v1737, %v1760
    %v1767 = vadd.f32 %v1740, %v1761
    %v1768 = vadd.f32 %v1743, %v1762
    %v1769 = vmul.f32 %v1763, 0.7978846
    %v1770 = vmul.f32 %v1764, 0.7978846
    %v1771 = vmul.f32 %v1765, 0.7978846
    %v1772 = vmul.f32 %v1766, 0.7978846
    %v1773 = vmul.f32 %v1767, 0.7978846
    %v1774 = vmul.f32 %v1768, 0.7978846
    %v1775 = vtanh.pop %v1769
    %v1776 = vtanh.pop %v1770
    %v1777 = vtanh.pop %v1771
    %v1778 = vtanh.pop %v1772
    %v1779 = vtanh.pop %v1773
    %v1780 = vtanh.pop %v1774
    %v1781 = vadd.f32 %v1775, 1.0
    %v1782 = vadd.f32 %v1776, 1.0
    %v1783 = vadd.f32 %v1777, 1.0
    %v1784 = vadd.f32 %v1778, 1.0
    %v1785 = vadd.f32 %v1779, 1.0
    %v1786 = vadd.f32 %v1780, 1.0
    %v1787 = vmul.f32 %v1781, 0.5
    %v1788 = vmul.f32 %v1782, 0.5
    %v1789 = vmul.f32 %v1783, 0.5
    %v1790 = vmul.f32 %v1784, 0.5
    %v1791 = vmul.f32 %v1785, 0.5
    %v1792 = vmul.f32 %v1786, 0.5
    %v1793 = vmul.f32 %v1728, %v1787
    %v1794 = vmul.f32 %v1731, %v1788
    %v1795 = vmul.f32 %v1734, %v1789
    %v1796 = vmul.f32 %v1737, %v1790
    %v1797 = vmul.f32 %v1740, %v1791
    %v1798 = vmul.f32 %v1743, %v1792
    %v1799 = vld [vmem:[%s14] sm:$0xff]
    %v1800 = vld [vmem:[%s14 + $0x8] sm:$0xff]
    %v1801 = vld [vmem:[%s14 + $0x10] sm:$0xff]
    %v1802 = vld [vmem:[%s14 + $0x18] sm:$0xff]
    %v1803 = vld [vmem:[%s14 + $0x20] sm:$0xff]
    %v1804 = vld [vmem:[%s14 + $0x28] sm:$0xff]
    %v1805 = vld [vmem:[%s14 + $0x30] sm:$0xff]
    %v1806 = vld [vmem:[%s14 + $0x38] sm:$0xff]
    %v1807 = vld [vmem:[%s14 + $0x40] sm:$0xff]
    %v1808 = vld [vmem:[%s14 + $0x48] sm:$0xff]
    %v1809 = vld [vmem:[%s14 + $0x50] sm:$0xff]
    %v1810 = vld [vmem:[%s14 + $0x58] sm:$0xff]
    %v1811 = vld [vmem:[%s14 + $0x60] sm:$0xff]
    %v1812 = vld [vmem:[%s14 + $0x68] sm:$0xff]
    %v1813 = vld [vmem:[%s14 + $0x70] sm:$0xff]
    %v1814 = vld [vmem:[%s14 + $0x78] sm:$0xff]
    %v1815 = vld [vmem:[%s15] sm:$0x1]
    %v1817 = vperm.slane %v1815, 0
    %1819 = vmatpush.msra.mxu0 %v1814
    %1820 = vmatpush.msra.mxu0 %v1813
    %1821 = vmatpush.msra.mxu0 %v1812
    %1822 = vmatpush.msra.mxu0 %v1811
    %1823 = vmatpush.msra.mxu0 %v1810
    %1824 = vmatpush.msra.mxu0 %v1809
    %1825 = vmatpush.msra.mxu0 %v1808
    %1826 = vmatpush.msra.mxu0 %v1807
    %1827 = vmatpush.msra.mxu0 %v1806
    %1828 = vmatpush.msra.mxu0 %v1805
    %1829 = vmatpush.msra.mxu0 %v1804
    %1830 = vmatpush.msra.mxu0 %v1803
    %1831 = vmatpush.msra.mxu0 %v1802
    %1832 = vmatpush.msra.mxu0 %v1801
    %1833 = vmatpush.msra.mxu0 %v1800
    %1834 = vmatpush.msra.mxu0 %v1799
    %1835 = vmatmul.f32.gmra.mxu0 %v1793
    %v1836 = vpop.f32.mrf.mxu0
    %v1837 = vadd.f32 %v1817, %v1836
    %1838 = vmatmul.f32.gmra.mxu0 %v1794
    %v1839 = vpop.f32.mrf.mxu0
    %v1840 = vadd.f32 %v1817, %v1839
    %1841 = vmatmul.f32.gmra.mxu0 %v1795
    %v1842 = vpop.f32.mrf.mxu0
    %v1843 = vadd.f32 %v1817, %v1842
    %1844 = vmatmul.f32.gmra.mxu0 %v1796
    %v1845 = vpop.f32.mrf.mxu0
    %v1846 = vadd.f32 %v1817, %v1845
    %1847 = vmatmul.f32.gmra.mxu0 %v1797
    %v1848 = vpop.f32.mrf.mxu0
    %v1849 = vadd.f32 %v1817, %v1848
    %1850 = vmatmul.f32.gmra.mxu0 %v1798
    %v1851 = vpop.f32.mrf.mxu0
    %v1852 = vadd.f32 %v1817, %v1851
    %1853 = vdwg.mxu0
    %v1854 = vadd.f32 %v1837, %v1526
    %v1855 = vadd.f32 %v1840, %v1527
    %v1856 = vadd.f32 %v1843, %v1528
    %v1857 = vadd.f32 %v1846, %v1529
    %v1858 = vadd.f32 %v1849, %v1530
    %v1859 = vadd.f32 %v1852, %v1531
    %s1860 = scalar_lea.vmem %s4, 1
    %v1861 = vld [vmem:[%s1860] sm:$0x1]
    %s1862 = scalar_lea.vmem %s5, 1
    %v1863 = vld [vmem:[%s1862] sm:$0x1]
    %v1864 = vsel %vm146, %v1854, 0.0
    %1865 = vadd.xlane.f32.xlu0 %v1864
    %v1866 = vpop.xlane.xlu0 %1865
    %v1867 = vsel %vm146, %v1855, 0.0
    %1868 = vadd.xlane.f32.xlu0 %v1867
    %v1869 = vpop.xlane.xlu0 %1868
    %v1870 = vsel %vm146, %v1856, 0.0
    %1871 = vadd.xlane.f32.xlu0 %v1870
    %v1872 = vpop.xlane.xlu0 %1871
    %v1873 = vsel %vm146, %v1857, 0.0
    %1874 = vadd.xlane.f32.xlu0 %v1873
    %v1875 = vpop.xlane.xlu0 %1874
    %v1876 = vsel %vm146, %v1858, 0.0
    %1877 = vadd.xlane.f32.xlu0 %v1876
    %v1878 = vpop.xlane.xlu0 %1877
    %v1879 = vsel %vm146, %v1859, 0.0
    %1880 = vadd.xlane.f32.xlu0 %v1879
    %v1881 = vpop.xlane.xlu0 %1880
    %v1882 = vmul.f32 %v1866, %v171
    %v1883 = vmul.f32 %v1869, %v171
    %v1884 = vmul.f32 %v1872, %v171
    %v1885 = vmul.f32 %v1875, %v171
    %v1886 = vmul.f32 %v1878, %v171
    %v1887 = vmul.f32 %v1881, %v171
    %v1888 = vsub.f32 %v1854, %v1882
    %v1889 = vsub.f32 %v1855, %v1883
    %v1890 = vsub.f32 %v1856, %v1884
    %v1891 = vsub.f32 %v1857, %v1885
    %v1892 = vsub.f32 %v1858, %v1886
    %v1893 = vsub.f32 %v1859, %v1887
    %v1894 = vmul.f32 %v1888, %v1888
    %v1895 = vmul.f32 %v1889, %v1889
    %v1896 = vmul.f32 %v1890, %v1890
    %v1897 = vmul.f32 %v1891, %v1891
    %v1898 = vmul.f32 %v1892, %v1892
    %v1899 = vmul.f32 %v1893, %v1893
    %v1900 = vsel %vm146, %v1894, 0.0
    %1901 = vadd.xlane.f32.xlu0 %v1900
    %v1902 = vpop.xlane.xlu0 %1901
    %v1903 = vsel %vm146, %v1895, 0.0
    %1904 = vadd.xlane.f32.xlu0 %v1903
    %v1905 = vpop.xlane.xlu0 %1904
    %v1906 = vsel %vm146, %v1896, 0.0
    %1907 = vadd.xlane.f32.xlu0 %v1906
    %v1908 = vpop.xlane.xlu0 %1907
    %v1909 = vsel %vm146, %v1897, 0.0
    %1910 = vadd.xlane.f32.xlu0 %v1909
    %v1911 = vpop.xlane.xlu0 %1910
    %v1912 = vsel %vm146, %v1898, 0.0
    %1913 = vadd.xlane.f32.xlu0 %v1912
    %v1914 = vpop.xlane.xlu0 %1913
    %v1915 = vsel %vm146, %v1899, 0.0
    %1916 = vadd.xlane.f32.xlu0 %v1915
    %v1917 = vpop.xlane.xlu0 %1916
    %v1918 = vmul.f32 %v1902, %v171
    %v1919 = vmul.f32 %v1905, %v171
    %v1920 = vmul.f32 %v1908, %v171
    %v1921 = vmul.f32 %v1911, %v171
    %v1922 = vmul.f32 %v1914, %v171
    %v1923 = vmul.f32 %v1917, %v171
    %v1924 = vadd.f32 %v1918, 1e-06
    %v1925 = vadd.f32 %v1919, 1e-06
    %v1926 = vadd.f32 %v1920, 1e-06
    %v1927 = vadd.f32 %v1921, 1e-06
    %v1928 = vadd.f32 %v1922, 1e-06
    %v1929 = vadd.f32 %v1923, 1e-06
    %v1930 = vrsqrt.pop %v1924
    %v1931 = vmul.f32 %v1930, %v1924
    %v1932 = vmul.f32 %v1931, %v1930
    %v1933 = vmul.f32 0.5, %v1932
    %v1934 = vsub.f32 1.5, %v1933
    %v1935 = vmul.f32 %v1930, %v1934
    %vm1936 = vweird.f32 %v1924
    %vm1937 = vweird.f32 %v1930
    %vm1938 = vmor %vm1936, %vm1937
    %v1939 = vsel %vm1938, %v1930, %v1935
    %v1940 = vrsqrt.pop %v1925
    %v1941 = vmul.f32 %v1940, %v1925
    %v1942 = vmul.f32 %v1941, %v1940
    %v1943 = vmul.f32 0.5, %v1942
    %v1944 = vsub.f32 1.5, %v1943
    %v1945 = vmul.f32 %v1940, %v1944
    %vm1946 = vweird.f32 %v1925
    %vm1947 = vweird.f32 %v1940
    %vm1948 = vmor %vm1946, %vm1947
    %v1949 = vsel %vm1948, %v1940, %v1945
    %v1950 = vrsqrt.pop %v1926
    %v1951 = vmul.f32 %v1950, %v1926
    %v1952 = vmul.f32 %v1951, %v1950
    %v1953 = vmul.f32 0.5, %v1952
    %v1954 = vsub.f32 1.5, %v1953
    %v1955 = vmul.f32 %v1950, %v1954
    %vm1956 = vweird.f32 %v1926
    %vm1957 = vweird.f32 %v1950
    %vm1958 = vmor %vm1956, %vm1957
    %v1959 = vsel %vm1958, %v1950, %v1955
    %v1960 = vrsqrt.pop %v1927
    %v1961 = vmul.f32 %v1960, %v1927
    %v1962 = vmul.f32 %v1961, %v1960
    %v1963 = vmul.f32 0.5, %v1962
    %v1964 = vsub.f32 1.5, %v1963
    %v1965 = vmul.f32 %v1960, %v1964
    %vm1966 = vweird.f32 %v1927
    %vm1967 = vweird.f32 %v1960
    %vm1968 = vmor %vm1966, %vm1967
    %v1969 = vsel %vm1968, %v1960, %v1965
    %v1970 = vrsqrt.pop %v1928
    %v1971 = vmul.f32 %v1970, %v1928
    %v1972 = vmul.f32 %v1971, %v1970
    %v1973 = vmul.f32 0.5, %v1972
    %v1974 = vsub.f32 1.5, %v1973
    %v1975 = vmul.f32 %v1970, %v1974
    %vm1976 = vweird.f32 %v1928
    %vm1977 = vweird.f32 %v1970
    %vm1978 = vmor %vm1976, %vm1977
    %v1979 = vsel %vm1978, %v1970, %v1975
    %v1980 = vrsqrt.pop %v1929
    %v1981 = vmul.f32 %v1980, %v1929
    %v1982 = vmul.f32 %v1981, %v1980
    %v1983 = vmul.f32 0.5, %v1982
    %v1984 = vsub.f32 1.5, %v1983
    %v1985 = vmul.f32 %v1980, %v1984
    %vm1986 = vweird.f32 %v1929
    %vm1987 = vweird.f32 %v1980
    %vm1988 = vmor %vm1986, %vm1987
    %v1989 = vsel %vm1988, %v1980, %v1985
    %v1990 = vmul.f32 %v1888, %v1939
    %v1991 = vmul.f32 %v1889, %v1949
    %v1992 = vmul.f32 %v1890, %v1959
    %v1993 = vmul.f32 %v1891, %v1969
    %v1994 = vmul.f32 %v1892, %v1979
    %v1995 = vmul.f32 %v1893, %v1989
    %v1997 = vperm.slane %v1861, 0
    %v1999 = vmul.f32 %v1990, %v1997
    %v2000 = vmul.f32 %v1991, %v1997
    %v2001 = vmul.f32 %v1992, %v1997
    %v2002 = vmul.f32 %v1993, %v1997
    %v2003 = vmul.f32 %v1994, %v1997
    %v2004 = vmul.f32 %v1995, %v1997
    %v2006 = vperm.slane %v1863, 0
    %v2008 = vadd.f32 %v1999, %v2006
    %v2009 = vadd.f32 %v2000, %v2006
    %v2010 = vadd.f32 %v2001, %v2006
    %v2011 = vadd.f32 %v2002, %v2006
    %v2012 = vadd.f32 %v2003, %v2006
    %v2013 = vadd.f32 %v2004, %v2006
    %s2014 = scalar_lea.vmem %s6, 32
    %v2015 = vld [vmem:[%s2014] sm:$0xff]
    %v2016 = vld [vmem:[%s2014 + $0x8] sm:$0xff]
    %v2017 = vld [vmem:[%s2014 + $0x10] sm:$0xff]
    %v2018 = vld [vmem:[%s2014 + $0x18] sm:$0xff]
    %s2019 = scalar_lea.vmem %s7, 1
    %v2020 = vld [vmem:[%s2019] sm:$0x1]
    %v2022 = vperm.slane %v2020, 0
    %v2025 = vsel %vm146, %v2008, 0
    %v2028 = vsel %vm146, %v2009, 0
    %v2031 = vsel %vm146, %v2010, 0
    %v2034 = vsel %vm146, %v2011, 0
    %v2037 = vsel %vm146, %v2012, 0
    %v2040 = vsel %vm146, %v2013, 0
    %2042 = vmatpush.msra.mxu0 0.0
    %2043 = vmatpush.msra.mxu0 0.0
    %2044 = vmatpush.msra.mxu0 0.0
    %2045 = vmatpush.msra.mxu0 0.0
    %2046 = vmatpush.msra.mxu0 0.0
    %2047 = vmatpush.msra.mxu0 0.0
    %2048 = vmatpush.msra.mxu0 0.0
    %2049 = vmatpush.msra.mxu0 0.0
    %2050 = vmatpush.msra.mxu0 0.0
    %2051 = vmatpush.msra.mxu0 0.0
    %2052 = vmatpush.msra.mxu0 0.0
    %2053 = vmatpush.msra.mxu0 0.0
    %2054 = vmatpush.msra.mxu0 %v2018
    %2055 = vmatpush.msra.mxu0 %v2017
    %2056 = vmatpush.msra.mxu0 %v2016
    %2057 = vmatpush.msra.mxu0 %v2015
    %2058 = vmatmul.f32.gmra.mxu0 %v2025
    %v2059 = vpop.f32.mrf.mxu0
    %v2060 = vadd.f32 %v2022, %v2059
    %2061 = vmatmul.f32.gmra.mxu0 %v2028
    %v2062 = vpop.f32.mrf.mxu0
    %v2063 = vadd.f32 %v2022, %v2062
    %2064 = vmatmul.f32.gmra.mxu0 %v2031
    %v2065 = vpop.f32.mrf.mxu0
    %v2066 = vadd.f32 %v2022, %v2065
    %2067 = vmatmul.f32.gmra.mxu0 %v2034
    %v2068 = vpop.f32.mrf.mxu0
    %v2069 = vadd.f32 %v2022, %v2068
    %2070 = vmatmul.f32.gmra.mxu0 %v2037
    %v2071 = vpop.f32.mrf.mxu0
    %v2072 = vadd.f32 %v2022, %v2071
    %2073 = vmatmul.f32.gmra.mxu0 %v2040
    %v2074 = vpop.f32.mrf.mxu0
    %v2075 = vadd.f32 %v2022, %v2074
    %2076 = vdwg.mxu0
    %s2077 = scalar_lea.vmem %s8, 32
    %v2078 = vld [vmem:[%s2077] sm:$0xff]
    %v2079 = vld [vmem:[%s2077 + $0x8] sm:$0xff]
    %v2080 = vld [vmem:[%s2077 + $0x10] sm:$0xff]
    %v2081 = vld [vmem:[%s2077 + $0x18] sm:$0xff]
    %2088 = vrot.lane.b32.xlu0 %v2060, 96
    %v2089 = vpop.permute.xlu0 %2088
    %2090 = vrot.lane.b32.xlu0 %v2063, 96
    %v2091 = vpop.permute.xlu0 %2090
    %2092 = vrot.lane.b32.xlu0 %v2066, 96
    %v2093 = vpop.permute.xlu0 %2092
    %2094 = vrot.lane.b32.xlu0 %v2069, 96
    %v2095 = vpop.permute.xlu0 %2094
    %2096 = vrot.lane.b32.xlu0 %v2072, 96
    %v2097 = vpop.permute.xlu0 %2096
    %2098 = vrot.lane.b32.xlu0 %v2075, 96
    %v2099 = vpop.permute.xlu0 %2098
    %v2100 = vsel %vm387, %v2060, 0
    %v2102 = vsel %vm387, %v2063, 0
    %v2104 = vsel %vm387, %v2066, 0
    %v2106 = vsel %vm387, %v2069, 0
    %v2108 = vsel %vm387, %v2072, 0
    %v2110 = vsel %vm387, %v2075, 0
    %v2112 = vsel %vm387, %v2089, 0
    %v2114 = vsel %vm387, %v2091, 0
    %v2116 = vsel %vm387, %v2093, 0
    %v2118 = vsel %vm387, %v2095, 0
    %v2120 = vsel %vm387, %v2097, 0
    %v2122 = vsel %vm387, %v2099, 0
    %2124 = vmatpush.xpose.msra.mxu0 0.0
    %2125 = vmatpush.xpose.msra.mxu0 0.0
    %2126 = vmatpush.xpose.msra.mxu0 0.0
    %2127 = vmatpush.xpose.msra.mxu0 0.0
    %2128 = vmatpush.xpose.msra.mxu0 0.0
    %2129 = vmatpush.xpose.msra.mxu0 0.0
    %2130 = vmatpush.xpose.msra.mxu0 0.0
    %2131 = vmatpush.xpose.msra.mxu0 0.0
    %2132 = vmatpush.xpose.msra.mxu0 0.0
    %2133 = vmatpush.xpose.msra.mxu0 0.0
    %2134 = vmatpush.xpose.msra.mxu0 %v2122
    %2135 = vmatpush.xpose.msra.mxu0 %v2120
    %2136 = vmatpush.xpose.msra.mxu0 %v2118
    %2137 = vmatpush.xpose.msra.mxu0 %v2116
    %2138 = vmatpush.xpose.msra.mxu0 %v2114
    %2139 = vmatpush.xpose.msra.mxu0 %v2112
    %2140 = vmatmul.f32.gmra.mxu0 %v2100
    %v2141 = vpop.f32.mrf.mxu0
    %v2142 = vadd.f32 0.0, %v2141
    %2143 = vmatmul.f32.gmra.mxu0 %v2102
    %v2144 = vpop.f32.mrf.mxu0
    %v2145 = vadd.f32 0.0, %v2144
    %2146 = vmatmul.f32.gmra.mxu0 %v2104
    %v2147 = vpop.f32.mrf.mxu0
    %v2148 = vadd.f32 0.0, %v2147
    %2149 = vmatmul.f32.gmra.mxu0 %v2106
    %v2150 = vpop.f32.mrf.mxu0
    %v2151 = vadd.f32 0.0, %v2150
    %2152 = vmatmul.f32.gmra.mxu0 %v2108
    %v2153 = vpop.f32.mrf.mxu0
    %v2154 = vadd.f32 0.0, %v2153
    %2155 = vmatmul.f32.gmra.mxu0 %v2110
    %v2156 = vpop.f32.mrf.mxu0
    %v2157 = vadd.f32 0.0, %v2156
    %2158 = vdwg.mxu0
    %v2159 = vmul.f32 %v2142, 0.35355338
    %v2160 = vmul.f32 %v2145, 0.35355338
    %v2161 = vmul.f32 %v2148, 0.35355338
    %v2162 = vmul.f32 %v2151, 0.35355338
    %v2163 = vmul.f32 %v2154, 0.35355338
    %v2164 = vmul.f32 %v2157, 0.35355338
    %v2165 = vadd.f32 %v2159, %v138
    %v2166 = vadd.f32 %v2160, %v139
    %v2167 = vadd.f32 %v2161, %v140
    %v2168 = vadd.f32 %v2162, %v141
    %v2169 = vadd.f32 %v2163, %v142
    %v2170 = vadd.f32 %v2164, %v143
    %v2171 = vsel %vm84, %v2165, -inf
    %2172 = vmax.xlane.f32.xlu0 %v2171
    %v2173 = vpop.xlane.xlu0 %2172
    %v2174 = vsel %vm84, %v2166, -inf
    %2175 = vmax.xlane.f32.xlu0 %v2174
    %v2176 = vpop.xlane.xlu0 %2175
    %v2177 = vsel %vm84, %v2167, -inf
    %2178 = vmax.xlane.f32.xlu0 %v2177
    %v2179 = vpop.xlane.xlu0 %2178
    %v2180 = vsel %vm84, %v2168, -inf
    %2181 = vmax.xlane.f32.xlu0 %v2180
    %v2182 = vpop.xlane.xlu0 %2181
    %v2183 = vsel %vm84, %v2169, -inf
    %2184 = vmax.xlane.f32.xlu0 %v2183
    %v2185 = vpop.xlane.xlu0 %2184
    %v2186 = vsel %vm84, %v2170, -inf
    %2187 = vmax.xlane.f32.xlu0 %v2186
    %v2188 = vpop.xlane.xlu0 %2187
    %v2189 = vsub.f32 %v2165, %v2173
    %v2190 = vsub.f32 %v2166, %v2176
    %v2191 = vsub.f32 %v2167, %v2179
    %v2192 = vsub.f32 %v2168, %v2182
    %v2193 = vsub.f32 %v2169, %v2185
    %v2194 = vsub.f32 %v2170, %v2188
    %v2195 = vmul.f32 %v2189, 1.442695
    %v2196 = vpow.pop %v2195
    %v2197 = vmul.f32 %v2190, 1.442695
    %v2198 = vpow.pop %v2197
    %v2199 = vmul.f32 %v2191, 1.442695
    %v2200 = vpow.pop %v2199
    %v2201 = vmul.f32 %v2192, 1.442695
    %v2202 = vpow.pop %v2201
    %v2203 = vmul.f32 %v2193, 1.442695
    %v2204 = vpow.pop %v2203
    %v2205 = vmul.f32 %v2194, 1.442695
    %v2206 = vpow.pop %v2205
    %v2207 = vsel %vm84, %v2196, 0.0
    %2208 = vadd.xlane.f32.xlu0 %v2207
    %v2209 = vpop.xlane.xlu0 %2208
    %v2210 = vsel %vm84, %v2198, 0.0
    %2211 = vadd.xlane.f32.xlu0 %v2210
    %v2212 = vpop.xlane.xlu0 %2211
    %v2213 = vsel %vm84, %v2200, 0.0
    %2214 = vadd.xlane.f32.xlu0 %v2213
    %v2215 = vpop.xlane.xlu0 %2214
    %v2216 = vsel %vm84, %v2202, 0.0
    %2217 = vadd.xlane.f32.xlu0 %v2216
    %v2218 = vpop.xlane.xlu0 %2217
    %v2219 = vsel %vm84, %v2204, 0.0
    %2220 = vadd.xlane.f32.xlu0 %v2219
    %v2221 = vpop.xlane.xlu0 %2220
    %v2222 = vsel %vm84, %v2206, 0.0
    %2223 = vadd.xlane.f32.xlu0 %v2222
    %v2224 = vpop.xlane.xlu0 %2223
    %v2225 = vrcp.pop %v2209
    %v2226 = vrcp.pop %v2212
    %v2227 = vrcp.pop %v2215
    %v2228 = vrcp.pop %v2218
    %v2229 = vrcp.pop %v2221
    %v2230 = vrcp.pop %v2224
    %v2231 = vmul.f32 %v2196, %v2225
    %v2232 = vmul.f32 %v2198, %v2226
    %v2233 = vmul.f32 %v2200, %v2227
    %v2234 = vmul.f32 %v2202, %v2228
    %v2235 = vmul.f32 %v2204, %v2229
    %v2236 = vmul.f32 %v2206, %v2230
    %2237 = vrot.lane.b32.xlu0 %v2060, 64
    %v2238 = vpop.permute.xlu0 %2237
    %2239 = vrot.lane.b32.xlu0 %v2063, 64
    %v2240 = vpop.permute.xlu0 %2239
    %2241 = vrot.lane.b32.xlu0 %v2066, 64
    %v2242 = vpop.permute.xlu0 %2241
    %2243 = vrot.lane.b32.xlu0 %v2069, 64
    %v2244 = vpop.permute.xlu0 %2243
    %2245 = vrot.lane.b32.xlu0 %v2072, 64
    %v2246 = vpop.permute.xlu0 %2245
    %2247 = vrot.lane.b32.xlu0 %v2075, 64
    %v2248 = vpop.permute.xlu0 %2247
    %v2256 = vsel %vm84, %v2231, 0
    %v2259 = vsel %vm84, %v2232, 0
    %v2262 = vsel %vm84, %v2233, 0
    %v2265 = vsel %vm84, %v2234, 0
    %v2268 = vsel %vm84, %v2235, 0
    %v2271 = vsel %vm84, %v2236, 0
    %2273 = vmatpush.msra.mxu0 0.0
    %2274 = vmatpush.msra.mxu0 0.0
    %2275 = vmatpush.msra.mxu0 0.0
    %2276 = vmatpush.msra.mxu0 0.0
    %2277 = vmatpush.msra.mxu0 0.0
    %2278 = vmatpush.msra.mxu0 0.0
    %2279 = vmatpush.msra.mxu0 0.0
    %2280 = vmatpush.msra.mxu0 0.0
    %2281 = vmatpush.msra.mxu0 0.0
    %2282 = vmatpush.msra.mxu0 0.0
    %2283 = vmatpush.msra.mxu0 %v2248
    %2284 = vmatpush.msra.mxu0 %v2246
    %2285 = vmatpush.msra.mxu0 %v2244
    %2286 = vmatpush.msra.mxu0 %v2242
    %2287 = vmatpush.msra.mxu0 %v2240
    %2288 = vmatpush.msra.mxu0 %v2238
    %2289 = vmatmul.f32.gmra.mxu0 %v2256
    %v2290 = vpop.f32.mrf.mxu0
    %v2291 = vadd.f32 0.0, %v2290
    %2292 = vmatmul.f32.gmra.mxu0 %v2259
    %v2293 = vpop.f32.mrf.mxu0
    %v2294 = vadd.f32 0.0, %v2293
    %2295 = vmatmul.f32.gmra.mxu0 %v2262
    %v2296 = vpop.f32.mrf.mxu0
    %v2297 = vadd.f32 0.0, %v2296
    %2298 = vmatmul.f32.gmra.mxu0 %v2265
    %v2299 = vpop.f32.mrf.mxu0
    %v2300 = vadd.f32 0.0, %v2299
    %2301 = vmatmul.f32.gmra.mxu0 %v2268
    %v2302 = vpop.f32.mrf.mxu0
    %v2303 = vadd.f32 0.0, %v2302
    %2304 = vmatmul.f32.gmra.mxu0 %v2271
    %v2305 = vpop.f32.mrf.mxu0
    %v2306 = vadd.f32 0.0, %v2305
    %2307 = vdwg.mxu0
    %2308 = vrot.lane.b32.xlu0 %v2060, 120
    %v2309 = vpop.permute.xlu0 %2308
    %2310 = vrot.lane.b32.xlu0 %v2063, 120
    %v2311 = vpop.permute.xlu0 %2310
    %2312 = vrot.lane.b32.xlu0 %v2066, 120
    %v2313 = vpop.permute.xlu0 %2312
    %2314 = vrot.lane.b32.xlu0 %v2069, 120
    %v2315 = vpop.permute.xlu0 %2314
    %2316 = vrot.lane.b32.xlu0 %v2072, 120
    %v2317 = vpop.permute.xlu0 %2316
    %2318 = vrot.lane.b32.xlu0 %v2075, 120
    %v2319 = vpop.permute.xlu0 %2318
    %2320 = vrot.lane.b32.xlu0 %v2060, 88
    %v2321 = vpop.permute.xlu0 %2320
    %2322 = vrot.lane.b32.xlu0 %v2063, 88
    %v2323 = vpop.permute.xlu0 %2322
    %2324 = vrot.lane.b32.xlu0 %v2066, 88
    %v2325 = vpop.permute.xlu0 %2324
    %2326 = vrot.lane.b32.xlu0 %v2069, 88
    %v2327 = vpop.permute.xlu0 %2326
    %2328 = vrot.lane.b32.xlu0 %v2072, 88
    %v2329 = vpop.permute.xlu0 %2328
    %2330 = vrot.lane.b32.xlu0 %v2075, 88
    %v2331 = vpop.permute.xlu0 %2330
    %v2332 = vsel %vm387, %v2309, 0
    %v2334 = vsel %vm387, %v2311, 0
    %v2336 = vsel %vm387, %v2313, 0
    %v2338 = vsel %vm387, %v2315, 0
    %v2340 = vsel %vm387, %v2317, 0
    %v2342 = vsel %vm387, %v2319, 0
    %v2344 = vsel %vm387, %v2321, 0
    %v2346 = vsel %vm387, %v2323, 0
    %v2348 = vsel %vm387, %v2325, 0
    %v2350 = vsel %vm387, %v2327, 0
    %v2352 = vsel %vm387, %v2329, 0
    %v2354 = vsel %vm387, %v2331, 0
    %2356 = vmatpush.xpose.msra.mxu0 0.0
    %2357 = vmatpush.xpose.msra.mxu0 0.0
    %2358 = vmatpush.xpose.msra.mxu0 0.0
    %2359 = vmatpush.xpose.msra.mxu0 0.0
    %2360 = vmatpush.xpose.msra.mxu0 0.0
    %2361 = vmatpush.xpose.msra.mxu0 0.0
    %2362 = vmatpush.xpose.msra.mxu0 0.0
    %2363 = vmatpush.xpose.msra.mxu0 0.0
    %2364 = vmatpush.xpose.msra.mxu0 0.0
    %2365 = vmatpush.xpose.msra.mxu0 0.0
    %2366 = vmatpush.xpose.msra.mxu0 %v2354
    %2367 = vmatpush.xpose.msra.mxu0 %v2352
    %2368 = vmatpush.xpose.msra.mxu0 %v2350
    %2369 = vmatpush.xpose.msra.mxu0 %v2348
    %2370 = vmatpush.xpose.msra.mxu0 %v2346
    %2371 = vmatpush.xpose.msra.mxu0 %v2344
    %2372 = vmatmul.f32.gmra.mxu0 %v2332
    %v2373 = vpop.f32.mrf.mxu0
    %v2374 = vadd.f32 0.0, %v2373
    %2375 = vmatmul.f32.gmra.mxu0 %v2334
    %v2376 = vpop.f32.mrf.mxu0
    %v2377 = vadd.f32 0.0, %v2376
    %2378 = vmatmul.f32.gmra.mxu0 %v2336
    %v2379 = vpop.f32.mrf.mxu0
    %v2380 = vadd.f32 0.0, %v2379
    %2381 = vmatmul.f32.gmra.mxu0 %v2338
    %v2382 = vpop.f32.mrf.mxu0
    %v2383 = vadd.f32 0.0, %v2382
    %2384 = vmatmul.f32.gmra.mxu0 %v2340
    %v2385 = vpop.f32.mrf.mxu0
    %v2386 = vadd.f32 0.0, %v2385
    %2387 = vmatmul.f32.gmra.mxu0 %v2342
    %v2388 = vpop.f32.mrf.mxu0
    %v2389 = vadd.f32 0.0, %v2388
    %2390 = vdwg.mxu0
    %v2391 = vmul.f32 %v2374, 0.35355338
    %v2392 = vmul.f32 %v2377, 0.35355338
    %v2393 = vmul.f32 %v2380, 0.35355338
    %v2394 = vmul.f32 %v2383, 0.35355338
    %v2395 = vmul.f32 %v2386, 0.35355338
    %v2396 = vmul.f32 %v2389, 0.35355338
    %v2397 = vadd.f32 %v2391, %v138
    %v2398 = vadd.f32 %v2392, %v139
    %v2399 = vadd.f32 %v2393, %v140
    %v2400 = vadd.f32 %v2394, %v141
    %v2401 = vadd.f32 %v2395, %v142
    %v2402 = vadd.f32 %v2396, %v143
    %v2403 = vsel %vm84, %v2397, -inf
    %2404 = vmax.xlane.f32.xlu0 %v2403
    %v2405 = vpop.xlane.xlu0 %2404
    %v2406 = vsel %vm84, %v2398, -inf
    %2407 = vmax.xlane.f32.xlu0 %v2406
    %v2408 = vpop.xlane.xlu0 %2407
    %v2409 = vsel %vm84, %v2399, -inf
    %2410 = vmax.xlane.f32.xlu0 %v2409
    %v2411 = vpop.xlane.xlu0 %2410
    %v2412 = vsel %vm84, %v2400, -inf
    %2413 = vmax.xlane.f32.xlu0 %v2412
    %v2414 = vpop.xlane.xlu0 %2413
    %v2415 = vsel %vm84, %v2401, -inf
    %2416 = vmax.xlane.f32.xlu0 %v2415
    %v2417 = vpop.xlane.xlu0 %2416
    %v2418 = vsel %vm84, %v2402, -inf
    %2419 = vmax.xlane.f32.xlu0 %v2418
    %v2420 = vpop.xlane.xlu0 %2419
    %v2421 = vsub.f32 %v2397, %v2405
    %v2422 = vsub.f32 %v2398, %v2408
    %v2423 = vsub.f32 %v2399, %v2411
    %v2424 = vsub.f32 %v2400, %v2414
    %v2425 = vsub.f32 %v2401, %v2417
    %v2426 = vsub.f32 %v2402, %v2420
    %v2427 = vmul.f32 %v2421, 1.442695
    %v2428 = vpow.pop %v2427
    %v2429 = vmul.f32 %v2422, 1.442695
    %v2430 = vpow.pop %v2429
    %v2431 = vmul.f32 %v2423, 1.442695
    %v2432 = vpow.pop %v2431
    %v2433 = vmul.f32 %v2424, 1.442695
    %v2434 = vpow.pop %v2433
    %v2435 = vmul.f32 %v2425, 1.442695
    %v2436 = vpow.pop %v2435
    %v2437 = vmul.f32 %v2426, 1.442695
    %v2438 = vpow.pop %v2437
    %v2439 = vsel %vm84, %v2428, 0.0
    %2440 = vadd.xlane.f32.xlu0 %v2439
    %v2441 = vpop.xlane.xlu0 %2440
    %v2442 = vsel %vm84, %v2430, 0.0
    %2443 = vadd.xlane.f32.xlu0 %v2442
    %v2444 = vpop.xlane.xlu0 %2443
    %v2445 = vsel %vm84, %v2432, 0.0
    %2446 = vadd.xlane.f32.xlu0 %v2445
    %v2447 = vpop.xlane.xlu0 %2446
    %v2448 = vsel %vm84, %v2434, 0.0
    %2449 = vadd.xlane.f32.xlu0 %v2448
    %v2450 = vpop.xlane.xlu0 %2449
    %v2451 = vsel %vm84, %v2436, 0.0
    %2452 = vadd.xlane.f32.xlu0 %v2451
    %v2453 = vpop.xlane.xlu0 %2452
    %v2454 = vsel %vm84, %v2438, 0.0
    %2455 = vadd.xlane.f32.xlu0 %v2454
    %v2456 = vpop.xlane.xlu0 %2455
    %v2457 = vrcp.pop %v2441
    %v2458 = vrcp.pop %v2444
    %v2459 = vrcp.pop %v2447
    %v2460 = vrcp.pop %v2450
    %v2461 = vrcp.pop %v2453
    %v2462 = vrcp.pop %v2456
    %v2463 = vmul.f32 %v2428, %v2457
    %v2464 = vmul.f32 %v2430, %v2458
    %v2465 = vmul.f32 %v2432, %v2459
    %v2466 = vmul.f32 %v2434, %v2460
    %v2467 = vmul.f32 %v2436, %v2461
    %v2468 = vmul.f32 %v2438, %v2462
    %2469 = vrot.lane.b32.xlu0 %v2060, 56
    %v2470 = vpop.permute.xlu0 %2469
    %2471 = vrot.lane.b32.xlu0 %v2063, 56
    %v2472 = vpop.permute.xlu0 %2471
    %2473 = vrot.lane.b32.xlu0 %v2066, 56
    %v2474 = vpop.permute.xlu0 %2473
    %2475 = vrot.lane.b32.xlu0 %v2069, 56
    %v2476 = vpop.permute.xlu0 %2475
    %2477 = vrot.lane.b32.xlu0 %v2072, 56
    %v2478 = vpop.permute.xlu0 %2477
    %2479 = vrot.lane.b32.xlu0 %v2075, 56
    %v2480 = vpop.permute.xlu0 %2479
    %v2488 = vsel %vm84, %v2463, 0
    %v2491 = vsel %vm84, %v2464, 0
    %v2494 = vsel %vm84, %v2465, 0
    %v2497 = vsel %vm84, %v2466, 0
    %v2500 = vsel %vm84, %v2467, 0
    %v2503 = vsel %vm84, %v2468, 0
    %2505 = vmatpush.msra.mxu0 0.0
    %2506 = vmatpush.msra.mxu0 0.0
    %2507 = vmatpush.msra.mxu0 0.0
    %2508 = vmatpush.msra.mxu0 0.0
    %2509 = vmatpush.msra.mxu0 0.0
    %2510 = vmatpush.msra.mxu0 0.0
    %2511 = vmatpush.msra.mxu0 0.0
    %2512 = vmatpush.msra.mxu0 0.0
    %2513 = vmatpush.msra.mxu0 0.0
    %2514 = vmatpush.msra.mxu0 0.0
    %2515 = vmatpush.msra.mxu0 %v2480
    %2516 = vmatpush.msra.mxu0 %v2478
    %2517 = vmatpush.msra.mxu0 %v2476
    %2518 = vmatpush.msra.mxu0 %v2474
    %2519 = vmatpush.msra.mxu0 %v2472
    %2520 = vmatpush.msra.mxu0 %v2470
    %2521 = vmatmul.f32.gmra.mxu0 %v2488
    %v2522 = vpop.f32.mrf.mxu0
    %v2523 = vadd.f32 0.0, %v2522
    %2524 = vmatmul.f32.gmra.mxu0 %v2491
    %v2525 = vpop.f32.mrf.mxu0
    %v2526 = vadd.f32 0.0, %v2525
    %2527 = vmatmul.f32.gmra.mxu0 %v2494
    %v2528 = vpop.f32.mrf.mxu0
    %v2529 = vadd.f32 0.0, %v2528
    %2530 = vmatmul.f32.gmra.mxu0 %v2497
    %v2531 = vpop.f32.mrf.mxu0
    %v2532 = vadd.f32 0.0, %v2531
    %2533 = vmatmul.f32.gmra.mxu0 %v2500
    %v2534 = vpop.f32.mrf.mxu0
    %v2535 = vadd.f32 0.0, %v2534
    %2536 = vmatmul.f32.gmra.mxu0 %v2503
    %v2537 = vpop.f32.mrf.mxu0
    %v2538 = vadd.f32 0.0, %v2537
    %2539 = vdwg.mxu0
    %v2541 = vsel %vm387, %v2523, 0
    %v2544 = vsel %vm387, %v2526, 0
    %v2547 = vsel %vm387, %v2529, 0
    %v2550 = vsel %vm387, %v2532, 0
    %v2553 = vsel %vm387, %v2535, 0
    %v2556 = vsel %vm387, %v2538, 0
    %2558 = vmatpush.msra.mxu0 0.0
    %2559 = vmatpush.msra.mxu0 0.0
    %2560 = vmatpush.msra.mxu0 0.0
    %2561 = vmatpush.msra.mxu0 0.0
    %2562 = vmatpush.msra.mxu0 0.0
    %2563 = vmatpush.msra.mxu0 0.0
    %2564 = vmatpush.msra.mxu0 0.0
    %2565 = vmatpush.msra.mxu0 0.0
    %2566 = vmatpush.msra.mxu0 0.0
    %2567 = vmatpush.msra.mxu0 0.0
    %2568 = vmatpush.msra.mxu0 0.0
    %2569 = vmatpush.msra.mxu0 0.0
    %2570 = vmatpush.msra.mxu0 0.0
    %2571 = vmatpush.msra.mxu0 0.0
    %2572 = vmatpush.msra.mxu0 0.0
    %2573 = vmatpush.msra.mxu0 %v2079
    %2574 = vmatmul.f32.gmra.mxu0 %v2541
    %v2575 = vpop.f32.mrf.mxu0
    %v2576 = vadd.f32 0.0, %v2575
    %2577 = vmatmul.f32.gmra.mxu0 %v2544
    %v2578 = vpop.f32.mrf.mxu0
    %v2579 = vadd.f32 0.0, %v2578
    %2580 = vmatmul.f32.gmra.mxu0 %v2547
    %v2581 = vpop.f32.mrf.mxu0
    %v2582 = vadd.f32 0.0, %v2581
    %2583 = vmatmul.f32.gmra.mxu0 %v2550
    %v2584 = vpop.f32.mrf.mxu0
    %v2585 = vadd.f32 0.0, %v2584
    %2586 = vmatmul.f32.gmra.mxu0 %v2553
    %v2587 = vpop.f32.mrf.mxu0
    %v2588 = vadd.f32 0.0, %v2587
    %2589 = vmatmul.f32.gmra.mxu0 %v2556
    %v2590 = vpop.f32.mrf.mxu0
    %v2591 = vadd.f32 0.0, %v2590
    %2592 = vdwg.mxu0
    %v2594 = vsel %vm387, %v2291, 0
    %v2597 = vsel %vm387, %v2294, 0
    %v2600 = vsel %vm387, %v2297, 0
    %v2603 = vsel %vm387, %v2300, 0
    %v2606 = vsel %vm387, %v2303, 0
    %v2609 = vsel %vm387, %v2306, 0
    %2611 = vmatpush.msra.mxu0 0.0
    %2612 = vmatpush.msra.mxu0 0.0
    %2613 = vmatpush.msra.mxu0 0.0
    %2614 = vmatpush.msra.mxu0 0.0
    %2615 = vmatpush.msra.mxu0 0.0
    %2616 = vmatpush.msra.mxu0 0.0
    %2617 = vmatpush.msra.mxu0 0.0
    %2618 = vmatpush.msra.mxu0 0.0
    %2619 = vmatpush.msra.mxu0 0.0
    %2620 = vmatpush.msra.mxu0 0.0
    %2621 = vmatpush.msra.mxu0 0.0
    %2622 = vmatpush.msra.mxu0 0.0
    %2623 = vmatpush.msra.mxu0 0.0
    %2624 = vmatpush.msra.mxu0 0.0
    %2625 = vmatpush.msra.mxu0 0.0
    %2626 = vmatpush.msra.mxu0 %v2078
    %2627 = vmatmul.f32.gmra.mxu0 %v2594
    %v2628 = vpop.f32.mrf.mxu0
    %v2629 = vadd.f32 %v2576, %v2628
    %2630 = vmatmul.f32.gmra.mxu0 %v2597
    %v2631 = vpop.f32.mrf.mxu0
    %v2632 = vadd.f32 %v2579, %v2631
    %2633 = vmatmul.f32.gmra.mxu0 %v2600
    %v2634 = vpop.f32.mrf.mxu0
    %v2635 = vadd.f32 %v2582, %v2634
    %2636 = vmatmul.f32.gmra.mxu0 %v2603
    %v2637 = vpop.f32.mrf.mxu0
    %v2638 = vadd.f32 %v2585, %v2637
    %2639 = vmatmul.f32.gmra.mxu0 %v2606
    %v2640 = vpop.f32.mrf.mxu0
    %v2641 = vadd.f32 %v2588, %v2640
    %2642 = vmatmul.f32.gmra.mxu0 %v2609
    %v2643 = vpop.f32.mrf.mxu0
    %v2644 = vadd.f32 %v2591, %v2643
    %2645 = vdwg.mxu0
    %2646 = vrot.lane.b32.xlu0 %v2060, 112
    %v2647 = vpop.permute.xlu0 %2646
    %2648 = vrot.lane.b32.xlu0 %v2063, 112
    %v2649 = vpop.permute.xlu0 %2648
    %2650 = vrot.lane.b32.xlu0 %v2066, 112
    %v2651 = vpop.permute.xlu0 %2650
    %2652 = vrot.lane.b32.xlu0 %v2069, 112
    %v2653 = vpop.permute.xlu0 %2652
    %2654 = vrot.lane.b32.xlu0 %v2072, 112
    %v2655 = vpop.permute.xlu0 %2654
    %2656 = vrot.lane.b32.xlu0 %v2075, 112
    %v2657 = vpop.permute.xlu0 %2656
    %2658 = vrot.lane.b32.xlu0 %v2060, 80
    %v2659 = vpop.permute.xlu0 %2658
    %2660 = vrot.lane.b32.xlu0 %v2063, 80
    %v2661 = vpop.permute.xlu0 %2660
    %2662 = vrot.lane.b32.xlu0 %v2066, 80
    %v2663 = vpop.permute.xlu0 %2662
    %2664 = vrot.lane.b32.xlu0 %v2069, 80
    %v2665 = vpop.permute.xlu0 %2664
    %2666 = vrot.lane.b32.xlu0 %v2072, 80
    %v2667 = vpop.permute.xlu0 %2666
    %2668 = vrot.lane.b32.xlu0 %v2075, 80
    %v2669 = vpop.permute.xlu0 %2668
    %v2670 = vsel %vm387, %v2647, 0
    %v2672 = vsel %vm387, %v2649, 0
    %v2674 = vsel %vm387, %v2651, 0
    %v2676 = vsel %vm387, %v2653, 0
    %v2678 = vsel %vm387, %v2655, 0
    %v2680 = vsel %vm387, %v2657, 0
    %v2682 = vsel %vm387, %v2659, 0
    %v2684 = vsel %vm387, %v2661, 0
    %v2686 = vsel %vm387, %v2663, 0
    %v2688 = vsel %vm387, %v2665, 0
    %v2690 = vsel %vm387, %v2667, 0
    %v2692 = vsel %vm387, %v2669, 0
    %2694 = vmatpush.xpose.msra.mxu0 0.0
    %2695 = vmatpush.xpose.msra.mxu0 0.0
    %2696 = vmatpush.xpose.msra.mxu0 0.0
    %2697 = vmatpush.xpose.msra.mxu0 0.0
    %2698 = vmatpush.xpose.msra.mxu0 0.0
    %2699 = vmatpush.xpose.msra.mxu0 0.0
    %2700 = vmatpush.xpose.msra.mxu0 0.0
    %2701 = vmatpush.xpose.msra.mxu0 0.0
    %2702 = vmatpush.xpose.msra.mxu0 0.0
    %2703 = vmatpush.xpose.msra.mxu0 0.0
    %2704 = vmatpush.xpose.msra.mxu0 %v2692
    %2705 = vmatpush.xpose.msra.mxu0 %v2690
    %2706 = vmatpush.xpose.msra.mxu0 %v2688
    %2707 = vmatpush.xpose.msra.mxu0 %v2686
    %2708 = vmatpush.xpose.msra.mxu0 %v2684
    %2709 = vmatpush.xpose.msra.mxu0 %v2682
    %2710 = vmatmul.f32.gmra.mxu0 %v2670
    %v2711 = vpop.f32.mrf.mxu0
    %v2712 = vadd.f32 0.0, %v2711
    %2713 = vmatmul.f32.gmra.mxu0 %v2672
    %v2714 = vpop.f32.mrf.mxu0
    %v2715 = vadd.f32 0.0, %v2714
    %2716 = vmatmul.f32.gmra.mxu0 %v2674
    %v2717 = vpop.f32.mrf.mxu0
    %v2718 = vadd.f32 0.0, %v2717
    %2719 = vmatmul.f32.gmra.mxu0 %v2676
    %v2720 = vpop.f32.mrf.mxu0
    %v2721 = vadd.f32 0.0, %v2720
    %2722 = vmatmul.f32.gmra.mxu0 %v2678
    %v2723 = vpop.f32.mrf.mxu0
    %v2724 = vadd.f32 0.0, %v2723
    %2725 = vmatmul.f32.gmra.mxu0 %v2680
    %v2726 = vpop.f32.mrf.mxu0
    %v2727 = vadd.f32 0.0, %v2726
    %2728 = vdwg.mxu0
    %v2729 = vmul.f32 %v2712, 0.35355338
    %v2730 = vmul.f32 %v2715, 0.35355338
    %v2731 = vmul.f32 %v2718, 0.35355338
    %v2732 = vmul.f32 %v2721, 0.35355338
    %v2733 = vmul.f32 %v2724, 0.35355338
    %v2734 = vmul.f32 %v2727, 0.35355338
    %v2735 = vadd.f32 %v2729, %v138
    %v2736 = vadd.f32 %v2730, %v139
    %v2737 = vadd.f32 %v2731, %v140
    %v2738 = vadd.f32 %v2732, %v141
    %v2739 = vadd.f32 %v2733, %v142
    %v2740 = vadd.f32 %v2734, %v143
    %v2741 = vsel %vm84, %v2735, -inf
    %2742 = vmax.xlane.f32.xlu0 %v2741
    %v2743 = vpop.xlane.xlu0 %2742
    %v2744 = vsel %vm84, %v2736, -inf
    %2745 = vmax.xlane.f32.xlu0 %v2744
    %v2746 = vpop.xlane.xlu0 %2745
    %v2747 = vsel %vm84, %v2737, -inf
    %2748 = vmax.xlane.f32.xlu0 %v2747
    %v2749 = vpop.xlane.xlu0 %2748
    %v2750 = vsel %vm84, %v2738, -inf
    %2751 = vmax.xlane.f32.xlu0 %v2750
    %v2752 = vpop.xlane.xlu0 %2751
    %v2753 = vsel %vm84, %v2739, -inf
    %2754 = vmax.xlane.f32.xlu0 %v2753
    %v2755 = vpop.xlane.xlu0 %2754
    %v2756 = vsel %vm84, %v2740, -inf
    %2757 = vmax.xlane.f32.xlu0 %v2756
    %v2758 = vpop.xlane.xlu0 %2757
    %v2759 = vsub.f32 %v2735, %v2743
    %v2760 = vsub.f32 %v2736, %v2746
    %v2761 = vsub.f32 %v2737, %v2749
    %v2762 = vsub.f32 %v2738, %v2752
    %v2763 = vsub.f32 %v2739, %v2755
    %v2764 = vsub.f32 %v2740, %v2758
    %v2765 = vmul.f32 %v2759, 1.442695
    %v2766 = vpow.pop %v2765
    %v2767 = vmul.f32 %v2760, 1.442695
    %v2768 = vpow.pop %v2767
    %v2769 = vmul.f32 %v2761, 1.442695
    %v2770 = vpow.pop %v2769
    %v2771 = vmul.f32 %v2762, 1.442695
    %v2772 = vpow.pop %v2771
    %v2773 = vmul.f32 %v2763, 1.442695
    %v2774 = vpow.pop %v2773
    %v2775 = vmul.f32 %v2764, 1.442695
    %v2776 = vpow.pop %v2775
    %v2777 = vsel %vm84, %v2766, 0.0
    %2778 = vadd.xlane.f32.xlu0 %v2777
    %v2779 = vpop.xlane.xlu0 %2778
    %v2780 = vsel %vm84, %v2768, 0.0
    %2781 = vadd.xlane.f32.xlu0 %v2780
    %v2782 = vpop.xlane.xlu0 %2781
    %v2783 = vsel %vm84, %v2770, 0.0
    %2784 = vadd.xlane.f32.xlu0 %v2783
    %v2785 = vpop.xlane.xlu0 %2784
    %v2786 = vsel %vm84, %v2772, 0.0
    %2787 = vadd.xlane.f32.xlu0 %v2786
    %v2788 = vpop.xlane.xlu0 %2787
    %v2789 = vsel %vm84, %v2774, 0.0
    %2790 = vadd.xlane.f32.xlu0 %v2789
    %v2791 = vpop.xlane.xlu0 %2790
    %v2792 = vsel %vm84, %v2776, 0.0
    %2793 = vadd.xlane.f32.xlu0 %v2792
    %v2794 = vpop.xlane.xlu0 %2793
    %v2795 = vrcp.pop %v2779
    %v2796 = vrcp.pop %v2782
    %v2797 = vrcp.pop %v2785
    %v2798 = vrcp.pop %v2788
    %v2799 = vrcp.pop %v2791
    %v2800 = vrcp.pop %v2794
    %v2801 = vmul.f32 %v2766, %v2795
    %v2802 = vmul.f32 %v2768, %v2796
    %v2803 = vmul.f32 %v2770, %v2797
    %v2804 = vmul.f32 %v2772, %v2798
    %v2805 = vmul.f32 %v2774, %v2799
    %v2806 = vmul.f32 %v2776, %v2800
    %2807 = vrot.lane.b32.xlu0 %v2060, 48
    %v2808 = vpop.permute.xlu0 %2807
    %2809 = vrot.lane.b32.xlu0 %v2063, 48
    %v2810 = vpop.permute.xlu0 %2809
    %2811 = vrot.lane.b32.xlu0 %v2066, 48
    %v2812 = vpop.permute.xlu0 %2811
    %2813 = vrot.lane.b32.xlu0 %v2069, 48
    %v2814 = vpop.permute.xlu0 %2813
    %2815 = vrot.lane.b32.xlu0 %v2072, 48
    %v2816 = vpop.permute.xlu0 %2815
    %2817 = vrot.lane.b32.xlu0 %v2075, 48
    %v2818 = vpop.permute.xlu0 %2817
    %v2826 = vsel %vm84, %v2801, 0
    %v2829 = vsel %vm84, %v2802, 0
    %v2832 = vsel %vm84, %v2803, 0
    %v2835 = vsel %vm84, %v2804, 0
    %v2838 = vsel %vm84, %v2805, 0
    %v2841 = vsel %vm84, %v2806, 0
    %2843 = vmatpush.msra.mxu0 0.0
    %2844 = vmatpush.msra.mxu0 0.0
    %2845 = vmatpush.msra.mxu0 0.0
    %2846 = vmatpush.msra.mxu0 0.0
    %2847 = vmatpush.msra.mxu0 0.0
    %2848 = vmatpush.msra.mxu0 0.0
    %2849 = vmatpush.msra.mxu0 0.0
    %2850 = vmatpush.msra.mxu0 0.0
    %2851 = vmatpush.msra.mxu0 0.0
    %2852 = vmatpush.msra.mxu0 0.0
    %2853 = vmatpush.msra.mxu0 %v2818
    %2854 = vmatpush.msra.mxu0 %v2816
    %2855 = vmatpush.msra.mxu0 %v2814
    %2856 = vmatpush.msra.mxu0 %v2812
    %2857 = vmatpush.msra.mxu0 %v2810
    %2858 = vmatpush.msra.mxu0 %v2808
    %2859 = vmatmul.f32.gmra.mxu0 %v2826
    %v2860 = vpop.f32.mrf.mxu0
    %v2861 = vadd.f32 0.0, %v2860
    %2862 = vmatmul.f32.gmra.mxu0 %v2829
    %v2863 = vpop.f32.mrf.mxu0
    %v2864 = vadd.f32 0.0, %v2863
    %2865 = vmatmul.f32.gmra.mxu0 %v2832
    %v2866 = vpop.f32.mrf.mxu0
    %v2867 = vadd.f32 0.0, %v2866
    %2868 = vmatmul.f32.gmra.mxu0 %v2835
    %v2869 = vpop.f32.mrf.mxu0
    %v2870 = vadd.f32 0.0, %v2869
    %2871 = vmatmul.f32.gmra.mxu0 %v2838
    %v2872 = vpop.f32.mrf.mxu0
    %v2873 = vadd.f32 0.0, %v2872
    %2874 = vmatmul.f32.gmra.mxu0 %v2841
    %v2875 = vpop.f32.mrf.mxu0
    %v2876 = vadd.f32 0.0, %v2875
    %2877 = vdwg.mxu0
    %v2879 = vsel %vm387, %v2861, 0
    %v2882 = vsel %vm387, %v2864, 0
    %v2885 = vsel %vm387, %v2867, 0
    %v2888 = vsel %vm387, %v2870, 0
    %v2891 = vsel %vm387, %v2873, 0
    %v2894 = vsel %vm387, %v2876, 0
    %2896 = vmatpush.msra.mxu0 0.0
    %2897 = vmatpush.msra.mxu0 0.0
    %2898 = vmatpush.msra.mxu0 0.0
    %2899 = vmatpush.msra.mxu0 0.0
    %2900 = vmatpush.msra.mxu0 0.0
    %2901 = vmatpush.msra.mxu0 0.0
    %2902 = vmatpush.msra.mxu0 0.0
    %2903 = vmatpush.msra.mxu0 0.0
    %2904 = vmatpush.msra.mxu0 0.0
    %2905 = vmatpush.msra.mxu0 0.0
    %2906 = vmatpush.msra.mxu0 0.0
    %2907 = vmatpush.msra.mxu0 0.0
    %2908 = vmatpush.msra.mxu0 0.0
    %2909 = vmatpush.msra.mxu0 0.0
    %2910 = vmatpush.msra.mxu0 0.0
    %2911 = vmatpush.msra.mxu0 %v2080
    %2912 = vmatmul.f32.gmra.mxu0 %v2879
    %v2913 = vpop.f32.mrf.mxu0
    %v2914 = vadd.f32 0.0, %v2913
    %2915 = vmatmul.f32.gmra.mxu0 %v2882
    %v2916 = vpop.f32.mrf.mxu0
    %v2917 = vadd.f32 0.0, %v2916
    %2918 = vmatmul.f32.gmra.mxu0 %v2885
    %v2919 = vpop.f32.mrf.mxu0
    %v2920 = vadd.f32 0.0, %v2919
    %2921 = vmatmul.f32.gmra.mxu0 %v2888
    %v2922 = vpop.f32.mrf.mxu0
    %v2923 = vadd.f32 0.0, %v2922
    %2924 = vmatmul.f32.gmra.mxu0 %v2891
    %v2925 = vpop.f32.mrf.mxu0
    %v2926 = vadd.f32 0.0, %v2925
    %2927 = vmatmul.f32.gmra.mxu0 %v2894
    %v2928 = vpop.f32.mrf.mxu0
    %v2929 = vadd.f32 0.0, %v2928
    %2930 = vdwg.mxu0
    %v2931 = vadd.f32 %v2629, %v2914
    %v2932 = vadd.f32 %v2632, %v2917
    %v2933 = vadd.f32 %v2635, %v2920
    %v2934 = vadd.f32 %v2638, %v2923
    %v2935 = vadd.f32 %v2641, %v2926
    %v2936 = vadd.f32 %v2644, %v2929
    %2937 = vrot.lane.b32.xlu0 %v2060, 104
    %v2938 = vpop.permute.xlu0 %2937
    %2939 = vrot.lane.b32.xlu0 %v2063, 104
    %v2940 = vpop.permute.xlu0 %2939
    %2941 = vrot.lane.b32.xlu0 %v2066, 104
    %v2942 = vpop.permute.xlu0 %2941
    %2943 = vrot.lane.b32.xlu0 %v2069, 104
    %v2944 = vpop.permute.xlu0 %2943
    %2945 = vrot.lane.b32.xlu0 %v2072, 104
    %v2946 = vpop.permute.xlu0 %2945
    %2947 = vrot.lane.b32.xlu0 %v2075, 104
    %v2948 = vpop.permute.xlu0 %2947
    %2949 = vrot.lane.b32.xlu0 %v2060, 72
    %v2950 = vpop.permute.xlu0 %2949
    %2951 = vrot.lane.b32.xlu0 %v2063, 72
    %v2952 = vpop.permute.xlu0 %2951
    %2953 = vrot.lane.b32.xlu0 %v2066, 72
    %v2954 = vpop.permute.xlu0 %2953
    %2955 = vrot.lane.b32.xlu0 %v2069, 72
    %v2956 = vpop.permute.xlu0 %2955
    %2957 = vrot.lane.b32.xlu0 %v2072, 72
    %v2958 = vpop.permute.xlu0 %2957
    %2959 = vrot.lane.b32.xlu0 %v2075, 72
    %v2960 = vpop.permute.xlu0 %2959
    %v2961 = vsel %vm387, %v2938, 0
    %v2963 = vsel %vm387, %v2940, 0
    %v2965 = vsel %vm387, %v2942, 0
    %v2967 = vsel %vm387, %v2944, 0
    %v2969 = vsel %vm387, %v2946, 0
    %v2971 = vsel %vm387, %v2948, 0
    %v2973 = vsel %vm387, %v2950, 0
    %v2975 = vsel %vm387, %v2952, 0
    %v2977 = vsel %vm387, %v2954, 0
    %v2979 = vsel %vm387, %v2956, 0
    %v2981 = vsel %vm387, %v2958, 0
    %v2983 = vsel %vm387, %v2960, 0
    %2985 = vmatpush.xpose.msra.mxu0 0.0
    %2986 = vmatpush.xpose.msra.mxu0 0.0
    %2987 = vmatpush.xpose.msra.mxu0 0.0
    %2988 = vmatpush.xpose.msra.mxu0 0.0
    %2989 = vmatpush.xpose.msra.mxu0 0.0
    %2990 = vmatpush.xpose.msra.mxu0 0.0
    %2991 = vmatpush.xpose.msra.mxu0 0.0
    %2992 = vmatpush.xpose.msra.mxu0 0.0
    %2993 = vmatpush.xpose.msra.mxu0 0.0
    %2994 = vmatpush.xpose.msra.mxu0 0.0
    %2995 = vmatpush.xpose.msra.mxu0 %v2983
    %2996 = vmatpush.xpose.msra.mxu0 %v2981
    %2997 = vmatpush.xpose.msra.mxu0 %v2979
    %2998 = vmatpush.xpose.msra.mxu0 %v2977
    %2999 = vmatpush.xpose.msra.mxu0 %v2975
    %3000 = vmatpush.xpose.msra.mxu0 %v2973
    %3001 = vmatmul.f32.gmra.mxu0 %v2961
    %v3002 = vpop.f32.mrf.mxu0
    %v3003 = vadd.f32 0.0, %v3002
    %3004 = vmatmul.f32.gmra.mxu0 %v2963
    %v3005 = vpop.f32.mrf.mxu0
    %v3006 = vadd.f32 0.0, %v3005
    %3007 = vmatmul.f32.gmra.mxu0 %v2965
    %v3008 = vpop.f32.mrf.mxu0
    %v3009 = vadd.f32 0.0, %v3008
    %3010 = vmatmul.f32.gmra.mxu0 %v2967
    %v3011 = vpop.f32.mrf.mxu0
    %v3012 = vadd.f32 0.0, %v3011
    %3013 = vmatmul.f32.gmra.mxu0 %v2969
    %v3014 = vpop.f32.mrf.mxu0
    %v3015 = vadd.f32 0.0, %v3014
    %3016 = vmatmul.f32.gmra.mxu0 %v2971
    %v3017 = vpop.f32.mrf.mxu0
    %v3018 = vadd.f32 0.0, %v3017
    %3019 = vdwg.mxu0
    %v3020 = vmul.f32 %v3003, 0.35355338
    %v3021 = vmul.f32 %v3006, 0.35355338
    %v3022 = vmul.f32 %v3009, 0.35355338
    %v3023 = vmul.f32 %v3012, 0.35355338
    %v3024 = vmul.f32 %v3015, 0.35355338
    %v3025 = vmul.f32 %v3018, 0.35355338
    %v3026 = vadd.f32 %v3020, %v138
    %v3027 = vadd.f32 %v3021, %v139
    %v3028 = vadd.f32 %v3022, %v140
    %v3029 = vadd.f32 %v3023, %v141
    %v3030 = vadd.f32 %v3024, %v142
    %v3031 = vadd.f32 %v3025, %v143
    %v3032 = vsel %vm84, %v3026, -inf
    %3033 = vmax.xlane.f32.xlu0 %v3032
    %v3034 = vpop.xlane.xlu0 %3033
    %v3035 = vsel %vm84, %v3027, -inf
    %3036 = vmax.xlane.f32.xlu0 %v3035
    %v3037 = vpop.xlane.xlu0 %3036
    %v3038 = vsel %vm84, %v3028, -inf
    %3039 = vmax.xlane.f32.xlu0 %v3038
    %v3040 = vpop.xlane.xlu0 %3039
    %v3041 = vsel %vm84, %v3029, -inf
    %3042 = vmax.xlane.f32.xlu0 %v3041
    %v3043 = vpop.xlane.xlu0 %3042
    %v3044 = vsel %vm84, %v3030, -inf
    %3045 = vmax.xlane.f32.xlu0 %v3044
    %v3046 = vpop.xlane.xlu0 %3045
    %v3047 = vsel %vm84, %v3031, -inf
    %3048 = vmax.xlane.f32.xlu0 %v3047
    %v3049 = vpop.xlane.xlu0 %3048
    %v3050 = vsub.f32 %v3026, %v3034
    %v3051 = vsub.f32 %v3027, %v3037
    %v3052 = vsub.f32 %v3028, %v3040
    %v3053 = vsub.f32 %v3029, %v3043
    %v3054 = vsub.f32 %v3030, %v3046
    %v3055 = vsub.f32 %v3031, %v3049
    %v3056 = vmul.f32 %v3050, 1.442695
    %v3057 = vpow.pop %v3056
    %v3058 = vmul.f32 %v3051, 1.442695
    %v3059 = vpow.pop %v3058
    %v3060 = vmul.f32 %v3052, 1.442695
    %v3061 = vpow.pop %v3060
    %v3062 = vmul.f32 %v3053, 1.442695
    %v3063 = vpow.pop %v3062
    %v3064 = vmul.f32 %v3054, 1.442695
    %v3065 = vpow.pop %v3064
    %v3066 = vmul.f32 %v3055, 1.442695
    %v3067 = vpow.pop %v3066
    %v3068 = vsel %vm84, %v3057, 0.0
    %3069 = vadd.xlane.f32.xlu0 %v3068
    %v3070 = vpop.xlane.xlu0 %3069
    %v3071 = vsel %vm84, %v3059, 0.0
    %3072 = vadd.xlane.f32.xlu0 %v3071
    %v3073 = vpop.xlane.xlu0 %3072
    %v3074 = vsel %vm84, %v3061, 0.0
    %3075 = vadd.xlane.f32.xlu0 %v3074
    %v3076 = vpop.xlane.xlu0 %3075
    %v3077 = vsel %vm84, %v3063, 0.0
    %3078 = vadd.xlane.f32.xlu0 %v3077
    %v3079 = vpop.xlane.xlu0 %3078
    %v3080 = vsel %vm84, %v3065, 0.0
    %3081 = vadd.xlane.f32.xlu0 %v3080
    %v3082 = vpop.xlane.xlu0 %3081
    %v3083 = vsel %vm84, %v3067, 0.0
    %3084 = vadd.xlane.f32.xlu0 %v3083
    %v3085 = vpop.xlane.xlu0 %3084
    %v3086 = vrcp.pop %v3070
    %v3087 = vrcp.pop %v3073
    %v3088 = vrcp.pop %v3076
    %v3089 = vrcp.pop %v3079
    %v3090 = vrcp.pop %v3082
    %v3091 = vrcp.pop %v3085
    %v3092 = vmul.f32 %v3057, %v3086
    %v3093 = vmul.f32 %v3059, %v3087
    %v3094 = vmul.f32 %v3061, %v3088
    %v3095 = vmul.f32 %v3063, %v3089
    %v3096 = vmul.f32 %v3065, %v3090
    %v3097 = vmul.f32 %v3067, %v3091
    %3098 = vrot.lane.b32.xlu0 %v2060, 40
    %v3099 = vpop.permute.xlu0 %3098
    %3100 = vrot.lane.b32.xlu0 %v2063, 40
    %v3101 = vpop.permute.xlu0 %3100
    %3102 = vrot.lane.b32.xlu0 %v2066, 40
    %v3103 = vpop.permute.xlu0 %3102
    %3104 = vrot.lane.b32.xlu0 %v2069, 40
    %v3105 = vpop.permute.xlu0 %3104
    %3106 = vrot.lane.b32.xlu0 %v2072, 40
    %v3107 = vpop.permute.xlu0 %3106
    %3108 = vrot.lane.b32.xlu0 %v2075, 40
    %v3109 = vpop.permute.xlu0 %3108
    %v3117 = vsel %vm84, %v3092, 0
    %v3120 = vsel %vm84, %v3093, 0
    %v3123 = vsel %vm84, %v3094, 0
    %v3126 = vsel %vm84, %v3095, 0
    %v3129 = vsel %vm84, %v3096, 0
    %v3132 = vsel %vm84, %v3097, 0
    %3134 = vmatpush.msra.mxu0 0.0
    %3135 = vmatpush.msra.mxu0 0.0
    %3136 = vmatpush.msra.mxu0 0.0
    %3137 = vmatpush.msra.mxu0 0.0
    %3138 = vmatpush.msra.mxu0 0.0
    %3139 = vmatpush.msra.mxu0 0.0
    %3140 = vmatpush.msra.mxu0 0.0
    %3141 = vmatpush.msra.mxu0 0.0
    %3142 = vmatpush.msra.mxu0 0.0
    %3143 = vmatpush.msra.mxu0 0.0
    %3144 = vmatpush.msra.mxu0 %v3109
    %3145 = vmatpush.msra.mxu0 %v3107
    %3146 = vmatpush.msra.mxu0 %v3105
    %3147 = vmatpush.msra.mxu0 %v3103
    %3148 = vmatpush.msra.mxu0 %v3101
    %3149 = vmatpush.msra.mxu0 %v3099
    %3150 = vmatmul.f32.gmra.mxu0 %v3117
    %v3151 = vpop.f32.mrf.mxu0
    %v3152 = vadd.f32 0.0, %v3151
    %3153 = vmatmul.f32.gmra.mxu0 %v3120
    %v3154 = vpop.f32.mrf.mxu0
    %v3155 = vadd.f32 0.0, %v3154
    %3156 = vmatmul.f32.gmra.mxu0 %v3123
    %v3157 = vpop.f32.mrf.mxu0
    %v3158 = vadd.f32 0.0, %v3157
    %3159 = vmatmul.f32.gmra.mxu0 %v3126
    %v3160 = vpop.f32.mrf.mxu0
    %v3161 = vadd.f32 0.0, %v3160
    %3162 = vmatmul.f32.gmra.mxu0 %v3129
    %v3163 = vpop.f32.mrf.mxu0
    %v3164 = vadd.f32 0.0, %v3163
    %3165 = vmatmul.f32.gmra.mxu0 %v3132
    %v3166 = vpop.f32.mrf.mxu0
    %v3167 = vadd.f32 0.0, %v3166
    %3168 = vdwg.mxu0
    %v3170 = vsel %vm387, %v3152, 0
    %v3173 = vsel %vm387, %v3155, 0
    %v3176 = vsel %vm387, %v3158, 0
    %v3179 = vsel %vm387, %v3161, 0
    %v3182 = vsel %vm387, %v3164, 0
    %v3185 = vsel %vm387, %v3167, 0
    %3187 = vmatpush.msra.mxu0 0.0
    %3188 = vmatpush.msra.mxu0 0.0
    %3189 = vmatpush.msra.mxu0 0.0
    %3190 = vmatpush.msra.mxu0 0.0
    %3191 = vmatpush.msra.mxu0 0.0
    %3192 = vmatpush.msra.mxu0 0.0
    %3193 = vmatpush.msra.mxu0 0.0
    %3194 = vmatpush.msra.mxu0 0.0
    %3195 = vmatpush.msra.mxu0 0.0
    %3196 = vmatpush.msra.mxu0 0.0
    %3197 = vmatpush.msra.mxu0 0.0
    %3198 = vmatpush.msra.mxu0 0.0
    %3199 = vmatpush.msra.mxu0 0.0
    %3200 = vmatpush.msra.mxu0 0.0
    %3201 = vmatpush.msra.mxu0 0.0
    %3202 = vmatpush.msra.mxu0 %v2081
    %3203 = vmatmul.f32.gmra.mxu0 %v3170
    %v3204 = vpop.f32.mrf.mxu0
    %v3205 = vadd.f32 0.0, %v3204
    %3206 = vmatmul.f32.gmra.mxu0 %v3173
    %v3207 = vpop.f32.mrf.mxu0
    %v3208 = vadd.f32 0.0, %v3207
    %3209 = vmatmul.f32.gmra.mxu0 %v3176
    %v3210 = vpop.f32.mrf.mxu0
    %v3211 = vadd.f32 0.0, %v3210
    %3212 = vmatmul.f32.gmra.mxu0 %v3179
    %v3213 = vpop.f32.mrf.mxu0
    %v3214 = vadd.f32 0.0, %v3213
    %3215 = vmatmul.f32.gmra.mxu0 %v3182
    %v3216 = vpop.f32.mrf.mxu0
    %v3217 = vadd.f32 0.0, %v3216
    %3218 = vmatmul.f32.gmra.mxu0 %v3185
    %v3219 = vpop.f32.mrf.mxu0
    %v3220 = vadd.f32 0.0, %v3219
    %3221 = vdwg.mxu0
    %v3222 = vadd.f32 %v2931, %v3205
    %v3223 = vadd.f32 %v2932, %v3208
    %v3224 = vadd.f32 %v2933, %v3211
    %v3225 = vadd.f32 %v2934, %v3214
    %v3226 = vadd.f32 %v2935, %v3217
    %v3227 = vadd.f32 %v2936, %v3220
    %s3228 = scalar_lea.vmem %s9, 1
    %v3229 = vld [vmem:[%s3228] sm:$0x1]
    %v3231 = vperm.slane %v3229, 0
    %v3233 = vadd.f32 %v3222, %v3231
    %v3234 = vadd.f32 %v3223, %v3231
    %v3235 = vadd.f32 %v3224, %v3231
    %v3236 = vadd.f32 %v3225, %v3231
    %v3237 = vadd.f32 %v3226, %v3231
    %v3238 = vadd.f32 %v3227, %v3231
    %v3239 = vadd.f32 %v3233, %v1854
    %v3240 = vadd.f32 %v3234, %v1855
    %v3241 = vadd.f32 %v3235, %v1856
    %v3242 = vadd.f32 %v3236, %v1857
    %v3243 = vadd.f32 %v3237, %v1858
    %v3244 = vadd.f32 %v3238, %v1859
    %s3245 = scalar_lea.vmem %s10, 1
    %v3246 = vld [vmem:[%s3245] sm:$0x1]
    %s3247 = scalar_lea.vmem %s11, 1
    %v3248 = vld [vmem:[%s3247] sm:$0x1]
    %v3249 = vsel %vm146, %v3239, 0.0
    %3250 = vadd.xlane.f32.xlu0 %v3249
    %v3251 = vpop.xlane.xlu0 %3250
    %v3252 = vsel %vm146, %v3240, 0.0
    %3253 = vadd.xlane.f32.xlu0 %v3252
    %v3254 = vpop.xlane.xlu0 %3253
    %v3255 = vsel %vm146, %v3241, 0.0
    %3256 = vadd.xlane.f32.xlu0 %v3255
    %v3257 = vpop.xlane.xlu0 %3256
    %v3258 = vsel %vm146, %v3242, 0.0
    %3259 = vadd.xlane.f32.xlu0 %v3258
    %v3260 = vpop.xlane.xlu0 %3259
    %v3261 = vsel %vm146, %v3243, 0.0
    %3262 = vadd.xlane.f32.xlu0 %v3261
    %v3263 = vpop.xlane.xlu0 %3262
    %v3264 = vsel %vm146, %v3244, 0.0
    %3265 = vadd.xlane.f32.xlu0 %v3264
    %v3266 = vpop.xlane.xlu0 %3265
    %v3267 = vmul.f32 %v3251, %v171
    %v3268 = vmul.f32 %v3254, %v171
    %v3269 = vmul.f32 %v3257, %v171
    %v3270 = vmul.f32 %v3260, %v171
    %v3271 = vmul.f32 %v3263, %v171
    %v3272 = vmul.f32 %v3266, %v171
    %v3273 = vsub.f32 %v3239, %v3267
    %v3274 = vsub.f32 %v3240, %v3268
    %v3275 = vsub.f32 %v3241, %v3269
    %v3276 = vsub.f32 %v3242, %v3270
    %v3277 = vsub.f32 %v3243, %v3271
    %v3278 = vsub.f32 %v3244, %v3272
    %v3279 = vmul.f32 %v3273, %v3273
    %v3280 = vmul.f32 %v3274, %v3274
    %v3281 = vmul.f32 %v3275, %v3275
    %v3282 = vmul.f32 %v3276, %v3276
    %v3283 = vmul.f32 %v3277, %v3277
    %v3284 = vmul.f32 %v3278, %v3278
    %v3285 = vsel %vm146, %v3279, 0.0
    %3286 = vadd.xlane.f32.xlu0 %v3285
    %v3287 = vpop.xlane.xlu0 %3286
    %v3288 = vsel %vm146, %v3280, 0.0
    %3289 = vadd.xlane.f32.xlu0 %v3288
    %v3290 = vpop.xlane.xlu0 %3289
    %v3291 = vsel %vm146, %v3281, 0.0
    %3292 = vadd.xlane.f32.xlu0 %v3291
    %v3293 = vpop.xlane.xlu0 %3292
    %v3294 = vsel %vm146, %v3282, 0.0
    %3295 = vadd.xlane.f32.xlu0 %v3294
    %v3296 = vpop.xlane.xlu0 %3295
    %v3297 = vsel %vm146, %v3283, 0.0
    %3298 = vadd.xlane.f32.xlu0 %v3297
    %v3299 = vpop.xlane.xlu0 %3298
    %v3300 = vsel %vm146, %v3284, 0.0
    %3301 = vadd.xlane.f32.xlu0 %v3300
    %v3302 = vpop.xlane.xlu0 %3301
    %v3303 = vmul.f32 %v3287, %v171
    %v3304 = vmul.f32 %v3290, %v171
    %v3305 = vmul.f32 %v3293, %v171
    %v3306 = vmul.f32 %v3296, %v171
    %v3307 = vmul.f32 %v3299, %v171
    %v3308 = vmul.f32 %v3302, %v171
    %v3309 = vadd.f32 %v3303, 1e-06
    %v3310 = vadd.f32 %v3304, 1e-06
    %v3311 = vadd.f32 %v3305, 1e-06
    %v3312 = vadd.f32 %v3306, 1e-06
    %v3313 = vadd.f32 %v3307, 1e-06
    %v3314 = vadd.f32 %v3308, 1e-06
    %v3315 = vrsqrt.pop %v3309
    %v3316 = vmul.f32 %v3315, %v3309
    %v3317 = vmul.f32 %v3316, %v3315
    %v3318 = vmul.f32 0.5, %v3317
    %v3319 = vsub.f32 1.5, %v3318
    %v3320 = vmul.f32 %v3315, %v3319
    %vm3321 = vweird.f32 %v3309
    %vm3322 = vweird.f32 %v3315
    %vm3323 = vmor %vm3321, %vm3322
    %v3324 = vsel %vm3323, %v3315, %v3320
    %v3325 = vrsqrt.pop %v3310
    %v3326 = vmul.f32 %v3325, %v3310
    %v3327 = vmul.f32 %v3326, %v3325
    %v3328 = vmul.f32 0.5, %v3327
    %v3329 = vsub.f32 1.5, %v3328
    %v3330 = vmul.f32 %v3325, %v3329
    %vm3331 = vweird.f32 %v3310
    %vm3332 = vweird.f32 %v3325
    %vm3333 = vmor %vm3331, %vm3332
    %v3334 = vsel %vm3333, %v3325, %v3330
    %v3335 = vrsqrt.pop %v3311
    %v3336 = vmul.f32 %v3335, %v3311
    %v3337 = vmul.f32 %v3336, %v3335
    %v3338 = vmul.f32 0.5, %v3337
    %v3339 = vsub.f32 1.5, %v3338
    %v3340 = vmul.f32 %v3335, %v3339
    %vm3341 = vweird.f32 %v3311
    %vm3342 = vweird.f32 %v3335
    %vm3343 = vmor %vm3341, %vm3342
    %v3344 = vsel %vm3343, %v3335, %v3340
    %v3345 = vrsqrt.pop %v3312
    %v3346 = vmul.f32 %v3345, %v3312
    %v3347 = vmul.f32 %v3346, %v3345
    %v3348 = vmul.f32 0.5, %v3347
    %v3349 = vsub.f32 1.5, %v3348
    %v3350 = vmul.f32 %v3345, %v3349
    %vm3351 = vweird.f32 %v3312
    %vm3352 = vweird.f32 %v3345
    %vm3353 = vmor %vm3351, %vm3352
    %v3354 = vsel %vm3353, %v3345, %v3350
    %v3355 = vrsqrt.pop %v3313
    %v3356 = vmul.f32 %v3355, %v3313
    %v3357 = vmul.f32 %v3356, %v3355
    %v3358 = vmul.f32 0.5, %v3357
    %v3359 = vsub.f32 1.5, %v3358
    %v3360 = vmul.f32 %v3355, %v3359
    %vm3361 = vweird.f32 %v3313
    %vm3362 = vweird.f32 %v3355
    %vm3363 = vmor %vm3361, %vm3362
    %v3364 = vsel %vm3363, %v3355, %v3360
    %v3365 = vrsqrt.pop %v3314
    %v3366 = vmul.f32 %v3365, %v3314
    %v3367 = vmul.f32 %v3366, %v3365
    %v3368 = vmul.f32 0.5, %v3367
    %v3369 = vsub.f32 1.5, %v3368
    %v3370 = vmul.f32 %v3365, %v3369
    %vm3371 = vweird.f32 %v3314
    %vm3372 = vweird.f32 %v3365
    %vm3373 = vmor %vm3371, %vm3372
    %v3374 = vsel %vm3373, %v3365, %v3370
    %v3375 = vmul.f32 %v3273, %v3324
    %v3376 = vmul.f32 %v3274, %v3334
    %v3377 = vmul.f32 %v3275, %v3344
    %v3378 = vmul.f32 %v3276, %v3354
    %v3379 = vmul.f32 %v3277, %v3364
    %v3380 = vmul.f32 %v3278, %v3374
    %v3382 = vperm.slane %v3246, 0
    %v3384 = vmul.f32 %v3375, %v3382
    %v3385 = vmul.f32 %v3376, %v3382
    %v3386 = vmul.f32 %v3377, %v3382
    %v3387 = vmul.f32 %v3378, %v3382
    %v3388 = vmul.f32 %v3379, %v3382
    %v3389 = vmul.f32 %v3380, %v3382
    %v3391 = vperm.slane %v3248, 0
    %v3393 = vadd.f32 %v3384, %v3391
    %v3394 = vadd.f32 %v3385, %v3391
    %v3395 = vadd.f32 %v3386, %v3391
    %v3396 = vadd.f32 %v3387, %v3391
    %v3397 = vadd.f32 %v3388, %v3391
    %v3398 = vadd.f32 %v3389, %v3391
    %s3399 = scalar_lea.vmem %s12, 32
    %v3400 = vld [vmem:[%s3399] sm:$0xff]
    %v3401 = vld [vmem:[%s3399 + $0x8] sm:$0xff]
    %v3402 = vld [vmem:[%s3399 + $0x10] sm:$0xff]
    %v3403 = vld [vmem:[%s3399 + $0x18] sm:$0xff]
    %s3404 = scalar_lea.vmem %s13, 1
    %v3405 = vld [vmem:[%s3404] sm:$0x1]
    %v3407 = vperm.slane %v3405, 0
    %v3410 = vsel %vm146, %v3393, 0
    %v3413 = vsel %vm146, %v3394, 0
    %v3416 = vsel %vm146, %v3395, 0
    %v3419 = vsel %vm146, %v3396, 0
    %v3422 = vsel %vm146, %v3397, 0
    %v3425 = vsel %vm146, %v3398, 0
    %3427 = vmatpush.msra.mxu0 0.0
    %3428 = vmatpush.msra.mxu0 0.0
    %3429 = vmatpush.msra.mxu0 0.0
    %3430 = vmatpush.msra.mxu0 0.0
    %3431 = vmatpush.msra.mxu0 0.0
    %3432 = vmatpush.msra.mxu0 0.0
    %3433 = vmatpush.msra.mxu0 0.0
    %3434 = vmatpush.msra.mxu0 0.0
    %3435 = vmatpush.msra.mxu0 0.0
    %3436 = vmatpush.msra.mxu0 0.0
    %3437 = vmatpush.msra.mxu0 0.0
    %3438 = vmatpush.msra.mxu0 0.0
    %3439 = vmatpush.msra.mxu0 %v3403
    %3440 = vmatpush.msra.mxu0 %v3402
    %3441 = vmatpush.msra.mxu0 %v3401
    %3442 = vmatpush.msra.mxu0 %v3400
    %3443 = vmatmul.f32.gmra.mxu0 %v3410
    %v3444 = vpop.f32.mrf.mxu0
    %v3445 = vadd.f32 %v3407, %v3444
    %3446 = vmatmul.f32.gmra.mxu0 %v3413
    %v3447 = vpop.f32.mrf.mxu0
    %v3448 = vadd.f32 %v3407, %v3447
    %3449 = vmatmul.f32.gmra.mxu0 %v3416
    %v3450 = vpop.f32.mrf.mxu0
    %v3451 = vadd.f32 %v3407, %v3450
    %3452 = vmatmul.f32.gmra.mxu0 %v3419
    %v3453 = vpop.f32.mrf.mxu0
    %v3454 = vadd.f32 %v3407, %v3453
    %3455 = vmatmul.f32.gmra.mxu0 %v3422
    %v3456 = vpop.f32.mrf.mxu0
    %v3457 = vadd.f32 %v3407, %v3456
    %3458 = vmatmul.f32.gmra.mxu0 %v3425
    %v3459 = vpop.f32.mrf.mxu0
    %v3460 = vadd.f32 %v3407, %v3459
    %3461 = vdwg.mxu0
    %v3462 = vmul.f32 %v3445, %v3445
    %v3463 = vmul.f32 %v3448, %v3448
    %v3464 = vmul.f32 %v3451, %v3451
    %v3465 = vmul.f32 %v3454, %v3454
    %v3466 = vmul.f32 %v3457, %v3457
    %v3467 = vmul.f32 %v3460, %v3460
    %v3468 = vmul.f32 %v3445, %v3462
    %v3469 = vmul.f32 %v3448, %v3463
    %v3470 = vmul.f32 %v3451, %v3464
    %v3471 = vmul.f32 %v3454, %v3465
    %v3472 = vmul.f32 %v3457, %v3466
    %v3473 = vmul.f32 %v3460, %v3467
    %v3474 = vmul.f32 %v3468, 0.044715
    %v3475 = vmul.f32 %v3469, 0.044715
    %v3476 = vmul.f32 %v3470, 0.044715
    %v3477 = vmul.f32 %v3471, 0.044715
    %v3478 = vmul.f32 %v3472, 0.044715
    %v3479 = vmul.f32 %v3473, 0.044715
    %v3480 = vadd.f32 %v3445, %v3474
    %v3481 = vadd.f32 %v3448, %v3475
    %v3482 = vadd.f32 %v3451, %v3476
    %v3483 = vadd.f32 %v3454, %v3477
    %v3484 = vadd.f32 %v3457, %v3478
    %v3485 = vadd.f32 %v3460, %v3479
    %v3486 = vmul.f32 %v3480, 0.7978846
    %v3487 = vmul.f32 %v3481, 0.7978846
    %v3488 = vmul.f32 %v3482, 0.7978846
    %v3489 = vmul.f32 %v3483, 0.7978846
    %v3490 = vmul.f32 %v3484, 0.7978846
    %v3491 = vmul.f32 %v3485, 0.7978846
    %v3492 = vtanh.pop %v3486
    %v3493 = vtanh.pop %v3487
    %v3494 = vtanh.pop %v3488
    %v3495 = vtanh.pop %v3489
    %v3496 = vtanh.pop %v3490
    %v3497 = vtanh.pop %v3491
    %v3498 = vadd.f32 %v3492, 1.0
    %v3499 = vadd.f32 %v3493, 1.0
    %v3500 = vadd.f32 %v3494, 1.0
    %v3501 = vadd.f32 %v3495, 1.0
    %v3502 = vadd.f32 %v3496, 1.0
    %v3503 = vadd.f32 %v3497, 1.0
    %v3504 = vmul.f32 %v3498, 0.5
    %v3505 = vmul.f32 %v3499, 0.5
    %v3506 = vmul.f32 %v3500, 0.5
    %v3507 = vmul.f32 %v3501, 0.5
    %v3508 = vmul.f32 %v3502, 0.5
    %v3509 = vmul.f32 %v3503, 0.5
    %v3510 = vmul.f32 %v3445, %v3504
    %v3511 = vmul.f32 %v3448, %v3505
    %v3512 = vmul.f32 %v3451, %v3506
    %v3513 = vmul.f32 %v3454, %v3507
    %v3514 = vmul.f32 %v3457, %v3508
    %v3515 = vmul.f32 %v3460, %v3509
    %s3516 = scalar_lea.vmem %s14, 128
    %v3517 = vld [vmem:[%s3516] sm:$0xff]
    %v3518 = vld [vmem:[%s3516 + $0x8] sm:$0xff]
    %v3519 = vld [vmem:[%s3516 + $0x10] sm:$0xff]
    %v3520 = vld [vmem:[%s3516 + $0x18] sm:$0xff]
    %v3521 = vld [vmem:[%s3516 + $0x20] sm:$0xff]
    %v3522 = vld [vmem:[%s3516 + $0x28] sm:$0xff]
    %v3523 = vld [vmem:[%s3516 + $0x30] sm:$0xff]
    %v3524 = vld [vmem:[%s3516 + $0x38] sm:$0xff]
    %v3525 = vld [vmem:[%s3516 + $0x40] sm:$0xff]
    %v3526 = vld [vmem:[%s3516 + $0x48] sm:$0xff]
    %v3527 = vld [vmem:[%s3516 + $0x50] sm:$0xff]
    %v3528 = vld [vmem:[%s3516 + $0x58] sm:$0xff]
    %v3529 = vld [vmem:[%s3516 + $0x60] sm:$0xff]
    %v3530 = vld [vmem:[%s3516 + $0x68] sm:$0xff]
    %v3531 = vld [vmem:[%s3516 + $0x70] sm:$0xff]
    %v3532 = vld [vmem:[%s3516 + $0x78] sm:$0xff]
    %s3533 = scalar_lea.vmem %s15, 1
    %v3534 = vld [vmem:[%s3533] sm:$0x1]
    %v3536 = vperm.slane %v3534, 0
    %3538 = vmatpush.msra.mxu0 %v3532
    %3539 = vmatpush.msra.mxu0 %v3531
    %3540 = vmatpush.msra.mxu0 %v3530
    %3541 = vmatpush.msra.mxu0 %v3529
    %3542 = vmatpush.msra.mxu0 %v3528
    %3543 = vmatpush.msra.mxu0 %v3527
    %3544 = vmatpush.msra.mxu0 %v3526
    %3545 = vmatpush.msra.mxu0 %v3525
    %3546 = vmatpush.msra.mxu0 %v3524
    %3547 = vmatpush.msra.mxu0 %v3523
    %3548 = vmatpush.msra.mxu0 %v3522
    %3549 = vmatpush.msra.mxu0 %v3521
    %3550 = vmatpush.msra.mxu0 %v3520
    %3551 = vmatpush.msra.mxu0 %v3519
    %3552 = vmatpush.msra.mxu0 %v3518
    %3553 = vmatpush.msra.mxu0 %v3517
    %3554 = vmatmul.f32.gmra.mxu0 %v3510
    %v3555 = vpop.f32.mrf.mxu0
    %v3556 = vadd.f32 %v3536, %v3555
    %3557 = vmatmul.f32.gmra.mxu0 %v3511
    %v3558 = vpop.f32.mrf.mxu0
    %3559 = vmatmul.f32.gmra.mxu0 %v3512
    %v3560 = vpop.f32.mrf.mxu0
    %3561 = vmatmul.f32.gmra.mxu0 %v3513
    %v3562 = vpop.f32.mrf.mxu0
    %v3563 = vadd.f32 %v3536, %v3562
    %3564 = vmatmul.f32.gmra.mxu0 %v3514
    %v3565 = vpop.f32.mrf.mxu0
    %3566 = vmatmul.f32.gmra.mxu0 %v3515
    %v3567 = vpop.f32.mrf.mxu0
    %3568 = vdwg.mxu0
    %v3569 = vadd.f32 %v3556, %v3239
    %v3570 = vadd.f32 %v3563, %v3242
    %v3571 = vld [vmem:[%s16] sm:$0x1]
    %v3572 = vld [vmem:[%s17] sm:$0x1]
    %v3573 = vld [vmem:[%s18] sm:$0xff]
    %v3574 = vld [vmem:[%s18 + $0x8] sm:$0xff]
    %v3575 = vld [vmem:[%s18 + $0x10] sm:$0xff]
    %v3576 = vld [vmem:[%s18 + $0x18] sm:$0xff]
    %v3577 = vld [vmem:[%s19] sm:$0x1]
    %vm3578 = vcmask 253952
    %v3579 = vsel %vm3578, %v3569, 0.0
    %3580 = vadd.xlane.f32.xlu0 %v3579
    %v3581 = vpop.xlane.xlu0 %3580
    %v3582 = vmul.f32 %v3581, %v171
    %v3583 = vsub.f32 %v3569, %v3582
    %v3584 = vmul.f32 %v3583, %v3583
    %v3585 = vsel %vm3578, %v3584, 0.0
    %3586 = vadd.xlane.f32.xlu0 %v3585
    %v3587 = vpop.xlane.xlu0 %3586
    %v3588 = vmul.f32 %v3587, %v171
    %v3589 = vadd.f32 %v3588, 1e-06
    %v3590 = vrsqrt.pop %v3589
    %v3591 = vmul.f32 %v3590, %v3589
    %v3592 = vmul.f32 %v3591, %v3590
    %v3593 = vmul.f32 0.5, %v3592
    %v3594 = vsub.f32 1.5, %v3593
    %v3595 = vmul.f32 %v3590, %v3594
    %vm3596 = vweird.f32 %v3589
    %vm3597 = vweird.f32 %v3590
    %vm3598 = vmor %vm3596, %vm3597
    %v3599 = vsel %vm3598, %v3590, %v3595
    %v3600 = vmul.f32 %v3583, %v3599
    %v3601 = vmul.f32 %v3600, %v3571
    %v3602 = vadd.f32 %v3601, %v3572
    %v3604 = vsel %vm146, %v3602, 0
    %3606 = vmatpush.msra.mxu0 0.0
    %3607 = vmatpush.msra.mxu0 0.0
    %3608 = vmatpush.msra.mxu0 0.0
    %3609 = vmatpush.msra.mxu0 0.0
    %3610 = vmatpush.msra.mxu0 0.0
    %3611 = vmatpush.msra.mxu0 0.0
    %3612 = vmatpush.msra.mxu0 0.0
    %3613 = vmatpush.msra.mxu0 0.0
    %3614 = vmatpush.msra.mxu0 0.0
    %3615 = vmatpush.msra.mxu0 0.0
    %3616 = vmatpush.msra.mxu0 0.0
    %3617 = vmatpush.msra.mxu0 0.0
    %3618 = vmatpush.msra.mxu0 %v3576
    %3619 = vmatpush.msra.mxu0 %v3575
    %3620 = vmatpush.msra.mxu0 %v3574
    %3621 = vmatpush.msra.mxu0 %v3573
    %3622 = vmatmul.f32.gmra.mxu0 %v3604
    %v3623 = vpop.f32.mrf.mxu0
    %v3624 = vadd.f32 %v3577, %v3623
    %3625 = vdwg.mxu0
    %3626 = vst [vmem:[#allocation2] sm:$0x1] %v3624
    %v3627 = vsel %vm3578, %v3570, 0.0
    %3628 = vadd.xlane.f32.xlu0 %v3627
    %v3629 = vpop.xlane.xlu0 %3628
    %v3630 = vmul.f32 %v3629, %v171
    %v3631 = vsub.f32 %v3570, %v3630
    %v3632 = vmul.f32 %v3631, %v3631
    %v3633 = vsel %vm3578, %v3632, 0.0
    %3634 = vadd.xlane.f32.xlu0 %v3633
    %v3635 = vpop.xlane.xlu0 %3634
    %v3636 = vmul.f32 %v3635, %v171
    %v3637 = vadd.f32 %v3636, 1e-06
    %v3638 = vrsqrt.pop %v3637
    %v3639 = vmul.f32 %v3638, %v3637
    %v3640 = vmul.f32 %v3639, %v3638
    %v3641 = vmul.f32 0.5, %v3640
    %v3642 = vsub.f32 1.5, %v3641
    %v3643 = vmul.f32 %v3638, %v3642
    %vm3644 = vweird.f32 %v3637
    %vm3645 = vweird.f32 %v3638
    %vm3646 = vmor %vm3644, %vm3645
    %v3647 = vsel %vm3646, %v3638, %v3643
    %v3648 = vmul.f32 %v3631, %v3647
    %v3649 = vmul.f32 %v3648, %v3571
    %v3650 = vadd.f32 %v3649, %v3572
    %v3652 = vsel %vm146, %v3650, 0
    %3654 = vmatpush.msra.mxu0 0.0
    %3655 = vmatpush.msra.mxu0 0.0
    %3656 = vmatpush.msra.mxu0 0.0
    %3657 = vmatpush.msra.mxu0 0.0
    %3658 = vmatpush.msra.mxu0 0.0
    %3659 = vmatpush.msra.mxu0 0.0
    %3660 = vmatpush.msra.mxu0 0.0
    %3661 = vmatpush.msra.mxu0 0.0
    %3662 = vmatpush.msra.mxu0 0.0
    %3663 = vmatpush.msra.mxu0 0.0
    %3664 = vmatpush.msra.mxu0 0.0
    %3665 = vmatpush.msra.mxu0 0.0
    %3666 = vmatpush.msra.mxu0 %v3576
    %3667 = vmatpush.msra.mxu0 %v3575
    %3668 = vmatpush.msra.mxu0 %v3574
    %3669 = vmatpush.msra.mxu0 %v3573
    %3670 = vmatmul.f32.gmra.mxu0 %v3652
    %v3671 = vpop.f32.mrf.mxu0
    %v3672 = vadd.f32 %v3577, %v3671
    %3673 = vdwg.mxu0
    %3674 = vst [vmem:[#allocation2 + $0x1] sm:$0x1] %v3672
    // Predicated region
    $region82: #{vit_forward.1} parent=1 // pred_check
      _
    $region83: #{vit_forward.1} parent=1 // pred_check_branch
      %3676 = sbr.rel (0) target = $region85
    $region84: #{vit_forward.1} parent=1 // pred_region
      %3678 = vsyncadd [#allocation3], 0
      %s3680 = sshll.u32 [#allocation2], 4
      %s3681 = int_to_ptr.vmem [resolvable:$true] %s3680
      %s3682 = sshll.u32 %s20, 4
      %s3683 = int_to_ptr.hbm [resolvable:$true] %s3682
      %3685 = dma.vmem_to_hbm [thread:$0]  %s3681, 32, %s3683, [#allocation3]
    $region85: #{vit_forward.1} parent=1 // pred_fallthru
      _
    // Predicated region
    $region86: #{vit_forward.1} parent=1 // pred_check
      _
    $region87: #{vit_forward.1} parent=1 // pred_check_branch
      %3687 = sbr.rel (0) target = $region89
    $region88: #{vit_forward.1} parent=1 // pred_region
      %3689 = dma.done [#allocation3], 32
    $region89: #{vit_forward.1} parent=1 // pred_fallthru
      _
    %3690 = vsyncpa [#allocation3], 1

</llo_original>
